<compile_context>
chip_gen: v7x
topology: tpu7x:2x2x1
jax: 0.10.0
libtpu: 0.0.40
codegen_flags: <defaults>
</compile_context>

<pallas_src>
from functools import partial

import jax
import jax.numpy as jnp
from jax.experimental import pallas as pl
from jax.experimental.pallas import tpu as pltpu

EXPANSION = 4
BN_EPS = 1e-5
LANE = 128                         # TPU lane width: keep channels 128-dense
# 32 MiB: plenty for these block footprints, and leaves headroom on v7x
# (64 MiB physical VMEM / 32 MiB scoped default); v5e/v6e have 128 MiB.
VMEM_LIMIT_BYTES = 32 * 1024 * 1024


# ----------------------------------------------------------------------------
# Small helpers
# ----------------------------------------------------------------------------
def _round_up(x, n):
    return (x + n - 1) // n * n


def _choose_row_tile(m, target=512):
    """Row-tile size and padded row count so the grid divides evenly.

    target=512 keeps mem-bound kernels near the HBM roofline on v6e; shapes
    here are tiny so it only matters when stacking real-sized blocks.
    """
    if m >= target:
        return target, _round_up(m, target)
    tm = _round_up(m, 8)
    return tm, tm


def _pick_128_tile(n, target=256):
    """Lane-dense column tile: 256 if it divides, else 128 (n is 128-mult)."""
    return target if n % target == 0 else LANE


# ----------------------------------------------------------------------------
# Kernel 1: tiled matmul + bias (+ReLU) with K-axis accumulation (conv1).
# ----------------------------------------------------------------------------
def _matmul_bias_kernel(x_ref, w_ref, b_ref, o_ref, acc_ref, *, relu):
    @pl.when(pl.program_id(2) == 0)
    def _init():
        acc_ref[...] = jnp.zeros_like(acc_ref)

    acc_ref[...] += jnp.dot(x_ref[...], w_ref[...],
                            preferred_element_type=jnp.float32)

    @pl.when(pl.program_id(2) == pl.num_programs(2) - 1)
    def _finalize():
        y = acc_ref[...] + b_ref[...]
        if relu:
            y = jnp.maximum(y, 0.0)
        o_ref[...] = y.astype(o_ref.dtype)


def matmul_bias(x2d, w, bias, *, relu, out_dtype, tm, tn, tk):
    m, k = x2d.shape
    kw, n = w.shape
    assert k == kw and m % tm == 0 and n % tn == 0 and k % tk == 0
    kernel = partial(_matmul_bias_kernel, relu=relu)
    return pl.pallas_call(
        kernel,
        out_shape=jax.ShapeDtypeStruct((m, n), out_dtype),
        grid_spec=pltpu.PrefetchScalarGridSpec(
            num_scalar_prefetch=0,
            grid=(m // tm, n // tn, k // tk),
            in_specs=[
                pl.BlockSpec((tm, tk), lambda i, j, kk: (i, kk)),
                pl.BlockSpec((tk, tn), lambda i, j, kk: (kk, j)),
                pl.BlockSpec((1, tn), lambda i, j, kk: (0, j)),
            ],
            out_specs=pl.BlockSpec((tm, tn), lambda i, j, kk: (i, j)),
            scratch_shapes=[pltpu.VMEM((tm, tn), jnp.float32)],
        ),
        compiler_params=pltpu.CompilerParams(
            dimension_semantics=("parallel", "parallel", "arbitrary"),
            vmem_limit_bytes=VMEM_LIMIT_BYTES,
        ),
    )(x2d, w, bias.reshape(1, n))


# ----------------------------------------------------------------------------
# Kernel 2: 3x3 conv (stride, pad=1) + folded BN + ReLU.
# Per output row: slice the 9 shifted tap windows directly from the VMEM-
# resident input plane, lane-concat them (free: each window is 128-wide
# aligned) and run ONE MXU matmul.  No patch staging buffer, no restaging
# stores -> the kernel is MXU-bound instead of vector-store-slot bound.
# ----------------------------------------------------------------------------
def _conv3x3_kernel(x_ref, w_ref, b_ref, o_ref, *, th, wo, stride, wph, cp):
    # x_ref: (Htot, Wtot, Cp)  spatially padded, W phase-rearranged (stride>1)
    # w_ref: (9*Cp, Cout)      taps stacked (kh, kw, cin), BN2 folded in
    # b_ref: (1, Cout)
    # o_ref: (th*wo, Cout)     one row-block of one image
    h_base = pl.program_id(1) * th
    w_all = w_ref[...]                       # hoisted: resident weight value
    bias = b_ref[...]
    for i in range(th):                      # static unroll (th <= 8)
        h_out = h_base + i
        taps = []
        for dh in range(3):
            r = stride * h_out + dh          # dynamic leading-dim row index
            for dw in range(3):
                # contiguous slice thanks to the W-phase layout for stride>1
                col0 = (dw % stride) * wph + (dw // stride)
                taps.append(x_ref[r, pl.ds(col0, wo), :])     # (wo, Cp)
        lhs = jnp.concatenate(taps, axis=-1)                  # (wo, 9*Cp)
        y = jnp.dot(lhs, w_all, preferred_element_type=jnp.float32)
        y = jnp.maximum(y + bias, 0.0)
        # TODO(synk): when wo is not a multiple of 8 these are sublane-masked
        # stores; pad wo to 8 (and drop the extra cols) for real-sized stages.
        o_ref[i * wo:(i + 1) * wo, :] = y.astype(o_ref.dtype)


def conv3x3_bn_relu(xre, w2, b2, *, stride, th, n_hb, wo, wph, out_dtype):
    n_img, htot, wtot, cp = xre.shape
    k9, cout = w2.shape
    kernel = partial(_conv3x3_kernel, th=th, wo=wo, stride=stride,
                     wph=wph, cp=cp)
    # TODO(synk): for large feature maps, H-tile the input block with a halo
    # instead of bringing the whole padded plane into VMEM (v7x budget).
    return pl.pallas_call(
        kernel,
        out_shape=jax.ShapeDtypeStruct((n_img, n_hb, th * wo, cout), out_dtype),
        grid_spec=pltpu.PrefetchScalarGridSpec(
            num_scalar_prefetch=0,
            grid=(n_img, n_hb),
            in_specs=[
                pl.BlockSpec((None, htot, wtot, cp), lambda n, h: (n, 0, 0, 0)),
                pl.BlockSpec((k9, cout), lambda n, h: (0, 0)),
                pl.BlockSpec((1, cout), lambda n, h: (0, 0)),
            ],
            out_specs=pl.BlockSpec((None, None, th * wo, cout),
                                   lambda n, h: (n, h, 0, 0)),
        ),
        compiler_params=pltpu.CompilerParams(
            dimension_semantics=("parallel", "parallel"),
            vmem_limit_bytes=VMEM_LIMIT_BYTES,
        ),
    )(xre, w2, b2.reshape(1, cout))


# ----------------------------------------------------------------------------
# Kernel 3: fused conv3 + bn3 + shortcut(+bn) + residual add + ReLU.
# Grid is (N-tiles, M-tiles) with M innermost so the weight column blocks stay
# VMEM-resident across all row tiles (weights are streamed only once per
# column block instead of once per M tile).
# ----------------------------------------------------------------------------
def _conv3_shortcut_kernel(a_ref, s_ref, w3_ref, ws_ref, b_ref, o_ref):
    acc = jnp.dot(a_ref[...], w3_ref[...], preferred_element_type=jnp.float32)
    acc = acc + jnp.dot(s_ref[...], ws_ref[...],
                        preferred_element_type=jnp.float32)
    o_ref[...] = jnp.maximum(acc + b_ref[...], 0.0).astype(o_ref.dtype)


def _conv3_identity_kernel(a_ref, s_ref, w3_ref, b_ref, o_ref):
    acc = jnp.dot(a_ref[...], w3_ref[...], preferred_element_type=jnp.float32)
    acc = acc + s_ref[...].astype(jnp.float32)   # direct VPU residual add
    o_ref[...] = jnp.maximum(acc + b_ref[...], 0.0).astype(o_ref.dtype)


def conv3_shortcut_add_relu(a2d, s2d, w3, ws, bias, *, tm, tn, identity):
    m, k1 = a2d.shape
    _, n = w3.shape
    assert m == s2d.shape[0] and m % tm == 0 and n % tn == 0
    grid = (n // tn, m // tm)        # M innermost -> weights resident per j
    if identity:
        assert s2d.shape[1] == n
        kernel = _conv3_identity_kernel
        in_specs = [
            pl.BlockSpec((tm, k1), lambda j, i: (i, 0)),
            pl.BlockSpec((tm, tn), lambda j, i: (i, j)),
            pl.BlockSpec((k1, tn), lambda j, i: (0, j)),
            pl.BlockSpec((1, tn), lambda j, i: (0, j)),
        ]
        args = (a2d, s2d, w3, bias.reshape(1, n))
    else:
        k2 = s2d.shape[1]
        kernel = _conv3_shortcut_kernel
        in_specs = [
            pl.BlockSpec((tm, k1), lambda j, i: (i, 0)),
            pl.BlockSpec((tm, k2), lambda j, i: (i, 0)),
            pl.BlockSpec((k1, tn), lambda j, i: (0, j)),
            pl.BlockSpec((k2, tn), lambda j, i: (0, j)),
            pl.BlockSpec((1, tn), lambda j, i: (0, j)),
        ]
        args = (a2d, s2d, w3, ws, bias.reshape(1, n))
    return pl.pallas_call(
        kernel,
        out_shape=jax.ShapeDtypeStruct((m, n), jnp.float32),
        grid_spec=pltpu.PrefetchScalarGridSpec(
            num_scalar_prefetch=0,
            grid=grid,
            in_specs=in_specs,
            out_specs=pl.BlockSpec((tm, tn), lambda j, i: (i, j)),
        ),
        compiler_params=pltpu.CompilerParams(
            dimension_semantics=("parallel", "parallel"),
            vmem_limit_bytes=VMEM_LIMIT_BYTES,
        ),
    )(*args)


# ----------------------------------------------------------------------------
# Parameter setup (deterministic, mimics nn.Module __init__ shapes)
# ----------------------------------------------------------------------------
def _bn_params(c, salt):
    gamma = 1.0 + 0.05 * jnp.arange(c, dtype=jnp.float32)
    beta = 0.02 * jnp.arange(c, dtype=jnp.float32) - 0.1 * salt
    mean = 0.01 * jnp.arange(c, dtype=jnp.float32)
    var = 1.0 + 0.03 * jnp.arange(c, dtype=jnp.float32)
    return gamma, beta, mean, var


def _fold_bn(gamma, beta, mean, var):
    scale = gamma / jnp.sqrt(var + BN_EPS)
    bias = beta - mean * scale
    return scale, bias


def init_bottleneck_params(key, in_planes, planes, stride):
    out_planes = EXPANSION * planes
    k1, k2, k3, k4 = jax.random.split(key, 4)
    params = {
        # PyTorch conv weight layout: (Cout, Cin, kH, kW)
        "w1": 0.2 * jax.random.normal(k1, (planes, in_planes, 1, 1), jnp.float32),
        "w2": 0.2 * jax.random.normal(k2, (planes, planes, 3, 3), jnp.float32),
        "w3": 0.2 * jax.random.normal(k3, (out_planes, planes, 1, 1), jnp.float32),
        "bn1": _bn_params(planes, 1.0),
        "bn2": _bn_params(planes, 2.0),
        "bn3": _bn_params(out_planes, 3.0),
    }
    if stride != 1 or in_planes != out_planes:
        params["ws"] = 0.2 * jax.random.normal(
            k4, (out_planes, in_planes, 1, 1), jnp.float32)
        params["bns"] = _bn_params(out_planes, 4.0)
    return params


def _prepare_params(params, in_planes, planes, compute_dtype):
    """Fold BN into the weights, pad channels to 128, cast MXU inputs."""
    out_planes = EXPANSION * planes
    cin_p = _round_up(in_planes, LANE)
    cp = _round_up(planes, LANE)
    cout_p = _round_up(out_planes, LANE)

    def pad2d(w, rows, cols):
        return jnp.zeros((rows, cols), jnp.float32).at[
            : w.shape[0], : w.shape[1]].set(w)

    s1, b1 = _fold_bn(*params["bn1"])
    w1 = params["w1"].reshape(planes, in_planes).T * s1[None, :]
    w1p = pad2d(w1, cin_p, cp)
    b1p = jnp.zeros((cp,), jnp.float32).at[:planes].set(b1)

    s2, b2 = _fold_bn(*params["bn2"])
    w2 = jnp.transpose(params["w2"], (2, 3, 1, 0)) * s2      # (3,3,Cin,Cout)
    w2p = jnp.zeros((3, 3, cp, cp), jnp.float32).at[
        :, :, :planes, :planes].set(w2).reshape(9 * cp, cp)
    b2p = jnp.zeros((cp,), jnp.float32).at[:planes].set(b2)

    s3, b3 = _fold_bn(*params["bn3"])
    w3 = params["w3"].reshape(out_planes, planes).T * s3[None, :]
    w3p = pad2d(w3, cp, cout_p)
    bias_out = jnp.zeros((cout_p,), jnp.float32).at[:out_planes].set(b3)

    cd = compute_dtype
    if "ws" in params:
        ss, bs = _fold_bn(*params["bns"])
        ws = params["ws"].reshape(out_planes, in_planes).T * ss[None, :]
        wsp = pad2d(ws, cin_p, cout_p).astype(cd)
        bias_out = bias_out.at[:out_planes].add(bs)
    else:
        # Identity shortcut: no weight needed at all (direct add in kernel 3).
        assert cin_p == cout_p and in_planes == out_planes
        wsp = None

    return {
        "w1": w1p.astype(cd), "b1": b1p,
        "w2": w2p.astype(cd), "b2": b2p,
        "w3": w3p.astype(cd), "ws": wsp, "bias_out": bias_out,
    }


# ----------------------------------------------------------------------------
# Forward pass (inference/eval BatchNorm semantics, like the original)
# ----------------------------------------------------------------------------
@partial(jax.jit, static_argnames=("stride", "compute_dtype"))
def bottleneck_forward(x_nchw, params, stride, compute_dtype=jnp.bfloat16):
    assert stride in (1, 2), "Bottleneck blocks use stride 1 or 2"
    n, cin, h, w = x_nchw.shape
    planes = params["w1"].shape[0]
    out_planes = EXPANSION * planes
    cin_p = _round_up(cin, LANE)
    cp = _round_up(planes, LANE)
    cout_p = _round_up(out_planes, LANE)
    identity = "ws" not in params            # static (pytree structure)

    prep = _prepare_params(params, cin, planes, compute_dtype)

    # NCHW -> NHWC, channel-pad to a lane-dense multiple of 128.
    # TODO(synk): keep activations NHWC end-to-end when stacking blocks so
    # these boundary transposes leave the hot path.
    x_f32 = jnp.transpose(x_nchw, (0, 2, 3, 1)).astype(jnp.float32)
    x_f32 = jnp.pad(x_f32, ((0, 0), (0, 0), (0, 0), (0, cin_p - cin)))
    x = x_f32.astype(compute_dtype)

    # ---- conv1 (1x1) + bn1 + relu: tiled, pipelined matmul ----------------
    m1 = n * h * w
    tm1, m1p = _choose_row_tile(m1)
    x2d = x.reshape(m1, cin_p)
    if m1p != m1:
        x2d = jnp.pad(x2d, ((0, m1p - m1), (0, 0)))
    out1 = matmul_bias(
        x2d, prep["w1"], prep["b1"], relu=True, out_dtype=compute_dtype,
        tm=tm1, tn=_pick_128_tile(cp), tk=_pick_128_tile(cin_p))
    if m1p != m1:
        out1 = out1[:m1]
    out1 = out1.reshape(n, h, w, cp)
    # TODO(synk): fuse conv1 into the 3x3 kernel (per row-block with halo in
    # VMEM) to remove this intermediate's HBM round trip entirely.

    # ---- conv2 (3x3, stride, pad=1) + bn2 + relu --------------------------
    ho = (h - 1) // stride + 1
    wo = (w - 1) // stride + 1
    th = ho if ho <= 8 else 8
    n_hb = -(-ho // th)
    ho_pad = n_hb * th
    # Per-phase padded width: 1 extra column of left-pad folded in for
    # stride 1, per-phase padding for stride 2 (valid for stride in {1, 2}).
    wph = wo + (2 // stride)
    wtot = stride * wph
    htot = stride * (ho_pad - 1) + 3
    pad_b = htot - h - 1
    pad_r = wtot - w - 1
    assert pad_b >= 0 and pad_r >= 0
    xsp = jnp.pad(out1, ((0, 0), (1, pad_b), (1, pad_r), (0, 0)))
    if stride > 1:
        # W-phase rearrangement: every tap window becomes a contiguous slice
        # inside the kernel (no strided in-kernel loads, no im2col).
        # TODO(synk): fold this one-shot pad + phase pass into the conv2
        # kernel's DMA to remove the remaining HBM round trip over out1.
        xsp = jnp.concatenate(
            [xsp[:, :, b::stride, :] for b in range(stride)], axis=2)
    out2 = conv3x3_bn_relu(
        xsp, prep["w2"], prep["b2"], stride=stride, th=th, n_hb=n_hb,
        wo=wo, wph=wph, out_dtype=compute_dtype)
    out2 = out2.reshape(n, ho_pad, wo, cp)
    if ho_pad != ho:
        out2 = out2[:, :ho]

    # ---- conv3 + bn3 + shortcut(+bn) + add + relu: one fused kernel -------
    m2 = n * ho * wo
    a2d = out2.reshape(m2, cp)
    if identity:
        # Identity shortcut: keep the residual in f32 (matches the reference
        # add precision) and add it directly inside the kernel.
        s2d = x_f32.reshape(m2, cin_p)
    elif stride == 1:
        s2d = x.reshape(m2, cin_p)
    else:
        # TODO(synk): fold this strided shortcut gather into the fused
        # kernel's input DMA instead of an XLA-level strided slice.
        s2d = x[:, ::stride, ::stride, :].reshape(m2, cin_p)
    tm2, m2p = _choose_row_tile(m2)
    if m2p != m2:
        a2d = jnp.pad(a2d, ((0, m2p - m2), (0, 0)))
        s2d = jnp.pad(s2d, ((0, m2p - m2), (0, 0)))
    out = conv3_shortcut_add_relu(
        a2d, s2d, prep["w3"], prep["ws"], prep["bias_out"],
        tm=tm2, tn=_pick_128_tile(cout_p), identity=identity)
    out = out[:m2, :out_planes].reshape(n, ho, wo, out_planes)
    return jnp.transpose(out, (0, 3, 1, 2)).astype(jnp.float32)


# ----------------------------------------------------------------------------
# Pure-JAX reference (correctness sanity check)
# ----------------------------------------------------------------------------
def bottleneck_reference(x_nchw, params, stride):
    x = jnp.transpose(x_nchw, (0, 2, 3, 1)).astype(jnp.float32)

    def conv(hh, wgt, s):
        w_hwio = jnp.transpose(wgt, (2, 3, 1, 0))
        p = wgt.shape[2] // 2
        return jax.lax.conv_general_dilated(
            hh, w_hwio, (s, s), [(p, p), (p, p)],
            dimension_numbers=("NHWC", "HWIO", "NHWC"))

    def bn(hh, p):
        gamma, beta, mean, var = p
        return (hh - mean) / jnp.sqrt(var + BN_EPS) * gamma + beta

    out = jax.nn.relu(bn(conv(x, params["w1"], 1), params["bn1"]))
    out = jax.nn.relu(bn(conv(out, params["w2"], stride), params["bn2"]))
    out = bn(conv(out, params["w3"], 1), params["bn3"])
    if "ws" in params:
        short = bn(conv(x, params["ws"], stride), params["bns"])
    else:
        short = x
    out = jax.nn.relu(out + short)
    return jnp.transpose(out, (0, 3, 1, 2))


# ----------------------------------------------------------------------------
if __name__ == "__main__":
    configs = [
        # (in_planes, planes, stride)
        (4, 4, 2),     # conv shortcut, strided (the usual toy test config)
        (4, 4, 1),     # conv shortcut, stride 1
        (16, 4, 1),    # identity shortcut path (direct residual add kernel)
    ]
    N, H, W = 2, 8, 8
    key = jax.random.PRNGKey(0)

    for idx, (in_planes, planes, stride) in enumerate(configs):
        kx, kp = jax.random.split(jax.random.fold_in(key, idx))
        x = jax.random.normal(kx, (N, in_planes, H, W), jnp.float32)
        params = init_bottleneck_params(kp, in_planes, planes, stride)

        ref = jax.block_until_ready(bottleneck_reference(x, params, stride))

        out = jax.block_until_ready(
            bottleneck_forward(x, params, stride=stride,
                               compute_dtype=jnp.float32))
        assert out.shape == ref.shape, (out.shape, ref.shape)
        err = float(jnp.max(jnp.abs(out - ref)))
        assert jnp.allclose(out, ref, atol=1e-3, rtol=1e-3), err

        if idx == 0:  # bf16 MXU-input path (f32 accumulation), looser check
            out_bf16 = jax.block_until_ready(
                bottleneck_forward(x, params, stride=stride,
                                   compute_dtype=jnp.bfloat16))
            err_bf16 = float(jnp.max(jnp.abs(out_bf16 - ref)))
            assert jnp.allclose(out_bf16, ref, atol=7e-2, rtol=7e-2), err_bf16

    print("KERNEL_OK")
</pallas_src>

<mosaic_0001>
module attributes {stable_mosaic.version = 11 : i64} {
  func.func @_matmul_bias_kernel(%arg0: i32, %arg1: i32, %arg2: i32, %arg3: memref<128x128xf32, #tpu.memory_space<vmem>>, %arg4: memref<128x128xf32, #tpu.memory_space<vmem>>, %arg5: memref<1x128xf32, #tpu.memory_space<vmem>>, %arg6: memref<128x128xf32, #tpu.memory_space<vmem>>, %arg7: memref<128x128xf32, #tpu.memory_space<vmem>>) attributes {dimension_semantics = [#tpu.dimension_semantics<parallel>, #tpu.dimension_semantics<parallel>, #tpu.dimension_semantics<arbitrary>], iteration_bounds = array<i64: 1, 1, 1>, scalar_prefetch = 0 : i64, scratch_operands = 1 : i64, tpu.core_type = #tpu.core_type<tc>, window_params = [{transform_indices = @transform_0, window_bounds = array<i64: 128, 128>}, {transform_indices = @transform_1, window_bounds = array<i64: 128, 128>}, {transform_indices = @transform_2, window_bounds = array<i64: 1, 128>}, {transform_indices = @transform_3, window_bounds = array<i64: 128, 128>}]} {
    %c0_i32 = arith.constant 0 : i32
    %0 = arith.cmpi eq, %arg2, %c0_i32 : i32
    %1 = arith.extui %0 : i1 to i32
    %c0_i32_0 = arith.constant 0 : i32
    %2 = arith.cmpi ne, %1, %c0_i32_0 : i32
    scf.if %2 {
      %cst_10 = arith.constant 0.000000e+00 : f32
      %12 = vector.broadcast %cst_10 : f32 to vector<128x128xf32>
      %c0_11 = arith.constant 0 : index
      %c0_12 = arith.constant 0 : index
      %13 = vector.load %arg7[%c0_11, %c0_12] : memref<128x128xf32, #tpu.memory_space<vmem>>, vector<128x128xf32>
      tpu.vector_store %arg7[%c0_11, %c0_12], %12 {strides = array<i32>} : memref<128x128xf32, #tpu.memory_space<vmem>>, vector<128x128xf32>,
    } else {
    }
    %c0 = arith.constant 0 : index
    %c0_1 = arith.constant 0 : index
    %3 = vector.load %arg7[%c0, %c0_1] : memref<128x128xf32, #tpu.memory_space<vmem>>, vector<128x128xf32>
    %c0_2 = arith.constant 0 : index
    %c0_3 = arith.constant 0 : index
    %4 = vector.load %arg3[%c0_2, %c0_3] : memref<128x128xf32, #tpu.memory_space<vmem>>, vector<128x128xf32>
    %c0_4 = arith.constant 0 : index
    %c0_5 = arith.constant 0 : index
    %5 = vector.load %arg4[%c0_4, %c0_5] : memref<128x128xf32, #tpu.memory_space<vmem>>, vector<128x128xf32>
    %cst = arith.constant dense<0.000000e+00> : vector<128x128xf32>
    %6 = tpu.matmul %4, %5, %cst {dimension_numbers = #tpu.dot_dimension_numbers<[1], [0], [0], [1], [0, 0, 1, 1], [], []>} : vector<128x128xf32>, vector<128x128xf32>, vector<128x128xf32> -> vector<128x128xf32>
    %7 = arith.addf %3, %6 : vector<128x128xf32>
    %c0_6 = arith.constant 0 : index
    %c0_7 = arith.constant 0 : index
    %8 = vector.load %arg7[%c0_6, %c0_7] : memref<128x128xf32, #tpu.memory_space<vmem>>, vector<128x128xf32>
    tpu.vector_store %arg7[%c0_6, %c0_7], %7 {strides = array<i32>} : memref<128x128xf32, #tpu.memory_space<vmem>>, vector<128x128xf32>,
    %c0_i32_8 = arith.constant 0 : i32
    %9 = arith.cmpi eq, %arg2, %c0_i32_8 : i32
    %10 = arith.extui %9 : i1 to i32
    %c0_i32_9 = arith.constant 0 : i32
    %11 = arith.cmpi ne, %10, %c0_i32_9 : i32
    scf.if %11 {
      %c0_10 = arith.constant 0 : index
      %c0_11 = arith.constant 0 : index
      %12 = vector.load %arg7[%c0_10, %c0_11] : memref<128x128xf32, #tpu.memory_space<vmem>>, vector<128x128xf32>
      %c0_12 = arith.constant 0 : index
      %c0_13 = arith.constant 0 : index
      %13 = vector.load %arg5[%c0_12, %c0_13] : memref<1x128xf32, #tpu.memory_space<vmem>>, vector<1x128xf32>
      %14 = vector.broadcast %13 : vector<1x128xf32> to vector<128x128xf32>
      %15 = arith.addf %12, %14 : vector<128x128xf32>
      %cst_14 = arith.constant 0.000000e+00 : f32
      %16 = vector.broadcast %cst_14 : f32 to vector<128x128xf32>
      %17 = arith.maximumf %15, %16 : vector<128x128xf32>
      %c0_15 = arith.constant 0 : index
      %c0_16 = arith.constant 0 : index
      %18 = vector.load %arg6[%c0_15, %c0_16] : memref<128x128xf32, #tpu.memory_space<vmem>>, vector<128x128xf32>
      tpu.vector_store %arg6[%c0_15, %c0_16], %17 {strides = array<i32>} : memref<128x128xf32, #tpu.memory_space<vmem>>, vector<128x128xf32>,
    } else {
    }
    return
  }
  func.func @transform_0(%arg0: i32, %arg1: i32, %arg2: i32) -> (i32, i32) {
    %c0_i32 = arith.constant 0 : i32
    return %arg0, %arg2 : i32, i32
  }
  func.func @transform_1(%arg0: i32, %arg1: i32, %arg2: i32) -> (i32, i32) {
    %c0_i32 = arith.constant 0 : i32
    return %arg2, %arg1 : i32, i32
  }
  func.func @transform_2(%arg0: i32, %arg1: i32, %arg2: i32) -> (i32, i32) {
    %c0_i32 = arith.constant 0 : i32
    %c0_i32_0 = arith.constant 0 : i32
    return %c0_i32, %arg1 : i32, i32
  }
  func.func @transform_3(%arg0: i32, %arg1: i32, %arg2: i32) -> (i32, i32) {
    %c0_i32 = arith.constant 0 : i32
    return %arg0, %arg1 : i32, i32
  }
}

module attributes {stable_mosaic.version = 11 : i64} {
  func.func @_conv3x3_kernel(%arg0: i32, %arg1: i32, %arg2: memref<1x9x10x128xf32, #tpu.memory_space<vmem>>, %arg3: memref<1152x128xf32, #tpu.memory_space<vmem>>, %arg4: memref<1x128xf32, #tpu.memory_space<vmem>>, %arg5: memref<1x1x16x128xf32, #tpu.memory_space<vmem>>) attributes {dimension_semantics = [#tpu.dimension_semantics<parallel>, #tpu.dimension_semantics<parallel>], iteration_bounds = array<i64: 2, 1>, scalar_prefetch = 0 : i64, scratch_operands = 0 : i64, tpu.core_type = #tpu.core_type<tc>, window_params = [{transform_indices = @transform_0, window_bounds = array<i64: 1, 9, 10, 128>}, {pipeline_mode = #tpu.pipeline_mode<synchronous>, transform_indices = @transform_1, window_bounds = array<i64: 1152, 128>}, {pipeline_mode = #tpu.pipeline_mode<synchronous>, transform_indices = @transform_2, window_bounds = array<i64: 1, 128>}, {transform_indices = @transform_3, window_bounds = array<i64: 1, 1, 16, 128>}]} {
    %c4_i32 = arith.constant 4 : i32
    %0 = arith.muli %arg1, %c4_i32 : i32
    %c0 = arith.constant 0 : index
    %c0_0 = arith.constant 0 : index
    %1 = vector.load %arg3[%c0, %c0_0] : memref<1152x128xf32, #tpu.memory_space<vmem>>, vector<1152x128xf32>
    %c0_1 = arith.constant 0 : index
    %c0_2 = arith.constant 0 : index
    %2 = vector.load %arg4[%c0_1, %c0_2] : memref<1x128xf32, #tpu.memory_space<vmem>>, vector<1x128xf32>
    %c0_i32 = arith.constant 0 : i32
    %3 = arith.addi %0, %c0_i32 : i32
    %c2_i32 = arith.constant 2 : i32
    %4 = arith.muli %c2_i32, %3 : i32
    %c0_i32_3 = arith.constant 0 : i32
    %5 = arith.addi %4, %c0_i32_3 : i32
    %c0_4 = arith.constant 0 : index
    %6 = arith.index_cast %5 : i32 to index
    %c0_5 = arith.constant 0 : index
    %c0_6 = arith.constant 0 : index
    %7 = vector.load %arg2[%c0_4, %6, %c0_5, %c0_6] : memref<1x9x10x128xf32, #tpu.memory_space<vmem>>, vector<1x1x4x128xf32>
    %8 = vector.shape_cast %7 : vector<1x1x4x128xf32> to vector<4x128xf32>
    %c0_7 = arith.constant 0 : index
    %9 = arith.index_cast %5 : i32 to index
    %c5 = arith.constant 5 : index
    %c0_8 = arith.constant 0 : index
    %10 = vector.load %arg2[%c0_7, %9, %c5, %c0_8] : memref<1x9x10x128xf32, #tpu.memory_space<vmem>>, vector<1x1x4x128xf32>
    %11 = vector.shape_cast %10 : vector<1x1x4x128xf32> to vector<4x128xf32>
    %c0_9 = arith.constant 0 : index
    %12 = arith.index_cast %5 : i32 to index
    %c1 = arith.constant 1 : index
    %c0_10 = arith.constant 0 : index
    %13 = vector.load %arg2[%c0_9, %12, %c1, %c0_10] : memref<1x9x10x128xf32, #tpu.memory_space<vmem>>, vector<1x1x4x128xf32>
    %14 = vector.shape_cast %13 : vector<1x1x4x128xf32> to vector<4x128xf32>
    %c2_i32_11 = arith.constant 2 : i32
    %15 = arith.muli %c2_i32_11, %3 : i32
    %c1_i32 = arith.constant 1 : i32
    %16 = arith.addi %15, %c1_i32 : i32
    %c0_12 = arith.constant 0 : index
    %17 = arith.index_cast %16 : i32 to index
    %c0_13 = arith.constant 0 : index
    %c0_14 = arith.constant 0 : index
    %18 = vector.load %arg2[%c0_12, %17, %c0_13, %c0_14] : memref<1x9x10x128xf32, #tpu.memory_space<vmem>>, vector<1x1x4x128xf32>
    %19 = vector.shape_cast %18 : vector<1x1x4x128xf32> to vector<4x128xf32>
    %c0_15 = arith.constant 0 : index
    %20 = arith.index_cast %16 : i32 to index
    %c5_16 = arith.constant 5 : index
    %c0_17 = arith.constant 0 : index
    %21 = vector.load %arg2[%c0_15, %20, %c5_16, %c0_17] : memref<1x9x10x128xf32, #tpu.memory_space<vmem>>, vector<1x1x4x128xf32>
    %22 = vector.shape_cast %21 : vector<1x1x4x128xf32> to vector<4x128xf32>
    %c0_18 = arith.constant 0 : index
    %23 = arith.index_cast %16 : i32 to index
    %c1_19 = arith.constant 1 : index
    %c0_20 = arith.constant 0 : index
    %24 = vector.load %arg2[%c0_18, %23, %c1_19, %c0_20] : memref<1x9x10x128xf32, #tpu.memory_space<vmem>>, vector<1x1x4x128xf32>
    %25 = vector.shape_cast %24 : vector<1x1x4x128xf32> to vector<4x128xf32>
    %c2_i32_21 = arith.constant 2 : i32
    %26 = arith.muli %c2_i32_21, %3 : i32
    %c2_i32_22 = arith.constant 2 : i32
    %27 = arith.addi %26, %c2_i32_22 : i32
    %c0_23 = arith.constant 0 : index
    %28 = arith.index_cast %27 : i32 to index
    %c0_24 = arith.constant 0 : index
    %c0_25 = arith.constant 0 : index
    %29 = vector.load %arg2[%c0_23, %28, %c0_24, %c0_25] : memref<1x9x10x128xf32, #tpu.memory_space<vmem>>, vector<1x1x4x128xf32>
    %30 = vector.shape_cast %29 : vector<1x1x4x128xf32> to vector<4x128xf32>
    %c0_26 = arith.constant 0 : index
    %31 = arith.index_cast %27 : i32 to index
    %c5_27 = arith.constant 5 : index
    %c0_28 = arith.constant 0 : index
    %32 = vector.load %arg2[%c0_26, %31, %c5_27, %c0_28] : memref<1x9x10x128xf32, #tpu.memory_space<vmem>>, vector<1x1x4x128xf32>
    %33 = vector.shape_cast %32 : vector<1x1x4x128xf32> to vector<4x128xf32>
    %c0_29 = arith.constant 0 : index
    %34 = arith.index_cast %27 : i32 to index
    %c1_30 = arith.constant 1 : index
    %c0_31 = arith.constant 0 : index
    %35 = vector.load %arg2[%c0_29, %34, %c1_30, %c0_31] : memref<1x9x10x128xf32, #tpu.memory_space<vmem>>, vector<1x1x4x128xf32>
    %36 = vector.shape_cast %35 : vector<1x1x4x128xf32> to vector<4x128xf32>
    %37 = tpu.concatenate %8, %11, %14, %19, %22, %25, %30, %33, %36 in 1 : vector<4x128xf32>, vector<4x128xf32>, vector<4x128xf32>, vector<4x128xf32>, vector<4x128xf32>, vector<4x128xf32>, vector<4x128xf32>, vector<4x128xf32>, vector<4x128xf32> -> vector<4x1152xf32>
    %cst = arith.constant dense<0.000000e+00> : vector<4x128xf32>
    %38 = tpu.matmul %37, %1, %cst {dimension_numbers = #tpu.dot_dimension_numbers<[1], [0], [0], [1], [0, 0, 1, 1], [], []>} : vector<4x1152xf32>, vector<1152x128xf32>, vector<4x128xf32> -> vector<4x128xf32>
    %39 = vector.broadcast %2 : vector<1x128xf32> to vector<4x128xf32>
    %40 = arith.addf %38, %39 : vector<4x128xf32>
    %cst_32 = arith.constant 0.000000e+00 : f32
    %41 = vector.broadcast %cst_32 : f32 to vector<4x128xf32>
    %42 = arith.maximumf %40, %41 : vector<4x128xf32>
    %c0_33 = arith.constant 0 : index
    %c0_34 = arith.constant 0 : index
    %c0_35 = arith.constant 0 : index
    %c0_36 = arith.constant 0 : index
    %43 = vector.load %arg5[%c0_33, %c0_34, %c0_35, %c0_36] : memref<1x1x16x128xf32, #tpu.memory_space<vmem>>, vector<1x1x4x128xf32>
    %44 = vector.shape_cast %43 : vector<1x1x4x128xf32> to vector<4x128xf32>
    %45 = vector.shape_cast %42 : vector<4x128xf32> to vector<1x1x4x128xf32>
    tpu.vector_store %arg5[%c0_33, %c0_34, %c0_35, %c0_36], %45 {strides = array<i32>} : memref<1x1x16x128xf32, #tpu.memory_space<vmem>>, vector<1x1x4x128xf32>,
    %c1_i32_37 = arith.constant 1 : i32
    %46 = arith.addi %0, %c1_i32_37 : i32
    %c2_i32_38 = arith.constant 2 : i32
    %47 = arith.muli %c2_i32_38, %46 : i32
    %c0_i32_39 = arith.constant 0 : i32
    %48 = arith.addi %47, %c0_i32_39 : i32
    %c0_40 = arith.constant 0 : index
    %49 = arith.index_cast %48 : i32 to index
    %c0_41 = arith.constant 0 : index
    %c0_42 = arith.constant 0 : index
    %50 = vector.load %arg2[%c0_40, %49, %c0_41, %c0_42] : memref<1x9x10x128xf32, #tpu.memory_space<vmem>>, vector<1x1x4x128xf32>
    %51 = vector.shape_cast %50 : vector<1x1x4x128xf32> to vector<4x128xf32>
    %c0_43 = arith.constant 0 : index
    %52 = arith.index_cast %48 : i32 to index
    %c5_44 = arith.constant 5 : index
    %c0_45 = arith.constant 0 : index
    %53 = vector.load %arg2[%c0_43, %52, %c5_44, %c0_45] : memref<1x9x10x128xf32, #tpu.memory_space<vmem>>, vector<1x1x4x128xf32>
    %54 = vector.shape_cast %53 : vector<1x1x4x128xf32> to vector<4x128xf32>
    %c0_46 = arith.constant 0 : index
    %55 = arith.index_cast %48 : i32 to index
    %c1_47 = arith.constant 1 : index
    %c0_48 = arith.constant 0 : index
    %56 = vector.load %arg2[%c0_46, %55, %c1_47, %c0_48] : memref<1x9x10x128xf32, #tpu.memory_space<vmem>>, vector<1x1x4x128xf32>
    %57 = vector.shape_cast %56 : vector<1x1x4x128xf32> to vector<4x128xf32>
    %c2_i32_49 = arith.constant 2 : i32
    %58 = arith.muli %c2_i32_49, %46 : i32
    %c1_i32_50 = arith.constant 1 : i32
    %59 = arith.addi %58, %c1_i32_50 : i32
    %c0_51 = arith.constant 0 : index
    %60 = arith.index_cast %59 : i32 to index
    %c0_52 = arith.constant 0 : index
    %c0_53 = arith.constant 0 : index
    %61 = vector.load %arg2[%c0_51, %60, %c0_52, %c0_53] : memref<1x9x10x128xf32, #tpu.memory_space<vmem>>, vector<1x1x4x128xf32>
    %62 = vector.shape_cast %61 : vector<1x1x4x128xf32> to vector<4x128xf32>
    %c0_54 = arith.constant 0 : index
    %63 = arith.index_cast %59 : i32 to index
    %c5_55 = arith.constant 5 : index
    %c0_56 = arith.constant 0 : index
    %64 = vector.load %arg2[%c0_54, %63, %c5_55, %c0_56] : memref<1x9x10x128xf32, #tpu.memory_space<vmem>>, vector<1x1x4x128xf32>
    %65 = vector.shape_cast %64 : vector<1x1x4x128xf32> to vector<4x128xf32>
    %c0_57 = arith.constant 0 : index
    %66 = arith.index_cast %59 : i32 to index
    %c1_58 = arith.constant 1 : index
    %c0_59 = arith.constant 0 : index
    %67 = vector.load %arg2[%c0_57, %66, %c1_58, %c0_59] : memref<1x9x10x128xf32, #tpu.memory_space<vmem>>, vector<1x1x4x128xf32>
    %68 = vector.shape_cast %67 : vector<1x1x4x128xf32> to vector<4x128xf32>
    %c2_i32_60 = arith.constant 2 : i32
    %69 = arith.muli %c2_i32_60, %46 : i32
    %c2_i32_61 = arith.constant 2 : i32
    %70 = arith.addi %69, %c2_i32_61 : i32
    %c0_62 = arith.constant 0 : index
    %71 = arith.index_cast %70 : i32 to index
    %c0_63 = arith.constant 0 : index
    %c0_64 = arith.constant 0 : index
    %72 = vector.load %arg2[%c0_62, %71, %c0_63, %c0_64] : memref<1x9x10x128xf32, #tpu.memory_space<vmem>>, vector<1x1x4x128xf32>
    %73 = vector.shape_cast %72 : vector<1x1x4x128xf32> to vector<4x128xf32>
    %c0_65 = arith.constant 0 : index
    %74 = arith.index_cast %70 : i32 to index
    %c5_66 = arith.constant 5 : index
    %c0_67 = arith.constant 0 : index
    %75 = vector.load %arg2[%c0_65, %74, %c5_66, %c0_67] : memref<1x9x10x128xf32, #tpu.memory_space<vmem>>, vector<1x1x4x128xf32>
    %76 = vector.shape_cast %75 : vector<1x1x4x128xf32> to vector<4x128xf32>
    %c0_68 = arith.constant 0 : index
    %77 = arith.index_cast %70 : i32 to index
    %c1_69 = arith.constant 1 : index
    %c0_70 = arith.constant 0 : index
    %78 = vector.load %arg2[%c0_68, %77, %c1_69, %c0_70] : memref<1x9x10x128xf32, #tpu.memory_space<vmem>>, vector<1x1x4x128xf32>
    %79 = vector.shape_cast %78 : vector<1x1x4x128xf32> to vector<4x128xf32>
    %80 = tpu.concatenate %51, %54, %57, %62, %65, %68, %73, %76, %79 in 1 : vector<4x128xf32>, vector<4x128xf32>, vector<4x128xf32>, vector<4x128xf32>, vector<4x128xf32>, vector<4x128xf32>, vector<4x128xf32>, vector<4x128xf32>, vector<4x128xf32> -> vector<4x1152xf32>
    %cst_71 = arith.constant dense<0.000000e+00> : vector<4x128xf32>
    %81 = tpu.matmul %80, %1, %cst_71 {dimension_numbers = #tpu.dot_dimension_numbers<[1], [0], [0], [1], [0, 0, 1, 1], [], []>} : vector<4x1152xf32>, vector<1152x128xf32>, vector<4x128xf32> -> vector<4x128xf32>
    %82 = vector.broadcast %2 : vector<1x128xf32> to vector<4x128xf32>
    %83 = arith.addf %81, %82 : vector<4x128xf32>
    %cst_72 = arith.constant 0.000000e+00 : f32
    %84 = vector.broadcast %cst_72 : f32 to vector<4x128xf32>
    %85 = arith.maximumf %83, %84 : vector<4x128xf32>
    %c0_73 = arith.constant 0 : index
    %c0_74 = arith.constant 0 : index
    %c4 = arith.constant 4 : index
    %c0_75 = arith.constant 0 : index
    %86 = vector.load %arg5[%c0_73, %c0_74, %c4, %c0_75] : memref<1x1x16x128xf32, #tpu.memory_space<vmem>>, vector<1x1x4x128xf32>
    %87 = vector.shape_cast %86 : vector<1x1x4x128xf32> to vector<4x128xf32>
    %88 = vector.shape_cast %85 : vector<4x128xf32> to vector<1x1x4x128xf32>
    tpu.vector_store %arg5[%c0_73, %c0_74, %c4, %c0_75], %88 {strides = array<i32>} : memref<1x1x16x128xf32, #tpu.memory_space<vmem>>, vector<1x1x4x128xf32>,
    %c2_i32_76 = arith.constant 2 : i32
    %89 = arith.addi %0, %c2_i32_76 : i32
    %c2_i32_77 = arith.constant 2 : i32
    %90 = arith.muli %c2_i32_77, %89 : i32
    %c0_i32_78 = arith.constant 0 : i32
    %91 = arith.addi %90, %c0_i32_78 : i32
    %c0_79 = arith.constant 0 : index
    %92 = arith.index_cast %91 : i32 to index
    %c0_80 = arith.constant 0 : index
    %c0_81 = arith.constant 0 : index
    %93 = vector.load %arg2[%c0_79, %92, %c0_80, %c0_81] : memref<1x9x10x128xf32, #tpu.memory_space<vmem>>, vector<1x1x4x128xf32>
    %94 = vector.shape_cast %93 : vector<1x1x4x128xf32> to vector<4x128xf32>
    %c0_82 = arith.constant 0 : index
    %95 = arith.index_cast %91 : i32 to index
    %c5_83 = arith.constant 5 : index
    %c0_84 = arith.constant 0 : index
    %96 = vector.load %arg2[%c0_82, %95, %c5_83, %c0_84] : memref<1x9x10x128xf32, #tpu.memory_space<vmem>>, vector<1x1x4x128xf32>
    %97 = vector.shape_cast %96 : vector<1x1x4x128xf32> to vector<4x128xf32>
    %c0_85 = arith.constant 0 : index
    %98 = arith.index_cast %91 : i32 to index
    %c1_86 = arith.constant 1 : index
    %c0_87 = arith.constant 0 : index
    %99 = vector.load %arg2[%c0_85, %98, %c1_86, %c0_87] : memref<1x9x10x128xf32, #tpu.memory_space<vmem>>, vector<1x1x4x128xf32>
    %100 = vector.shape_cast %99 : vector<1x1x4x128xf32> to vector<4x128xf32>
    %c2_i32_88 = arith.constant 2 : i32
    %101 = arith.muli %c2_i32_88, %89 : i32
    %c1_i32_89 = arith.constant 1 : i32
    %102 = arith.addi %101, %c1_i32_89 : i32
    %c0_90 = arith.constant 0 : index
    %103 = arith.index_cast %102 : i32 to index
    %c0_91 = arith.constant 0 : index
    %c0_92 = arith.constant 0 : index
    %104 = vector.load %arg2[%c0_90, %103, %c0_91, %c0_92] : memref<1x9x10x128xf32, #tpu.memory_space<vmem>>, vector<1x1x4x128xf32>
    %105 = vector.shape_cast %104 : vector<1x1x4x128xf32> to vector<4x128xf32>
    %c0_93 = arith.constant 0 : index
    %106 = arith.index_cast %102 : i32 to index
    %c5_94 = arith.constant 5 : index
    %c0_95 = arith.constant 0 : index
    %107 = vector.load %arg2[%c0_93, %106, %c5_94, %c0_95] : memref<1x9x10x128xf32, #tpu.memory_space<vmem>>, vector<1x1x4x128xf32>
    %108 = vector.shape_cast %107 : vector<1x1x4x128xf32> to vector<4x128xf32>
    %c0_96 = arith.constant 0 : index
    %109 = arith.index_cast %102 : i32 to index
    %c1_97 = arith.constant 1 : index
    %c0_98 = arith.constant 0 : index
    %110 = vector.load %arg2[%c0_96, %109, %c1_97, %c0_98] : memref<1x9x10x128xf32, #tpu.memory_space<vmem>>, vector<1x1x4x128xf32>
    %111 = vector.shape_cast %110 : vector<1x1x4x128xf32> to vector<4x128xf32>
    %c2_i32_99 = arith.constant 2 : i32
    %112 = arith.muli %c2_i32_99, %89 : i32
    %c2_i32_100 = arith.constant 2 : i32
    %113 = arith.addi %112, %c2_i32_100 : i32
    %c0_101 = arith.constant 0 : index
    %114 = arith.index_cast %113 : i32 to index
    %c0_102 = arith.constant 0 : index
    %c0_103 = arith.constant 0 : index
    %115 = vector.load %arg2[%c0_101, %114, %c0_102, %c0_103] : memref<1x9x10x128xf32, #tpu.memory_space<vmem>>, vector<1x1x4x128xf32>
    %116 = vector.shape_cast %115 : vector<1x1x4x128xf32> to vector<4x128xf32>
    %c0_104 = arith.constant 0 : index
    %117 = arith.index_cast %113 : i32 to index
    %c5_105 = arith.constant 5 : index
    %c0_106 = arith.constant 0 : index
    %118 = vector.load %arg2[%c0_104, %117, %c5_105, %c0_106] : memref<1x9x10x128xf32, #tpu.memory_space<vmem>>, vector<1x1x4x128xf32>
    %119 = vector.shape_cast %118 : vector<1x1x4x128xf32> to vector<4x128xf32>
    %c0_107 = arith.constant 0 : index
    %120 = arith.index_cast %113 : i32 to index
    %c1_108 = arith.constant 1 : index
    %c0_109 = arith.constant 0 : index
    %121 = vector.load %arg2[%c0_107, %120, %c1_108, %c0_109] : memref<1x9x10x128xf32, #tpu.memory_space<vmem>>, vector<1x1x4x128xf32>
    %122 = vector.shape_cast %121 : vector<1x1x4x128xf32> to vector<4x128xf32>
    %123 = tpu.concatenate %94, %97, %100, %105, %108, %111, %116, %119, %122 in 1 : vector<4x128xf32>, vector<4x128xf32>, vector<4x128xf32>, vector<4x128xf32>, vector<4x128xf32>, vector<4x128xf32>, vector<4x128xf32>, vector<4x128xf32>, vector<4x128xf32> -> vector<4x1152xf32>
    %cst_110 = arith.constant dense<0.000000e+00> : vector<4x128xf32>
    %124 = tpu.matmul %123, %1, %cst_110 {dimension_numbers = #tpu.dot_dimension_numbers<[1], [0], [0], [1], [0, 0, 1, 1], [], []>} : vector<4x1152xf32>, vector<1152x128xf32>, vector<4x128xf32> -> vector<4x128xf32>
    %125 = vector.broadcast %2 : vector<1x128xf32> to vector<4x128xf32>
    %126 = arith.addf %124, %125 : vector<4x128xf32>
    %cst_111 = arith.constant 0.000000e+00 : f32
    %127 = vector.broadcast %cst_111 : f32 to vector<4x128xf32>
    %128 = arith.maximumf %126, %127 : vector<4x128xf32>
    %c0_112 = arith.constant 0 : index
    %c0_113 = arith.constant 0 : index
    %c8 = arith.constant 8 : index
    %c0_114 = arith.constant 0 : index
    %129 = vector.load %arg5[%c0_112, %c0_113, %c8, %c0_114] : memref<1x1x16x128xf32, #tpu.memory_space<vmem>>, vector<1x1x4x128xf32>
    %130 = vector.shape_cast %129 : vector<1x1x4x128xf32> to vector<4x128xf32>
    %131 = vector.shape_cast %128 : vector<4x128xf32> to vector<1x1x4x128xf32>
    tpu.vector_store %arg5[%c0_112, %c0_113, %c8, %c0_114], %131 {strides = array<i32>} : memref<1x1x16x128xf32, #tpu.memory_space<vmem>>, vector<1x1x4x128xf32>,
    %c3_i32 = arith.constant 3 : i32
    %132 = arith.addi %0, %c3_i32 : i32
    %c2_i32_115 = arith.constant 2 : i32
    %133 = arith.muli %c2_i32_115, %132 : i32
    %c0_i32_116 = arith.constant 0 : i32
    %134 = arith.addi %133, %c0_i32_116 : i32
    %c0_117 = arith.constant 0 : index
    %135 = arith.index_cast %134 : i32 to index
    %c0_118 = arith.constant 0 : index
    %c0_119 = arith.constant 0 : index
    %136 = vector.load %arg2[%c0_117, %135, %c0_118, %c0_119] : memref<1x9x10x128xf32, #tpu.memory_space<vmem>>, vector<1x1x4x128xf32>
    %137 = vector.shape_cast %136 : vector<1x1x4x128xf32> to vector<4x128xf32>
    %c0_120 = arith.constant 0 : index
    %138 = arith.index_cast %134 : i32 to index
    %c5_121 = arith.constant 5 : index
    %c0_122 = arith.constant 0 : index
    %139 = vector.load %arg2[%c0_120, %138, %c5_121, %c0_122] : memref<1x9x10x128xf32, #tpu.memory_space<vmem>>, vector<1x1x4x128xf32>
    %140 = vector.shape_cast %139 : vector<1x1x4x128xf32> to vector<4x128xf32>
    %c0_123 = arith.constant 0 : index
    %141 = arith.index_cast %134 : i32 to index
    %c1_124 = arith.constant 1 : index
    %c0_125 = arith.constant 0 : index
    %142 = vector.load %arg2[%c0_123, %141, %c1_124, %c0_125] : memref<1x9x10x128xf32, #tpu.memory_space<vmem>>, vector<1x1x4x128xf32>
    %143 = vector.shape_cast %142 : vector<1x1x4x128xf32> to vector<4x128xf32>
    %c2_i32_126 = arith.constant 2 : i32
    %144 = arith.muli %c2_i32_126, %132 : i32
    %c1_i32_127 = arith.constant 1 : i32
    %145 = arith.addi %144, %c1_i32_127 : i32
    %c0_128 = arith.constant 0 : index
    %146 = arith.index_cast %145 : i32 to index
    %c0_129 = arith.constant 0 : index
    %c0_130 = arith.constant 0 : index
    %147 = vector.load %arg2[%c0_128, %146, %c0_129, %c0_130] : memref<1x9x10x128xf32, #tpu.memory_space<vmem>>, vector<1x1x4x128xf32>
    %148 = vector.shape_cast %147 : vector<1x1x4x128xf32> to vector<4x128xf32>
    %c0_131 = arith.constant 0 : index
    %149 = arith.index_cast %145 : i32 to index
    %c5_132 = arith.constant 5 : index
    %c0_133 = arith.constant 0 : index
    %150 = vector.load %arg2[%c0_131, %149, %c5_132, %c0_133] : memref<1x9x10x128xf32, #tpu.memory_space<vmem>>, vector<1x1x4x128xf32>
    %151 = vector.shape_cast %150 : vector<1x1x4x128xf32> to vector<4x128xf32>
    %c0_134 = arith.constant 0 : index
    %152 = arith.index_cast %145 : i32 to index
    %c1_135 = arith.constant 1 : index
    %c0_136 = arith.constant 0 : index
    %153 = vector.load %arg2[%c0_134, %152, %c1_135, %c0_136] : memref<1x9x10x128xf32, #tpu.memory_space<vmem>>, vector<1x1x4x128xf32>
    %154 = vector.shape_cast %153 : vector<1x1x4x128xf32> to vector<4x128xf32>
    %c2_i32_137 = arith.constant 2 : i32
    %155 = arith.muli %c2_i32_137, %132 : i32
    %c2_i32_138 = arith.constant 2 : i32
    %156 = arith.addi %155, %c2_i32_138 : i32
    %c0_139 = arith.constant 0 : index
    %157 = arith.index_cast %156 : i32 to index
    %c0_140 = arith.constant 0 : index
    %c0_141 = arith.constant 0 : index
    %158 = vector.load %arg2[%c0_139, %157, %c0_140, %c0_141] : memref<1x9x10x128xf32, #tpu.memory_space<vmem>>, vector<1x1x4x128xf32>
    %159 = vector.shape_cast %158 : vector<1x1x4x128xf32> to vector<4x128xf32>
    %c0_142 = arith.constant 0 : index
    %160 = arith.index_cast %156 : i32 to index
    %c5_143 = arith.constant 5 : index
    %c0_144 = arith.constant 0 : index
    %161 = vector.load %arg2[%c0_142, %160, %c5_143, %c0_144] : memref<1x9x10x128xf32, #tpu.memory_space<vmem>>, vector<1x1x4x128xf32>
    %162 = vector.shape_cast %161 : vector<1x1x4x128xf32> to vector<4x128xf32>
    %c0_145 = arith.constant 0 : index
    %163 = arith.index_cast %156 : i32 to index
    %c1_146 = arith.constant 1 : index
    %c0_147 = arith.constant 0 : index
    %164 = vector.load %arg2[%c0_145, %163, %c1_146, %c0_147] : memref<1x9x10x128xf32, #tpu.memory_space<vmem>>, vector<1x1x4x128xf32>
    %165 = vector.shape_cast %164 : vector<1x1x4x128xf32> to vector<4x128xf32>
    %166 = tpu.concatenate %137, %140, %143, %148, %151, %154, %159, %162, %165 in 1 : vector<4x128xf32>, vector<4x128xf32>, vector<4x128xf32>, vector<4x128xf32>, vector<4x128xf32>, vector<4x128xf32>, vector<4x128xf32>, vector<4x128xf32>, vector<4x128xf32> -> vector<4x1152xf32>
    %cst_148 = arith.constant dense<0.000000e+00> : vector<4x128xf32>
    %167 = tpu.matmul %166, %1, %cst_148 {dimension_numbers = #tpu.dot_dimension_numbers<[1], [0], [0], [1], [0, 0, 1, 1], [], []>} : vector<4x1152xf32>, vector<1152x128xf32>, vector<4x128xf32> -> vector<4x128xf32>
    %168 = vector.broadcast %2 : vector<1x128xf32> to vector<4x128xf32>
    %169 = arith.addf %167, %168 : vector<4x128xf32>
    %cst_149 = arith.constant 0.000000e+00 : f32
    %170 = vector.broadcast %cst_149 : f32 to vector<4x128xf32>
    %171 = arith.maximumf %169, %170 : vector<4x128xf32>
    %c0_150 = arith.constant 0 : index
    %c0_151 = arith.constant 0 : index
    %c12 = arith.constant 12 : index
    %c0_152 = arith.constant 0 : index
    %172 = vector.load %arg5[%c0_150, %c0_151, %c12, %c0_152] : memref<1x1x16x128xf32, #tpu.memory_space<vmem>>, vector<1x1x4x128xf32>
    %173 = vector.shape_cast %172 : vector<1x1x4x128xf32> to vector<4x128xf32>
    %174 = vector.shape_cast %171 : vector<4x128xf32> to vector<1x1x4x128xf32>
    tpu.vector_store %arg5[%c0_150, %c0_151, %c12, %c0_152], %174 {strides = array<i32>} : memref<1x1x16x128xf32, #tpu.memory_space<vmem>>, vector<1x1x4x128xf32>,
    return
  }
  func.func @transform_0(%arg0: i32, %arg1: i32) -> (i32, i32, i32, i32) {
    %c0_i32 = arith.constant 0 : i32
    %c0_i32_0 = arith.constant 0 : i32
    %c0_i32_1 = arith.constant 0 : i32
    %c0_i32_2 = arith.constant 0 : i32
    return %arg0, %c0_i32, %c0_i32_0, %c0_i32_1 : i32, i32, i32, i32
  }
  func.func @transform_1(%arg0: i32, %arg1: i32) -> (i32, i32) {
    %c0_i32 = arith.constant 0 : i32
    %c0_i32_0 = arith.constant 0 : i32
    %c0_i32_1 = arith.constant 0 : i32
    return %c0_i32, %c0_i32_0 : i32, i32
  }
  func.func @transform_2(%arg0: i32, %arg1: i32) -> (i32, i32) {
    %c0_i32 = arith.constant 0 : i32
    %c0_i32_0 = arith.constant 0 : i32
    %c0_i32_1 = arith.constant 0 : i32
    return %c0_i32, %c0_i32_0 : i32, i32
  }
  func.func @transform_3(%arg0: i32, %arg1: i32) -> (i32, i32, i32, i32) {
    %c0_i32 = arith.constant 0 : i32
    %c0_i32_0 = arith.constant 0 : i32
    %c0_i32_1 = arith.constant 0 : i32
    return %arg0, %arg1, %c0_i32, %c0_i32_0 : i32, i32, i32, i32
  }
}

module attributes {stable_mosaic.version = 11 : i64} {
  func.func @_conv3_shortcut_kernel(%arg0: i32, %arg1: i32, %arg2: memref<32x128xf32, #tpu.memory_space<vmem>>, %arg3: memref<32x128xf32, #tpu.memory_space<vmem>>, %arg4: memref<128x128xf32, #tpu.memory_space<vmem>>, %arg5: memref<128x128xf32, #tpu.memory_space<vmem>>, %arg6: memref<1x128xf32, #tpu.memory_space<vmem>>, %arg7: memref<32x128xf32, #tpu.memory_space<vmem>>) attributes {dimension_semantics = [#tpu.dimension_semantics<parallel>, #tpu.dimension_semantics<parallel>], iteration_bounds = array<i64: 1, 1>, scalar_prefetch = 0 : i64, scratch_operands = 0 : i64, tpu.core_type = #tpu.core_type<tc>, window_params = [{transform_indices = @transform_0, window_bounds = array<i64: 32, 128>}, {transform_indices = @transform_1, window_bounds = array<i64: 32, 128>}, {transform_indices = @transform_2, window_bounds = array<i64: 128, 128>}, {transform_indices = @transform_3, window_bounds = array<i64: 128, 128>}, {transform_indices = @transform_4, window_bounds = array<i64: 1, 128>}, {transform_indices = @transform_5, window_bounds = array<i64: 32, 128>}]} {
    %c0 = arith.constant 0 : index
    %c0_0 = arith.constant 0 : index
    %0 = vector.load %arg2[%c0, %c0_0] : memref<32x128xf32, #tpu.memory_space<vmem>>, vector<32x128xf32>
    %c0_1 = arith.constant 0 : index
    %c0_2 = arith.constant 0 : index
    %1 = vector.load %arg4[%c0_1, %c0_2] : memref<128x128xf32, #tpu.memory_space<vmem>>, vector<128x128xf32>
    %cst = arith.constant dense<0.000000e+00> : vector<32x128xf32>
    %2 = tpu.matmul %0, %1, %cst {dimension_numbers = #tpu.dot_dimension_numbers<[1], [0], [0], [1], [0, 0, 1, 1], [], []>} : vector<32x128xf32>, vector<128x128xf32>, vector<32x128xf32> -> vector<32x128xf32>
    %c0_3 = arith.constant 0 : index
    %c0_4 = arith.constant 0 : index
    %3 = vector.load %arg3[%c0_3, %c0_4] : memref<32x128xf32, #tpu.memory_space<vmem>>, vector<32x128xf32>
    %c0_5 = arith.constant 0 : index
    %c0_6 = arith.constant 0 : index
    %4 = vector.load %arg5[%c0_5, %c0_6] : memref<128x128xf32, #tpu.memory_space<vmem>>, vector<128x128xf32>
    %cst_7 = arith.constant dense<0.000000e+00> : vector<32x128xf32>
    %5 = tpu.matmul %3, %4, %cst_7 {dimension_numbers = #tpu.dot_dimension_numbers<[1], [0], [0], [1], [0, 0, 1, 1], [], []>} : vector<32x128xf32>, vector<128x128xf32>, vector<32x128xf32> -> vector<32x128xf32>
    %6 = arith.addf %2, %5 : vector<32x128xf32>
    %c0_8 = arith.constant 0 : index
    %c0_9 = arith.constant 0 : index
    %7 = vector.load %arg6[%c0_8, %c0_9] : memref<1x128xf32, #tpu.memory_space<vmem>>, vector<1x128xf32>
    %8 = vector.broadcast %7 : vector<1x128xf32> to vector<32x128xf32>
    %9 = arith.addf %6, %8 : vector<32x128xf32>
    %cst_10 = arith.constant 0.000000e+00 : f32
    %10 = vector.broadcast %cst_10 : f32 to vector<32x128xf32>
    %11 = arith.maximumf %9, %10 : vector<32x128xf32>
    %c0_11 = arith.constant 0 : index
    %c0_12 = arith.constant 0 : index
    %12 = vector.load %arg7[%c0_11, %c0_12] : memref<32x128xf32, #tpu.memory_space<vmem>>, vector<32x128xf32>
    tpu.vector_store %arg7[%c0_11, %c0_12], %11 {strides = array<i32>} : memref<32x128xf32, #tpu.memory_space<vmem>>, vector<32x128xf32>,
    return
  }
  func.func @transform_0(%arg0: i32, %arg1: i32) -> (i32, i32) {
    %c0_i32 = arith.constant 0 : i32
    %c0_i32_0 = arith.constant 0 : i32
    return %arg1, %c0_i32 : i32, i32
  }
  func.func @transform_1(%arg0: i32, %arg1: i32) -> (i32, i32) {
    %c0_i32 = arith.constant 0 : i32
    %c0_i32_0 = arith.constant 0 : i32
    return %arg1, %c0_i32 : i32, i32
  }
  func.func @transform_2(%arg0: i32, %arg1: i32) -> (i32, i32) {
    %c0_i32 = arith.constant 0 : i32
    %c0_i32_0 = arith.constant 0 : i32
    return %c0_i32, %arg0 : i32, i32
  }
  func.func @transform_3(%arg0: i32, %arg1: i32) -> (i32, i32) {
    %c0_i32 = arith.constant 0 : i32
    %c0_i32_0 = arith.constant 0 : i32
    return %c0_i32, %arg0 : i32, i32
  }
  func.func @transform_4(%arg0: i32, %arg1: i32) -> (i32, i32) {
    %c0_i32 = arith.constant 0 : i32
    %c0_i32_0 = arith.constant 0 : i32
    return %c0_i32, %arg0 : i32, i32
  }
  func.func @transform_5(%arg0: i32, %arg1: i32) -> (i32, i32) {
    %c0_i32 = arith.constant 0 : i32
    return %arg1, %arg0 : i32, i32
  }
}

</mosaic_0001>

<llo_original>
// kernel: bottleneck_forward.3
$region0: #{bottleneck_forward.3}
  #allocation0 [shape = 'u32[]', space=smem, size = 0x4, offset = 0x4, fixed_abs, tag = 'smem constant byte address 0x4 - core index']
  #allocation1 [shape = 'u32[144,128]{1,0:T(1,128)}', space=vmem, size = 0x12000, scoped, tag = 'internal scratch']
  #allocation2 [shape = 'f32[128,128]{1,0:T(8,128)}', space=vmem, size = 0x10000, scoped, tag = 'scratch operand']
  %s0 = inlined_call_operand.vmem [shape: f32[128,128], index: 0, kind: input, shape index: {}]
  %s1 = inlined_call_operand.vmem [shape: f32[128,128], index: 1, kind: input, shape index: {}]
  %s2 = inlined_call_operand.vmem [shape: f32[1,128], index: 2, kind: input, shape index: {}]
  %s3 = inlined_call_operand.vmem [shape: f32[128,128], index: 3, kind: output, shape index: {}]
  %s4 = sld [smem:[#allocation0]]
  $region30: #{bottleneck_forward.3} parent=0
    _
  %s6 = ssub.s32 1, %s4
  %s7 = scalar_select 0, %s6, %s4
  // Predicated region
  $region2: #{bottleneck_forward.3} parent=0 // pred_check
    _
  $region3: #{bottleneck_forward.3} parent=0 // pred_check_branch
    %9 = sbr.rel (0) target = $region5
  $region4: #{bottleneck_forward.3} parent=0 // pred_region
    _
  $region5: #{bottleneck_forward.3} parent=0 // pred_fallthru
    _
  // Predicated region
  $region6: #{bottleneck_forward.3} parent=0 // pred_check
    _
  $region7: #{bottleneck_forward.3} parent=0 // pred_check_branch
    %11 = sbr.rel (0) target = $region9
  $region8: #{bottleneck_forward.3} parent=0 // pred_region
    _
  $region9: #{bottleneck_forward.3} parent=0 // pred_fallthru
    _
  // Predicated region
  $region10: #{bottleneck_forward.3} parent=0 // pred_check
    _
  $region11: #{bottleneck_forward.3} parent=0 // pred_check_branch
    %13 = sbr.rel (0) target = $region13
  $region12: #{bottleneck_forward.3} parent=0 // pred_region
    _
  $region13: #{bottleneck_forward.3} parent=0 // pred_fallthru
    _
  %p14 = scmp.eq.s32.totalorder 0, 0
  // Predicated region
  $region14: #{bottleneck_forward.3} parent=0 // pred_check
    %p15 = pneg %p14
  $region15: #{bottleneck_forward.3} parent=0 // pred_check_branch
    %17 = sbr.rel (%p15) target = $region17
  $region16: #{bottleneck_forward.3} parent=0 // pred_region
    %18 = vst [vmem:[#allocation2] sm:$0xff] 0.0
    %19 = vst [vmem:[#allocation2 + $0x8] sm:$0xff] 0.0
    %20 = vst [vmem:[#allocation2 + $0x10] sm:$0xff] 0.0
    %21 = vst [vmem:[#allocation2 + $0x18] sm:$0xff] 0.0
    %22 = vst [vmem:[#allocation2 + $0x20] sm:$0xff] 0.0
    %23 = vst [vmem:[#allocation2 + $0x28] sm:$0xff] 0.0
    %24 = vst [vmem:[#allocation2 + $0x30] sm:$0xff] 0.0
    %25 = vst [vmem:[#allocation2 + $0x38] sm:$0xff] 0.0
    %26 = vst [vmem:[#allocation2 + $0x40] sm:$0xff] 0.0
    %27 = vst [vmem:[#allocation2 + $0x48] sm:$0xff] 0.0
    %28 = vst [vmem:[#allocation2 + $0x50] sm:$0xff] 0.0
    %29 = vst [vmem:[#allocation2 + $0x58] sm:$0xff] 0.0
    %30 = vst [vmem:[#allocation2 + $0x60] sm:$0xff] 0.0
    %31 = vst [vmem:[#allocation2 + $0x68] sm:$0xff] 0.0
    %32 = vst [vmem:[#allocation2 + $0x70] sm:$0xff] 0.0
    %33 = vst [vmem:[#allocation2 + $0x78] sm:$0xff] 0.0
  $region17: #{bottleneck_forward.3} parent=0 // pred_fallthru
    _
  %v34 = vld [vmem:[#allocation2] sm:$0xff]
  %v35 = vld [vmem:[#allocation2 + $0x8] sm:$0xff]
  %v36 = vld [vmem:[#allocation2 + $0x10] sm:$0xff]
  %v37 = vld [vmem:[#allocation2 + $0x18] sm:$0xff]
  %v38 = vld [vmem:[#allocation2 + $0x20] sm:$0xff]
  %v39 = vld [vmem:[#allocation2 + $0x28] sm:$0xff]
  %v40 = vld [vmem:[#allocation2 + $0x30] sm:$0xff]
  %v41 = vld [vmem:[#allocation2 + $0x38] sm:$0xff]
  %v42 = vld [vmem:[#allocation2 + $0x40] sm:$0xff]
  %v43 = vld [vmem:[#allocation2 + $0x48] sm:$0xff]
  %v44 = vld [vmem:[#allocation2 + $0x50] sm:$0xff]
  %v45 = vld [vmem:[#allocation2 + $0x58] sm:$0xff]
  %v46 = vld [vmem:[#allocation2 + $0x60] sm:$0xff]
  %v47 = vld [vmem:[#allocation2 + $0x68] sm:$0xff]
  %v48 = vld [vmem:[#allocation2 + $0x70] sm:$0xff]
  %v49 = vld [vmem:[#allocation2 + $0x78] sm:$0xff]
  %v50 = vld [vmem:[%s0] sm:$0xff]
  %v51 = vld [vmem:[%s0 + $0x8] sm:$0xff]
  %v52 = vld [vmem:[%s0 + $0x10] sm:$0xff]
  %v53 = vld [vmem:[%s0 + $0x18] sm:$0xff]
  %v54 = vld [vmem:[%s0 + $0x20] sm:$0xff]
  %v55 = vld [vmem:[%s0 + $0x28] sm:$0xff]
  %v56 = vld [vmem:[%s0 + $0x30] sm:$0xff]
  %v57 = vld [vmem:[%s0 + $0x38] sm:$0xff]
  %v58 = vld [vmem:[%s0 + $0x40] sm:$0xff]
  %v59 = vld [vmem:[%s0 + $0x48] sm:$0xff]
  %v60 = vld [vmem:[%s0 + $0x50] sm:$0xff]
  %v61 = vld [vmem:[%s0 + $0x58] sm:$0xff]
  %v62 = vld [vmem:[%s0 + $0x60] sm:$0xff]
  %v63 = vld [vmem:[%s0 + $0x68] sm:$0xff]
  %v64 = vld [vmem:[%s0 + $0x70] sm:$0xff]
  %v65 = vld [vmem:[%s0 + $0x78] sm:$0xff]
  %v66 = vld [vmem:[%s1] sm:$0xff]
  %v67 = vld [vmem:[%s1 + $0x8] sm:$0xff]
  %v68 = vld [vmem:[%s1 + $0x10] sm:$0xff]
  %v69 = vld [vmem:[%s1 + $0x18] sm:$0xff]
  %v70 = vld [vmem:[%s1 + $0x20] sm:$0xff]
  %v71 = vld [vmem:[%s1 + $0x28] sm:$0xff]
  %v72 = vld [vmem:[%s1 + $0x30] sm:$0xff]
  %v73 = vld [vmem:[%s1 + $0x38] sm:$0xff]
  %v74 = vld [vmem:[%s1 + $0x40] sm:$0xff]
  %v75 = vld [vmem:[%s1 + $0x48] sm:$0xff]
  %v76 = vld [vmem:[%s1 + $0x50] sm:$0xff]
  %v77 = vld [vmem:[%s1 + $0x58] sm:$0xff]
  %v78 = vld [vmem:[%s1 + $0x60] sm:$0xff]
  %v79 = vld [vmem:[%s1 + $0x68] sm:$0xff]
  %v80 = vld [vmem:[%s1 + $0x70] sm:$0xff]
  %v81 = vld [vmem:[%s1 + $0x78] sm:$0xff]
  %82 = vmatprep.subr.mxu0 0.0
  %83 = vmatpush1.msra.mxu0 %v66
  %84 = vmatprep.subr.mxu0 0.0
  %85 = vmatpush1.msra.mxu0 %v67
  %86 = vmatprep.subr.mxu0 0.0
  %87 = vmatpush1.msra.mxu0 %v68
  %88 = vmatprep.subr.mxu0 0.0
  %89 = vmatpush1.msra.mxu0 %v69
  %90 = vmatprep.subr.mxu0 0.0
  %91 = vmatpush1.msra.mxu0 %v70
  %92 = vmatprep.subr.mxu0 0.0
  %93 = vmatpush1.msra.mxu0 %v71
  %94 = vmatprep.subr.mxu0 0.0
  %95 = vmatpush1.msra.mxu0 %v72
  %96 = vmatprep.subr.mxu0 0.0
  %97 = vmatpush1.msra.mxu0 %v73
  %98 = vmatprep.subr.mxu0 0.0
  %99 = vmatpush1.msra.mxu0 %v74
  %100 = vmatprep.subr.mxu0 0.0
  %101 = vmatpush1.msra.mxu0 %v75
  %102 = vmatprep.subr.mxu0 0.0
  %103 = vmatpush1.msra.mxu0 %v76
  %104 = vmatprep.subr.mxu0 0.0
  %105 = vmatpush1.msra.mxu0 %v77
  %106 = vmatprep.subr.mxu0 0.0
  %107 = vmatpush1.msra.mxu0 %v78
  %108 = vmatprep.subr.mxu0 0.0
  %109 = vmatpush1.msra.mxu0 %v79
  %110 = vmatprep.subr.mxu0 0.0
  %111 = vmatpush1.msra.mxu0 %v80
  %112 = vmatprep.subr.mxu0 0.0
  %113 = vmatpush1.msra.mxu0 %v81
  %114 = vmatprep.subr.mxu0 0.0
  %115 = vmatpush1.msra.mxu0 0.0
  %116 = vmatprep.subr.mxu0 0.0
  %117 = vmatpush1.msra.mxu0 0.0
  %118 = vmatprep.subr.mxu0 0.0
  %119 = vmatpush1.msra.mxu0 0.0
  %120 = vmatprep.subr.mxu0 0.0
  %121 = vmatpush1.msra.mxu0 0.0
  %122 = vmatprep.subr.mxu0 0.0
  %123 = vmatpush1.msra.mxu0 0.0
  %124 = vmatprep.subr.mxu0 0.0
  %125 = vmatpush1.msra.mxu0 0.0
  %126 = vmatprep.subr.mxu0 0.0
  %127 = vmatpush1.msra.mxu0 0.0
  %128 = vmatprep.subr.mxu0 0.0
  %129 = vmatpush1.msra.mxu0 0.0
  %130 = vmatprep.subr.mxu0 0.0
  %131 = vmatpush1.msra.mxu0 0.0
  %132 = vmatprep.subr.mxu0 0.0
  %133 = vmatpush1.msra.mxu0 0.0
  %134 = vmatprep.subr.mxu0 0.0
  %135 = vmatpush1.msra.mxu0 0.0
  %136 = vmatprep.subr.mxu0 0.0
  %137 = vmatpush1.msra.mxu0 0.0
  %138 = vmatprep.subr.mxu0 0.0
  %139 = vmatpush1.msra.mxu0 0.0
  %140 = vmatprep.subr.mxu0 0.0
  %141 = vmatpush1.msra.mxu0 0.0
  %142 = vmatprep.subr.mxu0 0.0
  %143 = vmatpush1.msra.mxu0 0.0
  %144 = vmatprep.subr.mxu0 0.0
  %145 = vmatpush1.msra.mxu0 0.0
  %146 = vmatprep.mubr.f32.mxu0 0.0
  %147 = vmatmul.mubr.f32.gmra.mrb[0].mxu0 %v50
  %v148 = vpop.f32.mrb[0].mxu0
  %v149 = vadd.f32 0.0, %v148
  %v150 = vpop.f32.mrb[0].mxu0
  %151 = vmatprep.mubr.f32.mxu0 0.0
  %152 = vmatmul.mubr.f32.gmra.mrb[0].mxu0 %v51
  %v153 = vpop.f32.mrb[0].mxu0
  %v154 = vadd.f32 0.0, %v153
  %v155 = vpop.f32.mrb[0].mxu0
  %156 = vmatprep.mubr.f32.mxu0 0.0
  %157 = vmatmul.mubr.f32.gmra.mrb[0].mxu0 %v52
  %v158 = vpop.f32.mrb[0].mxu0
  %v159 = vadd.f32 0.0, %v158
  %v160 = vpop.f32.mrb[0].mxu0
  %161 = vmatprep.mubr.f32.mxu0 0.0
  %162 = vmatmul.mubr.f32.gmra.mrb[0].mxu0 %v53
  %v163 = vpop.f32.mrb[0].mxu0
  %v164 = vadd.f32 0.0, %v163
  %v165 = vpop.f32.mrb[0].mxu0
  %166 = vmatprep.mubr.f32.mxu0 0.0
  %167 = vmatmul.mubr.f32.gmra.mrb[0].mxu0 %v54
  %v168 = vpop.f32.mrb[0].mxu0
  %v169 = vadd.f32 0.0, %v168
  %v170 = vpop.f32.mrb[0].mxu0
  %171 = vmatprep.mubr.f32.mxu0 0.0
  %172 = vmatmul.mubr.f32.gmra.mrb[0].mxu0 %v55
  %v173 = vpop.f32.mrb[0].mxu0
  %v174 = vadd.f32 0.0, %v173
  %v175 = vpop.f32.mrb[0].mxu0
  %176 = vmatprep.mubr.f32.mxu0 0.0
  %177 = vmatmul.mubr.f32.gmra.mrb[0].mxu0 %v56
  %v178 = vpop.f32.mrb[0].mxu0
  %v179 = vadd.f32 0.0, %v178
  %v180 = vpop.f32.mrb[0].mxu0
  %181 = vmatprep.mubr.f32.mxu0 0.0
  %182 = vmatmul.mubr.f32.gmra.mrb[0].mxu0 %v57
  %v183 = vpop.f32.mrb[0].mxu0
  %v184 = vadd.f32 0.0, %v183
  %v185 = vpop.f32.mrb[0].mxu0
  %186 = vmatprep.mubr.f32.mxu0 0.0
  %187 = vmatmul.mubr.f32.gmra.mrb[0].mxu0 %v58
  %v188 = vpop.f32.mrb[0].mxu0
  %v189 = vadd.f32 0.0, %v188
  %v190 = vpop.f32.mrb[0].mxu0
  %191 = vmatprep.mubr.f32.mxu0 0.0
  %192 = vmatmul.mubr.f32.gmra.mrb[0].mxu0 %v59
  %v193 = vpop.f32.mrb[0].mxu0
  %v194 = vadd.f32 0.0, %v193
  %v195 = vpop.f32.mrb[0].mxu0
  %196 = vmatprep.mubr.f32.mxu0 0.0
  %197 = vmatmul.mubr.f32.gmra.mrb[0].mxu0 %v60
  %v198 = vpop.f32.mrb[0].mxu0
  %v199 = vadd.f32 0.0, %v198
  %v200 = vpop.f32.mrb[0].mxu0
  %201 = vmatprep.mubr.f32.mxu0 0.0
  %202 = vmatmul.mubr.f32.gmra.mrb[0].mxu0 %v61
  %v203 = vpop.f32.mrb[0].mxu0
  %v204 = vadd.f32 0.0, %v203
  %v205 = vpop.f32.mrb[0].mxu0
  %206 = vmatprep.mubr.f32.mxu0 0.0
  %207 = vmatmul.mubr.f32.gmra.mrb[0].mxu0 %v62
  %v208 = vpop.f32.mrb[0].mxu0
  %v209 = vadd.f32 0.0, %v208
  %v210 = vpop.f32.mrb[0].mxu0
  %211 = vmatprep.mubr.f32.mxu0 0.0
  %212 = vmatmul.mubr.f32.gmra.mrb[0].mxu0 %v63
  %v213 = vpop.f32.mrb[0].mxu0
  %v214 = vadd.f32 0.0, %v213
  %v215 = vpop.f32.mrb[0].mxu0
  %216 = vmatprep.mubr.f32.mxu0 0.0
  %217 = vmatmul.mubr.f32.gmra.mrb[0].mxu0 %v64
  %v218 = vpop.f32.mrb[0].mxu0
  %v219 = vadd.f32 0.0, %v218
  %v220 = vpop.f32.mrb[0].mxu0
  %221 = vmatprep.mubr.f32.mxu0 0.0
  %222 = vmatmul.mubr.f32.gmra.mrb[0].mxu0 %v65
  %v223 = vpop.f32.mrb[0].mxu0
  %v224 = vadd.f32 0.0, %v223
  %v225 = vpop.f32.mrb[0].mxu0
  %226 = vdwg.mxu0
  %v227 = vadd.f32 %v34, %v149
  %v228 = vadd.f32 %v35, %v154
  %v229 = vadd.f32 %v36, %v159
  %v230 = vadd.f32 %v37, %v164
  %v231 = vadd.f32 %v38, %v169
  %v232 = vadd.f32 %v39, %v174
  %v233 = vadd.f32 %v40, %v179
  %v234 = vadd.f32 %v41, %v184
  %v235 = vadd.f32 %v42, %v189
  %v236 = vadd.f32 %v43, %v194
  %v237 = vadd.f32 %v44, %v199
  %v238 = vadd.f32 %v45, %v204
  %v239 = vadd.f32 %v46, %v209
  %v240 = vadd.f32 %v47, %v214
  %v241 = vadd.f32 %v48, %v219
  %v242 = vadd.f32 %v49, %v224
  %243 = vst [vmem:[#allocation2] sm:$0xff] %v227
  %244 = vst [vmem:[#allocation2 + $0x8] sm:$0xff] %v228
  %245 = vst [vmem:[#allocation2 + $0x10] sm:$0xff] %v229
  %246 = vst [vmem:[#allocation2 + $0x18] sm:$0xff] %v230
  %247 = vst [vmem:[#allocation2 + $0x20] sm:$0xff] %v231
  %248 = vst [vmem:[#allocation2 + $0x28] sm:$0xff] %v232
  %249 = vst [vmem:[#allocation2 + $0x30] sm:$0xff] %v233
  %250 = vst [vmem:[#allocation2 + $0x38] sm:$0xff] %v234
  %251 = vst [vmem:[#allocation2 + $0x40] sm:$0xff] %v235
  %252 = vst [vmem:[#allocation2 + $0x48] sm:$0xff] %v236
  %253 = vst [vmem:[#allocation2 + $0x50] sm:$0xff] %v237
  %254 = vst [vmem:[#allocation2 + $0x58] sm:$0xff] %v238
  %255 = vst [vmem:[#allocation2 + $0x60] sm:$0xff] %v239
  %256 = vst [vmem:[#allocation2 + $0x68] sm:$0xff] %v240
  %257 = vst [vmem:[#allocation2 + $0x70] sm:$0xff] %v241
  %258 = vst [vmem:[#allocation2 + $0x78] sm:$0xff] %v242
  // Predicated region
  $region18: #{bottleneck_forward.3} parent=0 // pred_check
    %p259 = pneg %p14
  $region19: #{bottleneck_forward.3} parent=0 // pred_check_branch
    %261 = sbr.rel (%p259) target = $region21
  $region20: #{bottleneck_forward.3} parent=0 // pred_region
    %v262 = vld [vmem:[#allocation2] sm:$0xff]
    %v263 = vld [vmem:[#allocation2 + $0x8] sm:$0xff]
    %v264 = vld [vmem:[#allocation2 + $0x10] sm:$0xff]
    %v265 = vld [vmem:[#allocation2 + $0x18] sm:$0xff]
    %v266 = vld [vmem:[#allocation2 + $0x20] sm:$0xff]
    %v267 = vld [vmem:[#allocation2 + $0x28] sm:$0xff]
    %v268 = vld [vmem:[#allocation2 + $0x30] sm:$0xff]
    %v269 = vld [vmem:[#allocation2 + $0x38] sm:$0xff]
    %v270 = vld [vmem:[#allocation2 + $0x40] sm:$0xff]
    %v271 = vld [vmem:[#allocation2 + $0x48] sm:$0xff]
    %v272 = vld [vmem:[#allocation2 + $0x50] sm:$0xff]
    %v273 = vld [vmem:[#allocation2 + $0x58] sm:$0xff]
    %v274 = vld [vmem:[#allocation2 + $0x60] sm:$0xff]
    %v275 = vld [vmem:[#allocation2 + $0x68] sm:$0xff]
    %v276 = vld [vmem:[#allocation2 + $0x70] sm:$0xff]
    %v277 = vld [vmem:[#allocation2 + $0x78] sm:$0xff]
    %v278 = vld [vmem:[%s2] sm:$0x1]
    %v280 = vlaneseq
    %v281 = vshrl.u32 %v280, 7
    %v282 = vsub.s32 0, %v281
    %v283 = vrot.slane %v278, %v282
    %v285 = vadd.f32 %v262, %v283
    %v286 = vadd.f32 %v263, %v283
    %v287 = vadd.f32 %v264, %v283
    %v288 = vadd.f32 %v265, %v283
    %v289 = vadd.f32 %v266, %v283
    %v290 = vadd.f32 %v267, %v283
    %v291 = vadd.f32 %v268, %v283
    %v292 = vadd.f32 %v269, %v283
    %v293 = vadd.f32 %v270, %v283
    %v294 = vadd.f32 %v271, %v283
    %v295 = vadd.f32 %v272, %v283
    %v296 = vadd.f32 %v273, %v283
    %v297 = vadd.f32 %v274, %v283
    %v298 = vadd.f32 %v275, %v283
    %v299 = vadd.f32 %v276, %v283
    %v300 = vadd.f32 %v277, %v283
    %v301 = vmax.f32 %v285, 0.0
    %v302 = vmax.f32 %v286, 0.0
    %v303 = vmax.f32 %v287, 0.0
    %v304 = vmax.f32 %v288, 0.0
    %v305 = vmax.f32 %v289, 0.0
    %v306 = vmax.f32 %v290, 0.0
    %v307 = vmax.f32 %v291, 0.0
    %v308 = vmax.f32 %v292, 0.0
    %v309 = vmax.f32 %v293, 0.0
    %v310 = vmax.f32 %v294, 0.0
    %v311 = vmax.f32 %v295, 0.0
    %v312 = vmax.f32 %v296, 0.0
    %v313 = vmax.f32 %v297, 0.0
    %v314 = vmax.f32 %v298, 0.0
    %v315 = vmax.f32 %v299, 0.0
    %v316 = vmax.f32 %v300, 0.0
    %317 = vst [vmem:[%s3] sm:$0xff] %v301
    %318 = vst [vmem:[%s3 + $0x8] sm:$0xff] %v302
    %319 = vst [vmem:[%s3 + $0x10] sm:$0xff] %v303
    %320 = vst [vmem:[%s3 + $0x18] sm:$0xff] %v304
    %321 = vst [vmem:[%s3 + $0x20] sm:$0xff] %v305
    %322 = vst [vmem:[%s3 + $0x28] sm:$0xff] %v306
    %323 = vst [vmem:[%s3 + $0x30] sm:$0xff] %v307
    %324 = vst [vmem:[%s3 + $0x38] sm:$0xff] %v308
    %325 = vst [vmem:[%s3 + $0x40] sm:$0xff] %v309
    %326 = vst [vmem:[%s3 + $0x48] sm:$0xff] %v310
    %327 = vst [vmem:[%s3 + $0x50] sm:$0xff] %v311
    %328 = vst [vmem:[%s3 + $0x58] sm:$0xff] %v312
    %329 = vst [vmem:[%s3 + $0x60] sm:$0xff] %v313
    %330 = vst [vmem:[%s3 + $0x68] sm:$0xff] %v314
    %331 = vst [vmem:[%s3 + $0x70] sm:$0xff] %v315
    %332 = vst [vmem:[%s3 + $0x78] sm:$0xff] %v316
  $region21: #{bottleneck_forward.3} parent=0 // pred_fallthru
    _
  // Predicated region
  $region22: #{bottleneck_forward.3} parent=0 // pred_check
    _
  $region23: #{bottleneck_forward.3} parent=0 // pred_check_branch
    %334 = sbr.rel (0) target = $region25
  $region24: #{bottleneck_forward.3} parent=0 // pred_region
    _
  $region25: #{bottleneck_forward.3} parent=0 // pred_fallthru
    _
  // Predicated region
  $region26: #{bottleneck_forward.3} parent=0 // pred_check
    _
  $region27: #{bottleneck_forward.3} parent=0 // pred_check_branch
    %336 = sbr.rel (0) target = $region29
  $region28: #{bottleneck_forward.3} parent=0 // pred_region
    _
  $region29: #{bottleneck_forward.3} parent=0 // pred_fallthru
    _

// kernel: bottleneck_forward.4
$region0: #{bottleneck_forward.4}
  #allocation0 [shape = 'u32[]', space=smem, size = 0x4, offset = 0x4, fixed_abs, tag = 'smem constant byte address 0x4 - core index']
  #allocation1 [shape = 'u32[144,128]{1,0:T(1,128)}', space=vmem, size = 0x12000, scoped, tag = 'internal scratch']
  %s0 = inlined_call_operand.vmem [shape: f32[2,9,10,128], index: 0, kind: input, shape index: {}]
  %s1 = inlined_call_operand.vmem [shape: f32[1152,128], index: 1, kind: input, shape index: {}]
  %s2 = inlined_call_operand.vmem [shape: f32[1,128], index: 2, kind: input, shape index: {}]
  %s3 = inlined_call_operand.vmem [shape: f32[2,1,16,128], index: 3, kind: output, shape index: {}]
  %s4 = sld [smem:[#allocation0]]
  $region45: #{bottleneck_forward.4} parent=0
    _
  %s6 = ssub.s32 1, %s4
  %s7 = scalar_select 0, %s6, %s4
  loop: start=0, step=1, limit=4
  $region2: #{bottleneck_forward.4} parent=0 // loop_pre_header
    _
  $region3: #{bottleneck_forward.4} parent=0 // loop_header
    %s9 = sphi 0, %s13
    %p10 = scmp.ge.s32.totalorder %s9, 4
    %s16 = sphi 0, %s28
    %s17 = sphi 0, %s24
    %s18 = sphi 0, %s16
    %s19 = sphi 0, %s17
    %s20 = sphi 0, %s18
    %s21 = sphi 0, %s19
    %s31 = sphi 0, %s33
    %s34 = sphi 0, %s31
    %s35 = sphi 0, %s34
    %s51 = sphi 0, %s35
    %s55 = sphi 0, %s55
    %s57 = sphi 0, %s55
    %s58 = sphi 0, %s57
    %s72 = sphi 0, %s58
    %s76 = sphi 0, %s76
    %s78 = sphi 0, %s76
    %s79 = sphi 0, %s78
    %s93 = sphi 0, %s79
    %s101 = sphi 0, %s103
    %s104 = sphi 0, %s101
    %s105 = sphi 0, %s104
    %s121 = sphi 0, %s105
  $region4: #{bottleneck_forward.4} parent=0 // loop_header_branch
    %12 = sbr.rel (%p10) target = $region8
  $region5: #{bottleneck_forward.4} parent=0 // loop_body
    %s14 = ssub.s32 %s9, 1
    %s15 = ssub.s32 %s9, 2
    %s22 = sadd.s32 1, %s17
    %p23 = scmp.ge.s32.totalorder %s22, 1
    %s24 = scalar_select %p23, 0, %s22
    %s25 = sadd.s32 1, %s16
    %s26 = scalar_select %p23, %s25, %s16
    %p27 = scmp.ge.s32.totalorder %s26, 2
    %s28 = scalar_select %p27, 0, %s26
    %s29 = ssub.s32 %s16, %s28
    %p30 = scmp.eq.s32.totalorder %s29, 0
    %s32 = sadd.s32 %s31, 1
    %s33 = scalar_select %p30, %s31, %s32
    %p36 = pneg %p30
    %p37 = scmp.eq.s32.totalorder %s9, 1
    %p38 = por %p36, %p37
    %p39 = scmp.ne.s32.totalorder %s31, %s34
    %p40 = scmp.eq.s32.totalorder %s9, 0
    %p41 = por %p39, %p40
    %p42 = scmp.ne.s32.totalorder %s31, %s34
    %p43 = scmp.eq.s32.totalorder %s14, 1
    %p44 = por %p42, %p43
    %p45 = scmp.ne.s32.totalorder %s34, %s35
    %p46 = scmp.eq.s32.totalorder %s14, 0
    %p47 = por %p45, %p46
    %p48 = scmp.ne.s32.totalorder %s34, %s35
    %p49 = scmp.eq.s32.totalorder %s15, 1
    %p50 = por %p48, %p49
    %p52 = scmp.ne.s32.totalorder %s35, %s51
    %p53 = scmp.eq.s32.totalorder %s15, 0
    %p54 = por %p52, %p53
    %s56 = sadd.s32 %s55, 1
    %p59 = scmp.eq.s32.totalorder %s9, 1
    %p60 = scmp.ne.s32.totalorder %s55, %s57
    %p61 = scmp.eq.s32.totalorder %s9, 0
    %p62 = por %p60, %p61
    %p63 = scmp.ne.s32.totalorder %s55, %s57
    %p64 = scmp.eq.s32.totalorder %s14, 1
    %p65 = por %p63, %p64
    %p66 = scmp.ne.s32.totalorder %s57, %s58
    %p67 = scmp.eq.s32.totalorder %s14, 0
    %p68 = por %p66, %p67
    %p69 = scmp.ne.s32.totalorder %s57, %s58
    %p70 = scmp.eq.s32.totalorder %s15, 1
    %p71 = por %p69, %p70
    %p73 = scmp.ne.s32.totalorder %s58, %s72
    %p74 = scmp.eq.s32.totalorder %s15, 0
    %p75 = por %p73, %p74
    %s77 = sadd.s32 %s76, 1
    %p80 = scmp.eq.s32.totalorder %s9, 1
    %p81 = scmp.ne.s32.totalorder %s76, %s78
    %p82 = scmp.eq.s32.totalorder %s9, 0
    %p83 = por %p81, %p82
    %p84 = scmp.ne.s32.totalorder %s76, %s78
    %p85 = scmp.eq.s32.totalorder %s14, 1
    %p86 = por %p84, %p85
    %p87 = scmp.ne.s32.totalorder %s78, %s79
    %p88 = scmp.eq.s32.totalorder %s14, 0
    %p89 = por %p87, %p88
    %p90 = scmp.ne.s32.totalorder %s78, %s79
    %p91 = scmp.eq.s32.totalorder %s15, 1
    %p92 = por %p90, %p91
    %p94 = scmp.ne.s32.totalorder %s79, %s93
    %p95 = scmp.eq.s32.totalorder %s15, 0
    %p96 = por %p94, %p95
    %s97 = ssub.s32 %s16, %s28
    %s98 = ssub.s32 %s17, %s24
    %s99 = sor.u32 %s97, %s98
    %p100 = scmp.eq.s32.totalorder %s99, 0
    %s102 = sadd.s32 %s101, 1
    %s103 = scalar_select %p100, %s101, %s102
    %p106 = pneg %p100
    %p107 = scmp.eq.s32.totalorder %s9, 1
    %p108 = por %p106, %p107
    %p109 = scmp.ne.s32.totalorder %s101, %s104
    %p110 = scmp.eq.s32.totalorder %s9, 0
    %p111 = por %p109, %p110
    %p112 = scmp.ne.s32.totalorder %s101, %s104
    %p113 = scmp.eq.s32.totalorder %s14, 1
    %p114 = por %p112, %p113
    %p115 = scmp.ne.s32.totalorder %s104, %s105
    %p116 = scmp.eq.s32.totalorder %s14, 0
    %p117 = por %p115, %p116
    %p118 = scmp.ne.s32.totalorder %s104, %s105
    %p119 = scmp.eq.s32.totalorder %s15, 1
    %p120 = por %p118, %p119
    %p122 = scmp.ne.s32.totalorder %s105, %s121
    %p123 = scmp.eq.s32.totalorder %s15, 0
    %p124 = por %p122, %p123
    %p125 = scmp.le.s32.totalorder 1, %s9
    %p126 = scmp.lt.s32.totalorder %s9, 3
    %p127 = pnand %p125, %p126
    %p128 = pneg %p127
    // Predicated region
    $region9: #{bottleneck_forward.4} parent=5 // pred_check
      _
    $region10: #{bottleneck_forward.4} parent=5 // pred_check_branch
      %130 = sbr.rel (%p127) target = $region12
    $region11: #{bottleneck_forward.4} parent=5 // pred_region
      %s131 = ssub.s32 %s9, 1
      // Predicated region
      $region13: #{bottleneck_forward.4} parent=11 // pred_check
        %p132 = pneg %p68
      $region14: #{bottleneck_forward.4} parent=11 // pred_check_branch
        %134 = sbr.rel (%p132) target = $region16
      $region15: #{bottleneck_forward.4} parent=11 // pred_region
        _
      $region16: #{bottleneck_forward.4} parent=11 // pred_fallthru
        _
      // Predicated region
      $region17: #{bottleneck_forward.4} parent=11 // pred_check
        %p135 = pneg %p89
      $region18: #{bottleneck_forward.4} parent=11 // pred_check_branch
        %137 = sbr.rel (%p135) target = $region20
      $region19: #{bottleneck_forward.4} parent=11 // pred_region
        _
      $region20: #{bottleneck_forward.4} parent=11 // pred_fallthru
        _
    $region12: #{bottleneck_forward.4} parent=5 // pred_fallthru
      _
    %p138 = scmp.lt.s32.totalorder %s9, 2
    // Predicated region
    $region21: #{bottleneck_forward.4} parent=5 // pred_check
      %p139 = pneg %p138
    $region22: #{bottleneck_forward.4} parent=5 // pred_check_branch
      %141 = sbr.rel (%p139) target = $region24
    $region23: #{bottleneck_forward.4} parent=5 // pred_region
      // Predicated region
      $region25: #{bottleneck_forward.4} parent=23 // pred_check
        %p142 = pneg %p41
      $region26: #{bottleneck_forward.4} parent=23 // pred_check_branch
        %144 = sbr.rel (%p142) target = $region28
      $region27: #{bottleneck_forward.4} parent=23 // pred_region
        %p145 = scmp.lt.s32.totalorder %s16, 1
        %s146 = scalar_select %p145, %s16, 1
        %s147 = smul.addr %s146, 18
        %s148 = smul.addr %s147, 8
        %s149 = scalar_lea.vmem %s0, %s148
      $region28: #{bottleneck_forward.4} parent=23 // pred_fallthru
        _
    $region24: #{bottleneck_forward.4} parent=5 // pred_fallthru
      _
    %p150 = scmp.le.s32.totalorder 1, %s9
    %p151 = scmp.lt.s32.totalorder %s9, 3
    %p152 = pnand %p150, %p151
    %p153 = pneg %p152
    // Predicated region
    $region29: #{bottleneck_forward.4} parent=5 // pred_check
      _
    $region30: #{bottleneck_forward.4} parent=5 // pred_check_branch
      %155 = sbr.rel (%p152) target = $region32
    $region31: #{bottleneck_forward.4} parent=5 // pred_region
      %s156 = ssub.s32 %s9, 1
      %p157 = scmp.lt.s32.totalorder %s18, 1
      %s158 = scalar_select %p157, %s18, 1
      %s159 = smul.addr %s158, 18
      %s160 = smul.addr %s159, 8
      %s161 = scalar_lea.vmem %s0, %s160
      %p162 = pneg %p47
      %p163 = pneg %p44
      %p164 = pneg %p68
      %p165 = pneg %p65
      %p166 = pneg %p89
      %p167 = pneg %p86
      %p168 = pneg %p117
      %p169 = pneg %p114
      %p170 = scmp.lt.s32.totalorder %s18, 1
      %s171 = scalar_select %p170, %s18, 1
      %p172 = scmp.lt.s32.totalorder %s19, 0
      %s173 = scalar_select %p172, %s19, 0
      %s174 = smul.addr %s173, 2
      %s175 = smul.addr %s171, 2
      %s176 = sadd.s32 %s174, %s175
      %s177 = smul.addr %s176, 8
      %s178 = scalar_lea.vmem %s3, %s177
      %p179 = scmp.lt.s32.totalorder %s18, 1
      %s180 = scalar_select %p179, %s18, 1
      %s181 = smul.addr %s180, 18
      %s182 = smul.addr %s181, 8
      %s183 = scalar_lea.vmem %s0, %s182
      %p184 = scmp.lt.s32.totalorder %s18, 1
      %s185 = scalar_select %p184, %s18, 1
      %p186 = scmp.lt.s32.totalorder %s19, 0
      %s187 = scalar_select %p186, %s19, 0
      %s188 = smul.addr %s187, 2
      %s189 = smul.addr %s185, 2
      %s190 = sadd.s32 %s188, %s189
      %s191 = smul.addr %s190, 8
      %s192 = scalar_lea.vmem %s3, %s191
      %s193 = smul.u32 %s19, 4
      %v194 = vld [vmem:[%s1] sm:$0xff]
      %v195 = vld [vmem:[%s1 + $0x8] sm:$0xff]
      %v196 = vld [vmem:[%s1 + $0x10] sm:$0xff]
      %v197 = vld [vmem:[%s1 + $0x18] sm:$0xff]
      %v198 = vld [vmem:[%s1 + $0x20] sm:$0xff]
      %v199 = vld [vmem:[%s1 + $0x28] sm:$0xff]
      %v200 = vld [vmem:[%s1 + $0x30] sm:$0xff]
      %v201 = vld [vmem:[%s1 + $0x38] sm:$0xff]
      %v202 = vld [vmem:[%s1 + $0x40] sm:$0xff]
      %v203 = vld [vmem:[%s1 + $0x48] sm:$0xff]
      %v204 = vld [vmem:[%s1 + $0x50] sm:$0xff]
      %v205 = vld [vmem:[%s1 + $0x58] sm:$0xff]
      %v206 = vld [vmem:[%s1 + $0x60] sm:$0xff]
      %v207 = vld [vmem:[%s1 + $0x68] sm:$0xff]
      %v208 = vld [vmem:[%s1 + $0x70] sm:$0xff]
      %v209 = vld [vmem:[%s1 + $0x78] sm:$0xff]
      %v210 = vld [vmem:[%s1 + $0x80] sm:$0xff]
      %v211 = vld [vmem:[%s1 + $0x88] sm:$0xff]
      %v212 = vld [vmem:[%s1 + $0x90] sm:$0xff]
      %v213 = vld [vmem:[%s1 + $0x98] sm:$0xff]
      %v214 = vld [vmem:[%s1 + $0xa0] sm:$0xff]
      %v215 = vld [vmem:[%s1 + $0xa8] sm:$0xff]
      %v216 = vld [vmem:[%s1 + $0xb0] sm:$0xff]
      %v217 = vld [vmem:[%s1 + $0xb8] sm:$0xff]
      %v218 = vld [vmem:[%s1 + $0xc0] sm:$0xff]
      %v219 = vld [vmem:[%s1 + $0xc8] sm:$0xff]
      %v220 = vld [vmem:[%s1 + $0xd0] sm:$0xff]
      %v221 = vld [vmem:[%s1 + $0xd8] sm:$0xff]
      %v222 = vld [vmem:[%s1 + $0xe0] sm:$0xff]
      %v223 = vld [vmem:[%s1 + $0xe8] sm:$0xff]
      %v224 = vld [vmem:[%s1 + $0xf0] sm:$0xff]
      %v225 = vld [vmem:[%s1 + $0xf8] sm:$0xff]
      %v226 = vld [vmem:[%s1 + $0x100] sm:$0xff]
      %v227 = vld [vmem:[%s1 + $0x108] sm:$0xff]
      %v228 = vld [vmem:[%s1 + $0x110] sm:$0xff]
      %v229 = vld [vmem:[%s1 + $0x118] sm:$0xff]
      %v230 = vld [vmem:[%s1 + $0x120] sm:$0xff]
      %v231 = vld [vmem:[%s1 + $0x128] sm:$0xff]
      %v232 = vld [vmem:[%s1 + $0x130] sm:$0xff]
      %v233 = vld [vmem:[%s1 + $0x138] sm:$0xff]
      %v234 = vld [vmem:[%s1 + $0x140] sm:$0xff]
      %v235 = vld [vmem:[%s1 + $0x148] sm:$0xff]
      %v236 = vld [vmem:[%s1 + $0x150] sm:$0xff]
      %v237 = vld [vmem:[%s1 + $0x158] sm:$0xff]
      %v238 = vld [vmem:[%s1 + $0x160] sm:$0xff]
      %v239 = vld [vmem:[%s1 + $0x168] sm:$0xff]
      %v240 = vld [vmem:[%s1 + $0x170] sm:$0xff]
      %v241 = vld [vmem:[%s1 + $0x178] sm:$0xff]
      %v242 = vld [vmem:[%s1 + $0x180] sm:$0xff]
      %v243 = vld [vmem:[%s1 + $0x188] sm:$0xff]
      %v244 = vld [vmem:[%s1 + $0x190] sm:$0xff]
      %v245 = vld [vmem:[%s1 + $0x198] sm:$0xff]
      %v246 = vld [vmem:[%s1 + $0x1a0] sm:$0xff]
      %v247 = vld [vmem:[%s1 + $0x1a8] sm:$0xff]
      %v248 = vld [vmem:[%s1 + $0x1b0] sm:$0xff]
      %v249 = vld [vmem:[%s1 + $0x1b8] sm:$0xff]
      %v250 = vld [vmem:[%s1 + $0x1c0] sm:$0xff]
      %v251 = vld [vmem:[%s1 + $0x1c8] sm:$0xff]
      %v252 = vld [vmem:[%s1 + $0x1d0] sm:$0xff]
      %v253 = vld [vmem:[%s1 + $0x1d8] sm:$0xff]
      %v254 = vld [vmem:[%s1 + $0x1e0] sm:$0xff]
      %v255 = vld [vmem:[%s1 + $0x1e8] sm:$0xff]
      %v256 = vld [vmem:[%s1 + $0x1f0] sm:$0xff]
      %v257 = vld [vmem:[%s1 + $0x1f8] sm:$0xff]
      %v258 = vld [vmem:[%s1 + $0x200] sm:$0xff]
      %v259 = vld [vmem:[%s1 + $0x208] sm:$0xff]
      %v260 = vld [vmem:[%s1 + $0x210] sm:$0xff]
      %v261 = vld [vmem:[%s1 + $0x218] sm:$0xff]
      %v262 = vld [vmem:[%s1 + $0x220] sm:$0xff]
      %v263 = vld [vmem:[%s1 + $0x228] sm:$0xff]
      %v264 = vld [vmem:[%s1 + $0x230] sm:$0xff]
      %v265 = vld [vmem:[%s1 + $0x238] sm:$0xff]
      %v266 = vld [vmem:[%s1 + $0x240] sm:$0xff]
      %v267 = vld [vmem:[%s1 + $0x248] sm:$0xff]
      %v268 = vld [vmem:[%s1 + $0x250] sm:$0xff]
      %v269 = vld [vmem:[%s1 + $0x258] sm:$0xff]
      %v270 = vld [vmem:[%s1 + $0x260] sm:$0xff]
      %v271 = vld [vmem:[%s1 + $0x268] sm:$0xff]
      %v272 = vld [vmem:[%s1 + $0x270] sm:$0xff]
      %v273 = vld [vmem:[%s1 + $0x278] sm:$0xff]
      %v274 = vld [vmem:[%s1 + $0x280] sm:$0xff]
      %v275 = vld [vmem:[%s1 + $0x288] sm:$0xff]
      %v276 = vld [vmem:[%s1 + $0x290] sm:$0xff]
      %v277 = vld [vmem:[%s1 + $0x298] sm:$0xff]
      %v278 = vld [vmem:[%s1 + $0x2a0] sm:$0xff]
      %v279 = vld [vmem:[%s1 + $0x2a8] sm:$0xff]
      %v280 = vld [vmem:[%s1 + $0x2b0] sm:$0xff]
      %v281 = vld [vmem:[%s1 + $0x2b8] sm:$0xff]
      %v282 = vld [vmem:[%s1 + $0x2c0] sm:$0xff]
      %v283 = vld [vmem:[%s1 + $0x2c8] sm:$0xff]
      %v284 = vld [vmem:[%s1 + $0x2d0] sm:$0xff]
      %v285 = vld [vmem:[%s1 + $0x2d8] sm:$0xff]
      %v286 = vld [vmem:[%s1 + $0x2e0] sm:$0xff]
      %v287 = vld [vmem:[%s1 + $0x2e8] sm:$0xff]
      %v288 = vld [vmem:[%s1 + $0x2f0] sm:$0xff]
      %v289 = vld [vmem:[%s1 + $0x2f8] sm:$0xff]
      %v290 = vld [vmem:[%s1 + $0x300] sm:$0xff]
      %v291 = vld [vmem:[%s1 + $0x308] sm:$0xff]
      %v292 = vld [vmem:[%s1 + $0x310] sm:$0xff]
      %v293 = vld [vmem:[%s1 + $0x318] sm:$0xff]
      %v294 = vld [vmem:[%s1 + $0x320] sm:$0xff]
      %v295 = vld [vmem:[%s1 + $0x328] sm:$0xff]
      %v296 = vld [vmem:[%s1 + $0x330] sm:$0xff]
      %v297 = vld [vmem:[%s1 + $0x338] sm:$0xff]
      %v298 = vld [vmem:[%s1 + $0x340] sm:$0xff]
      %v299 = vld [vmem:[%s1 + $0x348] sm:$0xff]
      %v300 = vld [vmem:[%s1 + $0x350] sm:$0xff]
      %v301 = vld [vmem:[%s1 + $0x358] sm:$0xff]
      %v302 = vld [vmem:[%s1 + $0x360] sm:$0xff]
      %v303 = vld [vmem:[%s1 + $0x368] sm:$0xff]
      %v304 = vld [vmem:[%s1 + $0x370] sm:$0xff]
      %v305 = vld [vmem:[%s1 + $0x378] sm:$0xff]
      %v306 = vld [vmem:[%s1 + $0x380] sm:$0xff]
      %v307 = vld [vmem:[%s1 + $0x388] sm:$0xff]
      %v308 = vld [vmem:[%s1 + $0x390] sm:$0xff]
      %v309 = vld [vmem:[%s1 + $0x398] sm:$0xff]
      %v310 = vld [vmem:[%s1 + $0x3a0] sm:$0xff]
      %v311 = vld [vmem:[%s1 + $0x3a8] sm:$0xff]
      %v312 = vld [vmem:[%s1 + $0x3b0] sm:$0xff]
      %v313 = vld [vmem:[%s1 + $0x3b8] sm:$0xff]
      %v314 = vld [vmem:[%s1 + $0x3c0] sm:$0xff]
      %v315 = vld [vmem:[%s1 + $0x3c8] sm:$0xff]
      %v316 = vld [vmem:[%s1 + $0x3d0] sm:$0xff]
      %v317 = vld [vmem:[%s1 + $0x3d8] sm:$0xff]
      %v318 = vld [vmem:[%s1 + $0x3e0] sm:$0xff]
      %v319 = vld [vmem:[%s1 + $0x3e8] sm:$0xff]
      %v320 = vld [vmem:[%s1 + $0x3f0] sm:$0xff]
      %v321 = vld [vmem:[%s1 + $0x3f8] sm:$0xff]
      %v322 = vld [vmem:[%s1 + $0x400] sm:$0xff]
      %v323 = vld [vmem:[%s1 + $0x408] sm:$0xff]
      %v324 = vld [vmem:[%s1 + $0x410] sm:$0xff]
      %v325 = vld [vmem:[%s1 + $0x418] sm:$0xff]
      %v326 = vld [vmem:[%s1 + $0x420] sm:$0xff]
      %v327 = vld [vmem:[%s1 + $0x428] sm:$0xff]
      %v328 = vld [vmem:[%s1 + $0x430] sm:$0xff]
      %v329 = vld [vmem:[%s1 + $0x438] sm:$0xff]
      %v330 = vld [vmem:[%s1 + $0x440] sm:$0xff]
      %v331 = vld [vmem:[%s1 + $0x448] sm:$0xff]
      %v332 = vld [vmem:[%s1 + $0x450] sm:$0xff]
      %v333 = vld [vmem:[%s1 + $0x458] sm:$0xff]
      %v334 = vld [vmem:[%s1 + $0x460] sm:$0xff]
      %v335 = vld [vmem:[%s1 + $0x468] sm:$0xff]
      %v336 = vld [vmem:[%s1 + $0x470] sm:$0xff]
      %v337 = vld [vmem:[%s1 + $0x478] sm:$0xff]
      %v338 = vld [vmem:[%s2] sm:$0x1]
      %s339 = smul.u32 %s19, 8
      %s340 = smul.u32 %s339, 16
      %s341 = scalar_lea.vmem %s183, %s340
      %v342 = vld [vmem:[%s341] sm:$0xf]
      %v343 = vld [vmem:[%s341 + $0x5] sm:$0xf]
      %v344 = vld [vmem:[%s341 + $0x1] sm:$0xf]
      %s345 = sadd.s32 %s339, 1
      %s346 = smul.u32 %s345, 16
      %s347 = scalar_lea.vmem %s183, %s346
      %v348 = vld [vmem:[%s347] sm:$0xf]
      %v349 = vld [vmem:[%s347 + $0x5] sm:$0xf]
      %v350 = vld [vmem:[%s347 + $0x1] sm:$0xf]
      %s351 = sadd.s32 %s339, 2
      %s352 = smul.u32 %s351, 16
      %s353 = scalar_lea.vmem %s183, %s352
      %v354 = vld [vmem:[%s353] sm:$0xf]
      %v355 = vld [vmem:[%s353 + $0x5] sm:$0xf]
      %v356 = vld [vmem:[%s353 + $0x1] sm:$0xf]
      %v358 = vlaneseq
      %v359 = vshrl.u32 %v358, 7
      %v360 = vsub.s32 0, %v359
      %v361 = vrot.slane %v338, %v360
      %363 = vmatprep.subr.mxu0 0.0
      %364 = vmatpush1.msra.mxu0 %v194
      %365 = vmatprep.subr.mxu0 0.0
      %366 = vmatpush1.msra.mxu0 %v195
      %367 = vmatprep.subr.mxu0 0.0
      %368 = vmatpush1.msra.mxu0 %v196
      %369 = vmatprep.subr.mxu0 0.0
      %370 = vmatpush1.msra.mxu0 %v197
      %371 = vmatprep.subr.mxu0 0.0
      %372 = vmatpush1.msra.mxu0 %v198
      %373 = vmatprep.subr.mxu0 0.0
      %374 = vmatpush1.msra.mxu0 %v199
      %375 = vmatprep.subr.mxu0 0.0
      %376 = vmatpush1.msra.mxu0 %v200
      %377 = vmatprep.subr.mxu0 0.0
      %378 = vmatpush1.msra.mxu0 %v201
      %379 = vmatprep.subr.mxu0 0.0
      %380 = vmatpush1.msra.mxu0 %v202
      %381 = vmatprep.subr.mxu0 0.0
      %382 = vmatpush1.msra.mxu0 %v203
      %383 = vmatprep.subr.mxu0 0.0
      %384 = vmatpush1.msra.mxu0 %v204
      %385 = vmatprep.subr.mxu0 0.0
      %386 = vmatpush1.msra.mxu0 %v205
      %387 = vmatprep.subr.mxu0 0.0
      %388 = vmatpush1.msra.mxu0 %v206
      %389 = vmatprep.subr.mxu0 0.0
      %390 = vmatpush1.msra.mxu0 %v207
      %391 = vmatprep.subr.mxu0 0.0
      %392 = vmatpush1.msra.mxu0 %v208
      %393 = vmatprep.subr.mxu0 0.0
      %394 = vmatpush1.msra.mxu0 %v209
      %395 = vmatprep.subr.mxu0 0.0
      %396 = vmatpush1.msra.mxu0 %v210
      %397 = vmatprep.subr.mxu0 0.0
      %398 = vmatpush1.msra.mxu0 %v211
      %399 = vmatprep.subr.mxu0 0.0
      %400 = vmatpush1.msra.mxu0 %v212
      %401 = vmatprep.subr.mxu0 0.0
      %402 = vmatpush1.msra.mxu0 %v213
      %403 = vmatprep.subr.mxu0 0.0
      %404 = vmatpush1.msra.mxu0 %v214
      %405 = vmatprep.subr.mxu0 0.0
      %406 = vmatpush1.msra.mxu0 %v215
      %407 = vmatprep.subr.mxu0 0.0
      %408 = vmatpush1.msra.mxu0 %v216
      %409 = vmatprep.subr.mxu0 0.0
      %410 = vmatpush1.msra.mxu0 %v217
      %411 = vmatprep.subr.mxu0 0.0
      %412 = vmatpush1.msra.mxu0 %v218
      %413 = vmatprep.subr.mxu0 0.0
      %414 = vmatpush1.msra.mxu0 %v219
      %415 = vmatprep.subr.mxu0 0.0
      %416 = vmatpush1.msra.mxu0 %v220
      %417 = vmatprep.subr.mxu0 0.0
      %418 = vmatpush1.msra.mxu0 %v221
      %419 = vmatprep.subr.mxu0 0.0
      %420 = vmatpush1.msra.mxu0 %v222
      %421 = vmatprep.subr.mxu0 0.0
      %422 = vmatpush1.msra.mxu0 %v223
      %423 = vmatprep.subr.mxu0 0.0
      %424 = vmatpush1.msra.mxu0 %v224
      %425 = vmatprep.subr.mxu0 0.0
      %426 = vmatpush1.msra.mxu0 %v225
      %427 = vmatprep.mubr.f32.mxu0 %v343
      %428 = vmatmul.mubr.f32.gmra.mrb[0].mxu0 %v342
      %v429 = vpop.f32.mrb[0].mxu0
      %v430 = vadd.f32 %v361, %v429
      %v431 = vpop.f32.mrb[0].mxu0
      %432 = vdwg.mxu0
      %433 = vmatprep.subr.mxu0 0.0
      %434 = vmatpush1.msra.mxu0 %v226
      %435 = vmatprep.subr.mxu0 0.0
      %436 = vmatpush1.msra.mxu0 %v227
      %437 = vmatprep.subr.mxu0 0.0
      %438 = vmatpush1.msra.mxu0 %v228
      %439 = vmatprep.subr.mxu0 0.0
      %440 = vmatpush1.msra.mxu0 %v229
      %441 = vmatprep.subr.mxu0 0.0
      %442 = vmatpush1.msra.mxu0 %v230
      %443 = vmatprep.subr.mxu0 0.0
      %444 = vmatpush1.msra.mxu0 %v231
      %445 = vmatprep.subr.mxu0 0.0
      %446 = vmatpush1.msra.mxu0 %v232
      %447 = vmatprep.subr.mxu0 0.0
      %448 = vmatpush1.msra.mxu0 %v233
      %449 = vmatprep.subr.mxu0 0.0
      %450 = vmatpush1.msra.mxu0 %v234
      %451 = vmatprep.subr.mxu0 0.0
      %452 = vmatpush1.msra.mxu0 %v235
      %453 = vmatprep.subr.mxu0 0.0
      %454 = vmatpush1.msra.mxu0 %v236
      %455 = vmatprep.subr.mxu0 0.0
      %456 = vmatpush1.msra.mxu0 %v237
      %457 = vmatprep.subr.mxu0 0.0
      %458 = vmatpush1.msra.mxu0 %v238
      %459 = vmatprep.subr.mxu0 0.0
      %460 = vmatpush1.msra.mxu0 %v239
      %461 = vmatprep.subr.mxu0 0.0
      %462 = vmatpush1.msra.mxu0 %v240
      %463 = vmatprep.subr.mxu0 0.0
      %464 = vmatpush1.msra.mxu0 %v241
      %465 = vmatprep.subr.mxu0 0.0
      %466 = vmatpush1.msra.mxu0 %v242
      %467 = vmatprep.subr.mxu0 0.0
      %468 = vmatpush1.msra.mxu0 %v243
      %469 = vmatprep.subr.mxu0 0.0
      %470 = vmatpush1.msra.mxu0 %v244
      %471 = vmatprep.subr.mxu0 0.0
      %472 = vmatpush1.msra.mxu0 %v245
      %473 = vmatprep.subr.mxu0 0.0
      %474 = vmatpush1.msra.mxu0 %v246
      %475 = vmatprep.subr.mxu0 0.0
      %476 = vmatpush1.msra.mxu0 %v247
      %477 = vmatprep.subr.mxu0 0.0
      %478 = vmatpush1.msra.mxu0 %v248
      %479 = vmatprep.subr.mxu0 0.0
      %480 = vmatpush1.msra.mxu0 %v249
      %481 = vmatprep.subr.mxu0 0.0
      %482 = vmatpush1.msra.mxu0 %v250
      %483 = vmatprep.subr.mxu0 0.0
      %484 = vmatpush1.msra.mxu0 %v251
      %485 = vmatprep.subr.mxu0 0.0
      %486 = vmatpush1.msra.mxu0 %v252
      %487 = vmatprep.subr.mxu0 0.0
      %488 = vmatpush1.msra.mxu0 %v253
      %489 = vmatprep.subr.mxu0 0.0
      %490 = vmatpush1.msra.mxu0 %v254
      %491 = vmatprep.subr.mxu0 0.0
      %492 = vmatpush1.msra.mxu0 %v255
      %493 = vmatprep.subr.mxu0 0.0
      %494 = vmatpush1.msra.mxu0 %v256
      %495 = vmatprep.subr.mxu0 0.0
      %496 = vmatpush1.msra.mxu0 %v257
      %497 = vmatprep.mubr.f32.mxu0 %v348
      %498 = vmatmul.mubr.f32.gmra.mrb[0].mxu0 %v344
      %v499 = vpop.f32.mrb[0].mxu0
      %v500 = vadd.f32 %v430, %v499
      %v501 = vpop.f32.mrb[0].mxu0
      %502 = vdwg.mxu0
      %503 = vmatprep.subr.mxu0 0.0
      %504 = vmatpush1.msra.mxu0 %v258
      %505 = vmatprep.subr.mxu0 0.0
      %506 = vmatpush1.msra.mxu0 %v259
      %507 = vmatprep.subr.mxu0 0.0
      %508 = vmatpush1.msra.mxu0 %v260
      %509 = vmatprep.subr.mxu0 0.0
      %510 = vmatpush1.msra.mxu0 %v261
      %511 = vmatprep.subr.mxu0 0.0
      %512 = vmatpush1.msra.mxu0 %v262
      %513 = vmatprep.subr.mxu0 0.0
      %514 = vmatpush1.msra.mxu0 %v263
      %515 = vmatprep.subr.mxu0 0.0
      %516 = vmatpush1.msra.mxu0 %v264
      %517 = vmatprep.subr.mxu0 0.0
      %518 = vmatpush1.msra.mxu0 %v265
      %519 = vmatprep.subr.mxu0 0.0
      %520 = vmatpush1.msra.mxu0 %v266
      %521 = vmatprep.subr.mxu0 0.0
      %522 = vmatpush1.msra.mxu0 %v267
      %523 = vmatprep.subr.mxu0 0.0
      %524 = vmatpush1.msra.mxu0 %v268
      %525 = vmatprep.subr.mxu0 0.0
      %526 = vmatpush1.msra.mxu0 %v269
      %527 = vmatprep.subr.mxu0 0.0
      %528 = vmatpush1.msra.mxu0 %v270
      %529 = vmatprep.subr.mxu0 0.0
      %530 = vmatpush1.msra.mxu0 %v271
      %531 = vmatprep.subr.mxu0 0.0
      %532 = vmatpush1.msra.mxu0 %v272
      %533 = vmatprep.subr.mxu0 0.0
      %534 = vmatpush1.msra.mxu0 %v273
      %535 = vmatprep.subr.mxu0 0.0
      %536 = vmatpush1.msra.mxu0 %v274
      %537 = vmatprep.subr.mxu0 0.0
      %538 = vmatpush1.msra.mxu0 %v275
      %539 = vmatprep.subr.mxu0 0.0
      %540 = vmatpush1.msra.mxu0 %v276
      %541 = vmatprep.subr.mxu0 0.0
      %542 = vmatpush1.msra.mxu0 %v277
      %543 = vmatprep.subr.mxu0 0.0
      %544 = vmatpush1.msra.mxu0 %v278
      %545 = vmatprep.subr.mxu0 0.0
      %546 = vmatpush1.msra.mxu0 %v279
      %547 = vmatprep.subr.mxu0 0.0
      %548 = vmatpush1.msra.mxu0 %v280
      %549 = vmatprep.subr.mxu0 0.0
      %550 = vmatpush1.msra.mxu0 %v281
      %551 = vmatprep.subr.mxu0 0.0
      %552 = vmatpush1.msra.mxu0 %v282
      %553 = vmatprep.subr.mxu0 0.0
      %554 = vmatpush1.msra.mxu0 %v283
      %555 = vmatprep.subr.mxu0 0.0
      %556 = vmatpush1.msra.mxu0 %v284
      %557 = vmatprep.subr.mxu0 0.0
      %558 = vmatpush1.msra.mxu0 %v285
      %559 = vmatprep.subr.mxu0 0.0
      %560 = vmatpush1.msra.mxu0 %v286
      %561 = vmatprep.subr.mxu0 0.0
      %562 = vmatpush1.msra.mxu0 %v287
      %563 = vmatprep.subr.mxu0 0.0
      %564 = vmatpush1.msra.mxu0 %v288
      %565 = vmatprep.subr.mxu0 0.0
      %566 = vmatpush1.msra.mxu0 %v289
      %567 = vmatprep.mubr.f32.mxu0 %v350
      %568 = vmatmul.mubr.f32.gmra.mrb[0].mxu0 %v349
      %v569 = vpop.f32.mrb[0].mxu0
      %v570 = vadd.f32 %v500, %v569
      %v571 = vpop.f32.mrb[0].mxu0
      %572 = vdwg.mxu0
      %573 = vmatprep.subr.mxu0 0.0
      %574 = vmatpush1.msra.mxu0 %v290
      %575 = vmatprep.subr.mxu0 0.0
      %576 = vmatpush1.msra.mxu0 %v291
      %577 = vmatprep.subr.mxu0 0.0
      %578 = vmatpush1.msra.mxu0 %v292
      %579 = vmatprep.subr.mxu0 0.0
      %580 = vmatpush1.msra.mxu0 %v293
      %581 = vmatprep.subr.mxu0 0.0
      %582 = vmatpush1.msra.mxu0 %v294
      %583 = vmatprep.subr.mxu0 0.0
      %584 = vmatpush1.msra.mxu0 %v295
      %585 = vmatprep.subr.mxu0 0.0
      %586 = vmatpush1.msra.mxu0 %v296
      %587 = vmatprep.subr.mxu0 0.0
      %588 = vmatpush1.msra.mxu0 %v297
      %589 = vmatprep.subr.mxu0 0.0
      %590 = vmatpush1.msra.mxu0 %v298
      %591 = vmatprep.subr.mxu0 0.0
      %592 = vmatpush1.msra.mxu0 %v299
      %593 = vmatprep.subr.mxu0 0.0
      %594 = vmatpush1.msra.mxu0 %v300
      %595 = vmatprep.subr.mxu0 0.0
      %596 = vmatpush1.msra.mxu0 %v301
      %597 = vmatprep.subr.mxu0 0.0
      %598 = vmatpush1.msra.mxu0 %v302
      %599 = vmatprep.subr.mxu0 0.0
      %600 = vmatpush1.msra.mxu0 %v303
      %601 = vmatprep.subr.mxu0 0.0
      %602 = vmatpush1.msra.mxu0 %v304
      %603 = vmatprep.subr.mxu0 0.0
      %604 = vmatpush1.msra.mxu0 %v305
      %605 = vmatprep.subr.mxu0 0.0
      %606 = vmatpush1.msra.mxu0 %v306
      %607 = vmatprep.subr.mxu0 0.0
      %608 = vmatpush1.msra.mxu0 %v307
      %609 = vmatprep.subr.mxu0 0.0
      %610 = vmatpush1.msra.mxu0 %v308
      %611 = vmatprep.subr.mxu0 0.0
      %612 = vmatpush1.msra.mxu0 %v309
      %613 = vmatprep.subr.mxu0 0.0
      %614 = vmatpush1.msra.mxu0 %v310
      %615 = vmatprep.subr.mxu0 0.0
      %616 = vmatpush1.msra.mxu0 %v311
      %617 = vmatprep.subr.mxu0 0.0
      %618 = vmatpush1.msra.mxu0 %v312
      %619 = vmatprep.subr.mxu0 0.0
      %620 = vmatpush1.msra.mxu0 %v313
      %621 = vmatprep.subr.mxu0 0.0
      %622 = vmatpush1.msra.mxu0 %v314
      %623 = vmatprep.subr.mxu0 0.0
      %624 = vmatpush1.msra.mxu0 %v315
      %625 = vmatprep.subr.mxu0 0.0
      %626 = vmatpush1.msra.mxu0 %v316
      %627 = vmatprep.subr.mxu0 0.0
      %628 = vmatpush1.msra.mxu0 %v317
      %629 = vmatprep.subr.mxu0 0.0
      %630 = vmatpush1.msra.mxu0 %v318
      %631 = vmatprep.subr.mxu0 0.0
      %632 = vmatpush1.msra.mxu0 %v319
      %633 = vmatprep.subr.mxu0 0.0
      %634 = vmatpush1.msra.mxu0 %v320
      %635 = vmatprep.subr.mxu0 0.0
      %636 = vmatpush1.msra.mxu0 %v321
      %637 = vmatprep.mubr.f32.mxu0 %v355
      %638 = vmatmul.mubr.f32.gmra.mrb[0].mxu0 %v354
      %v639 = vpop.f32.mrb[0].mxu0
      %v640 = vadd.f32 %v570, %v639
      %v641 = vpop.f32.mrb[0].mxu0
      %642 = vdwg.mxu0
      %643 = vmatprep.subr.mxu0 0.0
      %644 = vmatpush1.msra.mxu0 %v322
      %645 = vmatprep.subr.mxu0 0.0
      %646 = vmatpush1.msra.mxu0 %v323
      %647 = vmatprep.subr.mxu0 0.0
      %648 = vmatpush1.msra.mxu0 %v324
      %649 = vmatprep.subr.mxu0 0.0
      %650 = vmatpush1.msra.mxu0 %v325
      %651 = vmatprep.subr.mxu0 0.0
      %652 = vmatpush1.msra.mxu0 %v326
      %653 = vmatprep.subr.mxu0 0.0
      %654 = vmatpush1.msra.mxu0 %v327
      %655 = vmatprep.subr.mxu0 0.0
      %656 = vmatpush1.msra.mxu0 %v328
      %657 = vmatprep.subr.mxu0 0.0
      %658 = vmatpush1.msra.mxu0 %v329
      %659 = vmatprep.subr.mxu0 0.0
      %660 = vmatpush1.msra.mxu0 %v330
      %661 = vmatprep.subr.mxu0 0.0
      %662 = vmatpush1.msra.mxu0 %v331
      %663 = vmatprep.subr.mxu0 0.0
      %664 = vmatpush1.msra.mxu0 %v332
      %665 = vmatprep.subr.mxu0 0.0
      %666 = vmatpush1.msra.mxu0 %v333
      %667 = vmatprep.subr.mxu0 0.0
      %668 = vmatpush1.msra.mxu0 %v334
      %669 = vmatprep.subr.mxu0 0.0
      %670 = vmatpush1.msra.mxu0 %v335
      %671 = vmatprep.subr.mxu0 0.0
      %672 = vmatpush1.msra.mxu0 %v336
      %673 = vmatprep.subr.mxu0 0.0
      %674 = vmatpush1.msra.mxu0 %v337
      %675 = vmatprep.subr.mxu0 0.0
      %676 = vmatpush1.msra.mxu0 0.0
      %677 = vmatprep.subr.mxu0 0.0
      %678 = vmatpush1.msra.mxu0 0.0
      %679 = vmatprep.subr.mxu0 0.0
      %680 = vmatpush1.msra.mxu0 0.0
      %681 = vmatprep.subr.mxu0 0.0
      %682 = vmatpush1.msra.mxu0 0.0
      %683 = vmatprep.subr.mxu0 0.0
      %684 = vmatpush1.msra.mxu0 0.0
      %685 = vmatprep.subr.mxu0 0.0
      %686 = vmatpush1.msra.mxu0 0.0
      %687 = vmatprep.subr.mxu0 0.0
      %688 = vmatpush1.msra.mxu0 0.0
      %689 = vmatprep.subr.mxu0 0.0
      %690 = vmatpush1.msra.mxu0 0.0
      %691 = vmatprep.subr.mxu0 0.0
      %692 = vmatpush1.msra.mxu0 0.0
      %693 = vmatprep.subr.mxu0 0.0
      %694 = vmatpush1.msra.mxu0 0.0
      %695 = vmatprep.subr.mxu0 0.0
      %696 = vmatpush1.msra.mxu0 0.0
      %697 = vmatprep.subr.mxu0 0.0
      %698 = vmatpush1.msra.mxu0 0.0
      %699 = vmatprep.subr.mxu0 0.0
      %700 = vmatpush1.msra.mxu0 0.0
      %701 = vmatprep.subr.mxu0 0.0
      %702 = vmatpush1.msra.mxu0 0.0
      %703 = vmatprep.subr.mxu0 0.0
      %704 = vmatpush1.msra.mxu0 0.0
      %705 = vmatprep.subr.mxu0 0.0
      %706 = vmatpush1.msra.mxu0 0.0
      %707 = vmatprep.mubr.f32.mxu0 0.0
      %708 = vmatmul.mubr.f32.gmra.mrb[0].mxu0 %v356
      %v709 = vpop.f32.mrb[0].mxu0
      %v710 = vadd.f32 %v640, %v709
      %v711 = vpop.f32.mrb[0].mxu0
      %712 = vdwg.mxu0
      %v713 = vmax.f32 %v710, 0.0
      %714 = vst [vmem:[%s192] sm:$0xf] %v713
      %s715 = sadd.s32 %s193, 1
      %s716 = smul.u32 %s715, 2
      %s717 = smul.u32 %s716, 16
      %s718 = scalar_lea.vmem %s183, %s717
      %v719 = vld [vmem:[%s718] sm:$0xf]
      %v720 = vld [vmem:[%s718 + $0x5] sm:$0xf]
      %v721 = vld [vmem:[%s718 + $0x1] sm:$0xf]
      %s722 = sadd.s32 %s716, 1
      %s723 = smul.u32 %s722, 16
      %s724 = scalar_lea.vmem %s183, %s723
      %v725 = vld [vmem:[%s724] sm:$0xf]
      %v726 = vld [vmem:[%s724 + $0x5] sm:$0xf]
      %v727 = vld [vmem:[%s724 + $0x1] sm:$0xf]
      %s728 = sadd.s32 %s716, 2
      %s729 = smul.u32 %s728, 16
      %s730 = scalar_lea.vmem %s183, %s729
      %v731 = vld [vmem:[%s730] sm:$0xf]
      %v732 = vld [vmem:[%s730 + $0x5] sm:$0xf]
      %v733 = vld [vmem:[%s730 + $0x1] sm:$0xf]
      %734 = vmatprep.subr.mxu0 0.0
      %735 = vmatpush1.msra.mxu0 %v194
      %736 = vmatprep.subr.mxu0 0.0
      %737 = vmatpush1.msra.mxu0 %v195
      %738 = vmatprep.subr.mxu0 0.0
      %739 = vmatpush1.msra.mxu0 %v196
      %740 = vmatprep.subr.mxu0 0.0
      %741 = vmatpush1.msra.mxu0 %v197
      %742 = vmatprep.subr.mxu0 0.0
      %743 = vmatpush1.msra.mxu0 %v198
      %744 = vmatprep.subr.mxu0 0.0
      %745 = vmatpush1.msra.mxu0 %v199
      %746 = vmatprep.subr.mxu0 0.0
      %747 = vmatpush1.msra.mxu0 %v200
      %748 = vmatprep.subr.mxu0 0.0
      %749 = vmatpush1.msra.mxu0 %v201
      %750 = vmatprep.subr.mxu0 0.0
      %751 = vmatpush1.msra.mxu0 %v202
      %752 = vmatprep.subr.mxu0 0.0
      %753 = vmatpush1.msra.mxu0 %v203
      %754 = vmatprep.subr.mxu0 0.0
      %755 = vmatpush1.msra.mxu0 %v204
      %756 = vmatprep.subr.mxu0 0.0
      %757 = vmatpush1.msra.mxu0 %v205
      %758 = vmatprep.subr.mxu0 0.0
      %759 = vmatpush1.msra.mxu0 %v206
      %760 = vmatprep.subr.mxu0 0.0
      %761 = vmatpush1.msra.mxu0 %v207
      %762 = vmatprep.subr.mxu0 0.0
      %763 = vmatpush1.msra.mxu0 %v208
      %764 = vmatprep.subr.mxu0 0.0
      %765 = vmatpush1.msra.mxu0 %v209
      %766 = vmatprep.subr.mxu0 0.0
      %767 = vmatpush1.msra.mxu0 %v210
      %768 = vmatprep.subr.mxu0 0.0
      %769 = vmatpush1.msra.mxu0 %v211
      %770 = vmatprep.subr.mxu0 0.0
      %771 = vmatpush1.msra.mxu0 %v212
      %772 = vmatprep.subr.mxu0 0.0
      %773 = vmatpush1.msra.mxu0 %v213
      %774 = vmatprep.subr.mxu0 0.0
      %775 = vmatpush1.msra.mxu0 %v214
      %776 = vmatprep.subr.mxu0 0.0
      %777 = vmatpush1.msra.mxu0 %v215
      %778 = vmatprep.subr.mxu0 0.0
      %779 = vmatpush1.msra.mxu0 %v216
      %780 = vmatprep.subr.mxu0 0.0
      %781 = vmatpush1.msra.mxu0 %v217
      %782 = vmatprep.subr.mxu0 0.0
      %783 = vmatpush1.msra.mxu0 %v218
      %784 = vmatprep.subr.mxu0 0.0
      %785 = vmatpush1.msra.mxu0 %v219
      %786 = vmatprep.subr.mxu0 0.0
      %787 = vmatpush1.msra.mxu0 %v220
      %788 = vmatprep.subr.mxu0 0.0
      %789 = vmatpush1.msra.mxu0 %v221
      %790 = vmatprep.subr.mxu0 0.0
      %791 = vmatpush1.msra.mxu0 %v222
      %792 = vmatprep.subr.mxu0 0.0
      %793 = vmatpush1.msra.mxu0 %v223
      %794 = vmatprep.subr.mxu0 0.0
      %795 = vmatpush1.msra.mxu0 %v224
      %796 = vmatprep.subr.mxu0 0.0
      %797 = vmatpush1.msra.mxu0 %v225
      %798 = vmatprep.mubr.f32.mxu0 %v720
      %799 = vmatmul.mubr.f32.gmra.mrb[0].mxu0 %v719
      %v800 = vpop.f32.mrb[0].mxu0
      %v801 = vadd.f32 %v361, %v800
      %v802 = vpop.f32.mrb[0].mxu0
      %803 = vdwg.mxu0
      %804 = vmatprep.subr.mxu0 0.0
      %805 = vmatpush1.msra.mxu0 %v226
      %806 = vmatprep.subr.mxu0 0.0
      %807 = vmatpush1.msra.mxu0 %v227
      %808 = vmatprep.subr.mxu0 0.0
      %809 = vmatpush1.msra.mxu0 %v228
      %810 = vmatprep.subr.mxu0 0.0
      %811 = vmatpush1.msra.mxu0 %v229
      %812 = vmatprep.subr.mxu0 0.0
      %813 = vmatpush1.msra.mxu0 %v230
      %814 = vmatprep.subr.mxu0 0.0
      %815 = vmatpush1.msra.mxu0 %v231
      %816 = vmatprep.subr.mxu0 0.0
      %817 = vmatpush1.msra.mxu0 %v232
      %818 = vmatprep.subr.mxu0 0.0
      %819 = vmatpush1.msra.mxu0 %v233
      %820 = vmatprep.subr.mxu0 0.0
      %821 = vmatpush1.msra.mxu0 %v234
      %822 = vmatprep.subr.mxu0 0.0
      %823 = vmatpush1.msra.mxu0 %v235
      %824 = vmatprep.subr.mxu0 0.0
      %825 = vmatpush1.msra.mxu0 %v236
      %826 = vmatprep.subr.mxu0 0.0
      %827 = vmatpush1.msra.mxu0 %v237
      %828 = vmatprep.subr.mxu0 0.0
      %829 = vmatpush1.msra.mxu0 %v238
      %830 = vmatprep.subr.mxu0 0.0
      %831 = vmatpush1.msra.mxu0 %v239
      %832 = vmatprep.subr.mxu0 0.0
      %833 = vmatpush1.msra.mxu0 %v240
      %834 = vmatprep.subr.mxu0 0.0
      %835 = vmatpush1.msra.mxu0 %v241
      %836 = vmatprep.subr.mxu0 0.0
      %837 = vmatpush1.msra.mxu0 %v242
      %838 = vmatprep.subr.mxu0 0.0
      %839 = vmatpush1.msra.mxu0 %v243
      %840 = vmatprep.subr.mxu0 0.0
      %841 = vmatpush1.msra.mxu0 %v244
      %842 = vmatprep.subr.mxu0 0.0
      %843 = vmatpush1.msra.mxu0 %v245
      %844 = vmatprep.subr.mxu0 0.0
      %845 = vmatpush1.msra.mxu0 %v246
      %846 = vmatprep.subr.mxu0 0.0
      %847 = vmatpush1.msra.mxu0 %v247
      %848 = vmatprep.subr.mxu0 0.0
      %849 = vmatpush1.msra.mxu0 %v248
      %850 = vmatprep.subr.mxu0 0.0
      %851 = vmatpush1.msra.mxu0 %v249
      %852 = vmatprep.subr.mxu0 0.0
      %853 = vmatpush1.msra.mxu0 %v250
      %854 = vmatprep.subr.mxu0 0.0
      %855 = vmatpush1.msra.mxu0 %v251
      %856 = vmatprep.subr.mxu0 0.0
      %857 = vmatpush1.msra.mxu0 %v252
      %858 = vmatprep.subr.mxu0 0.0
      %859 = vmatpush1.msra.mxu0 %v253
      %860 = vmatprep.subr.mxu0 0.0
      %861 = vmatpush1.msra.mxu0 %v254
      %862 = vmatprep.subr.mxu0 0.0
      %863 = vmatpush1.msra.mxu0 %v255
      %864 = vmatprep.subr.mxu0 0.0
      %865 = vmatpush1.msra.mxu0 %v256
      %866 = vmatprep.subr.mxu0 0.0
      %867 = vmatpush1.msra.mxu0 %v257
      %868 = vmatprep.mubr.f32.mxu0 %v725
      %869 = vmatmul.mubr.f32.gmra.mrb[0].mxu0 %v721
      %v870 = vpop.f32.mrb[0].mxu0
      %v871 = vadd.f32 %v801, %v870
      %v872 = vpop.f32.mrb[0].mxu0
      %873 = vdwg.mxu0
      %874 = vmatprep.subr.mxu0 0.0
      %875 = vmatpush1.msra.mxu0 %v258
      %876 = vmatprep.subr.mxu0 0.0
      %877 = vmatpush1.msra.mxu0 %v259
      %878 = vmatprep.subr.mxu0 0.0
      %879 = vmatpush1.msra.mxu0 %v260
      %880 = vmatprep.subr.mxu0 0.0
      %881 = vmatpush1.msra.mxu0 %v261
      %882 = vmatprep.subr.mxu0 0.0
      %883 = vmatpush1.msra.mxu0 %v262
      %884 = vmatprep.subr.mxu0 0.0
      %885 = vmatpush1.msra.mxu0 %v263
      %886 = vmatprep.subr.mxu0 0.0
      %887 = vmatpush1.msra.mxu0 %v264
      %888 = vmatprep.subr.mxu0 0.0
      %889 = vmatpush1.msra.mxu0 %v265
      %890 = vmatprep.subr.mxu0 0.0
      %891 = vmatpush1.msra.mxu0 %v266
      %892 = vmatprep.subr.mxu0 0.0
      %893 = vmatpush1.msra.mxu0 %v267
      %894 = vmatprep.subr.mxu0 0.0
      %895 = vmatpush1.msra.mxu0 %v268
      %896 = vmatprep.subr.mxu0 0.0
      %897 = vmatpush1.msra.mxu0 %v269
      %898 = vmatprep.subr.mxu0 0.0
      %899 = vmatpush1.msra.mxu0 %v270
      %900 = vmatprep.subr.mxu0 0.0
      %901 = vmatpush1.msra.mxu0 %v271
      %902 = vmatprep.subr.mxu0 0.0
      %903 = vmatpush1.msra.mxu0 %v272
      %904 = vmatprep.subr.mxu0 0.0
      %905 = vmatpush1.msra.mxu0 %v273
      %906 = vmatprep.subr.mxu0 0.0
      %907 = vmatpush1.msra.mxu0 %v274
      %908 = vmatprep.subr.mxu0 0.0
      %909 = vmatpush1.msra.mxu0 %v275
      %910 = vmatprep.subr.mxu0 0.0
      %911 = vmatpush1.msra.mxu0 %v276
      %912 = vmatprep.subr.mxu0 0.0
      %913 = vmatpush1.msra.mxu0 %v277
      %914 = vmatprep.subr.mxu0 0.0
      %915 = vmatpush1.msra.mxu0 %v278
      %916 = vmatprep.subr.mxu0 0.0
      %917 = vmatpush1.msra.mxu0 %v279
      %918 = vmatprep.subr.mxu0 0.0
      %919 = vmatpush1.msra.mxu0 %v280
      %920 = vmatprep.subr.mxu0 0.0
      %921 = vmatpush1.msra.mxu0 %v281
      %922 = vmatprep.subr.mxu0 0.0
      %923 = vmatpush1.msra.mxu0 %v282
      %924 = vmatprep.subr.mxu0 0.0
      %925 = vmatpush1.msra.mxu0 %v283
      %926 = vmatprep.subr.mxu0 0.0
      %927 = vmatpush1.msra.mxu0 %v284
      %928 = vmatprep.subr.mxu0 0.0
      %929 = vmatpush1.msra.mxu0 %v285
      %930 = vmatprep.subr.mxu0 0.0
      %931 = vmatpush1.msra.mxu0 %v286
      %932 = vmatprep.subr.mxu0 0.0
      %933 = vmatpush1.msra.mxu0 %v287
      %934 = vmatprep.subr.mxu0 0.0
      %935 = vmatpush1.msra.mxu0 %v288
      %936 = vmatprep.subr.mxu0 0.0
      %937 = vmatpush1.msra.mxu0 %v289
      %938 = vmatprep.mubr.f32.mxu0 %v727
      %939 = vmatmul.mubr.f32.gmra.mrb[0].mxu0 %v726
      %v940 = vpop.f32.mrb[0].mxu0
      %v941 = vadd.f32 %v871, %v940
      %v942 = vpop.f32.mrb[0].mxu0
      %943 = vdwg.mxu0
      %944 = vmatprep.subr.mxu0 0.0
      %945 = vmatpush1.msra.mxu0 %v290
      %946 = vmatprep.subr.mxu0 0.0
      %947 = vmatpush1.msra.mxu0 %v291
      %948 = vmatprep.subr.mxu0 0.0
      %949 = vmatpush1.msra.mxu0 %v292
      %950 = vmatprep.subr.mxu0 0.0
      %951 = vmatpush1.msra.mxu0 %v293
      %952 = vmatprep.subr.mxu0 0.0
      %953 = vmatpush1.msra.mxu0 %v294
      %954 = vmatprep.subr.mxu0 0.0
      %955 = vmatpush1.msra.mxu0 %v295
      %956 = vmatprep.subr.mxu0 0.0
      %957 = vmatpush1.msra.mxu0 %v296
      %958 = vmatprep.subr.mxu0 0.0
      %959 = vmatpush1.msra.mxu0 %v297
      %960 = vmatprep.subr.mxu0 0.0
      %961 = vmatpush1.msra.mxu0 %v298
      %962 = vmatprep.subr.mxu0 0.0
      %963 = vmatpush1.msra.mxu0 %v299
      %964 = vmatprep.subr.mxu0 0.0
      %965 = vmatpush1.msra.mxu0 %v300
      %966 = vmatprep.subr.mxu0 0.0
      %967 = vmatpush1.msra.mxu0 %v301
      %968 = vmatprep.subr.mxu0 0.0
      %969 = vmatpush1.msra.mxu0 %v302
      %970 = vmatprep.subr.mxu0 0.0
      %971 = vmatpush1.msra.mxu0 %v303
      %972 = vmatprep.subr.mxu0 0.0
      %973 = vmatpush1.msra.mxu0 %v304
      %974 = vmatprep.subr.mxu0 0.0
      %975 = vmatpush1.msra.mxu0 %v305
      %976 = vmatprep.subr.mxu0 0.0
      %977 = vmatpush1.msra.mxu0 %v306
      %978 = vmatprep.subr.mxu0 0.0
      %979 = vmatpush1.msra.mxu0 %v307
      %980 = vmatprep.subr.mxu0 0.0
      %981 = vmatpush1.msra.mxu0 %v308
      %982 = vmatprep.subr.mxu0 0.0
      %983 = vmatpush1.msra.mxu0 %v309
      %984 = vmatprep.subr.mxu0 0.0
      %985 = vmatpush1.msra.mxu0 %v310
      %986 = vmatprep.subr.mxu0 0.0
      %987 = vmatpush1.msra.mxu0 %v311
      %988 = vmatprep.subr.mxu0 0.0
      %989 = vmatpush1.msra.mxu0 %v312
      %990 = vmatprep.subr.mxu0 0.0
      %991 = vmatpush1.msra.mxu0 %v313
      %992 = vmatprep.subr.mxu0 0.0
      %993 = vmatpush1.msra.mxu0 %v314
      %994 = vmatprep.subr.mxu0 0.0
      %995 = vmatpush1.msra.mxu0 %v315
      %996 = vmatprep.subr.mxu0 0.0
      %997 = vmatpush1.msra.mxu0 %v316
      %998 = vmatprep.subr.mxu0 0.0
      %999 = vmatpush1.msra.mxu0 %v317
      %1000 = vmatprep.subr.mxu0 0.0
      %1001 = vmatpush1.msra.mxu0 %v318
      %1002 = vmatprep.subr.mxu0 0.0
      %1003 = vmatpush1.msra.mxu0 %v319
      %1004 = vmatprep.subr.mxu0 0.0
      %1005 = vmatpush1.msra.mxu0 %v320
      %1006 = vmatprep.subr.mxu0 0.0
      %1007 = vmatpush1.msra.mxu0 %v321
      %1008 = vmatprep.mubr.f32.mxu0 %v732
      %1009 = vmatmul.mubr.f32.gmra.mrb[0].mxu0 %v731
      %v1010 = vpop.f32.mrb[0].mxu0
      %v1011 = vadd.f32 %v941, %v1010
      %v1012 = vpop.f32.mrb[0].mxu0
      %1013 = vdwg.mxu0
      %1014 = vmatprep.subr.mxu0 0.0
      %1015 = vmatpush1.msra.mxu0 %v322
      %1016 = vmatprep.subr.mxu0 0.0
      %1017 = vmatpush1.msra.mxu0 %v323
      %1018 = vmatprep.subr.mxu0 0.0
      %1019 = vmatpush1.msra.mxu0 %v324
      %1020 = vmatprep.subr.mxu0 0.0
      %1021 = vmatpush1.msra.mxu0 %v325
      %1022 = vmatprep.subr.mxu0 0.0
      %1023 = vmatpush1.msra.mxu0 %v326
      %1024 = vmatprep.subr.mxu0 0.0
      %1025 = vmatpush1.msra.mxu0 %v327
      %1026 = vmatprep.subr.mxu0 0.0
      %1027 = vmatpush1.msra.mxu0 %v328
      %1028 = vmatprep.subr.mxu0 0.0
      %1029 = vmatpush1.msra.mxu0 %v329
      %1030 = vmatprep.subr.mxu0 0.0
      %1031 = vmatpush1.msra.mxu0 %v330
      %1032 = vmatprep.subr.mxu0 0.0
      %1033 = vmatpush1.msra.mxu0 %v331
      %1034 = vmatprep.subr.mxu0 0.0
      %1035 = vmatpush1.msra.mxu0 %v332
      %1036 = vmatprep.subr.mxu0 0.0
      %1037 = vmatpush1.msra.mxu0 %v333
      %1038 = vmatprep.subr.mxu0 0.0
      %1039 = vmatpush1.msra.mxu0 %v334
      %1040 = vmatprep.subr.mxu0 0.0
      %1041 = vmatpush1.msra.mxu0 %v335
      %1042 = vmatprep.subr.mxu0 0.0
      %1043 = vmatpush1.msra.mxu0 %v336
      %1044 = vmatprep.subr.mxu0 0.0
      %1045 = vmatpush1.msra.mxu0 %v337
      %1046 = vmatprep.subr.mxu0 0.0
      %1047 = vmatpush1.msra.mxu0 0.0
      %1048 = vmatprep.subr.mxu0 0.0
      %1049 = vmatpush1.msra.mxu0 0.0
      %1050 = vmatprep.subr.mxu0 0.0
      %1051 = vmatpush1.msra.mxu0 0.0
      %1052 = vmatprep.subr.mxu0 0.0
      %1053 = vmatpush1.msra.mxu0 0.0
      %1054 = vmatprep.subr.mxu0 0.0
      %1055 = vmatpush1.msra.mxu0 0.0
      %1056 = vmatprep.subr.mxu0 0.0
      %1057 = vmatpush1.msra.mxu0 0.0
      %1058 = vmatprep.subr.mxu0 0.0
      %1059 = vmatpush1.msra.mxu0 0.0
      %1060 = vmatprep.subr.mxu0 0.0
      %1061 = vmatpush1.msra.mxu0 0.0
      %1062 = vmatprep.subr.mxu0 0.0
      %1063 = vmatpush1.msra.mxu0 0.0
      %1064 = vmatprep.subr.mxu0 0.0
      %1065 = vmatpush1.msra.mxu0 0.0
      %1066 = vmatprep.subr.mxu0 0.0
      %1067 = vmatpush1.msra.mxu0 0.0
      %1068 = vmatprep.subr.mxu0 0.0
      %1069 = vmatpush1.msra.mxu0 0.0
      %1070 = vmatprep.subr.mxu0 0.0
      %1071 = vmatpush1.msra.mxu0 0.0
      %1072 = vmatprep.subr.mxu0 0.0
      %1073 = vmatpush1.msra.mxu0 0.0
      %1074 = vmatprep.subr.mxu0 0.0
      %1075 = vmatpush1.msra.mxu0 0.0
      %1076 = vmatprep.subr.mxu0 0.0
      %1077 = vmatpush1.msra.mxu0 0.0
      %1078 = vmatprep.mubr.f32.mxu0 0.0
      %1079 = vmatmul.mubr.f32.gmra.mrb[0].mxu0 %v733
      %v1080 = vpop.f32.mrb[0].mxu0
      %v1081 = vadd.f32 %v1011, %v1080
      %v1082 = vpop.f32.mrb[0].mxu0
      %1083 = vdwg.mxu0
      %v1084 = vmax.f32 %v1081, 0.0
      %1085 = vst [vmem:[%s192 + $0x4] sm:$0xf] %v1084
      %s1086 = sadd.s32 %s193, 2
      %s1087 = smul.u32 %s1086, 2
      %s1088 = smul.u32 %s1087, 16
      %s1089 = scalar_lea.vmem %s183, %s1088
      %v1090 = vld [vmem:[%s1089] sm:$0xf]
      %v1091 = vld [vmem:[%s1089 + $0x5] sm:$0xf]
      %v1092 = vld [vmem:[%s1089 + $0x1] sm:$0xf]
      %s1093 = sadd.s32 %s1087, 1
      %s1094 = smul.u32 %s1093, 16
      %s1095 = scalar_lea.vmem %s183, %s1094
      %v1096 = vld [vmem:[%s1095] sm:$0xf]
      %v1097 = vld [vmem:[%s1095 + $0x5] sm:$0xf]
      %v1098 = vld [vmem:[%s1095 + $0x1] sm:$0xf]
      %s1099 = sadd.s32 %s1087, 2
      %s1100 = smul.u32 %s1099, 16
      %s1101 = scalar_lea.vmem %s183, %s1100
      %v1102 = vld [vmem:[%s1101] sm:$0xf]
      %v1103 = vld [vmem:[%s1101 + $0x5] sm:$0xf]
      %v1104 = vld [vmem:[%s1101 + $0x1] sm:$0xf]
      %1105 = vmatprep.subr.mxu0 0.0
      %1106 = vmatpush1.msra.mxu0 %v194
      %1107 = vmatprep.subr.mxu0 0.0
      %1108 = vmatpush1.msra.mxu0 %v195
      %1109 = vmatprep.subr.mxu0 0.0
      %1110 = vmatpush1.msra.mxu0 %v196
      %1111 = vmatprep.subr.mxu0 0.0
      %1112 = vmatpush1.msra.mxu0 %v197
      %1113 = vmatprep.subr.mxu0 0.0
      %1114 = vmatpush1.msra.mxu0 %v198
      %1115 = vmatprep.subr.mxu0 0.0
      %1116 = vmatpush1.msra.mxu0 %v199
      %1117 = vmatprep.subr.mxu0 0.0
      %1118 = vmatpush1.msra.mxu0 %v200
      %1119 = vmatprep.subr.mxu0 0.0
      %1120 = vmatpush1.msra.mxu0 %v201
      %1121 = vmatprep.subr.mxu0 0.0
      %1122 = vmatpush1.msra.mxu0 %v202
      %1123 = vmatprep.subr.mxu0 0.0
      %1124 = vmatpush1.msra.mxu0 %v203
      %1125 = vmatprep.subr.mxu0 0.0
      %1126 = vmatpush1.msra.mxu0 %v204
      %1127 = vmatprep.subr.mxu0 0.0
      %1128 = vmatpush1.msra.mxu0 %v205
      %1129 = vmatprep.subr.mxu0 0.0
      %1130 = vmatpush1.msra.mxu0 %v206
      %1131 = vmatprep.subr.mxu0 0.0
      %1132 = vmatpush1.msra.mxu0 %v207
      %1133 = vmatprep.subr.mxu0 0.0
      %1134 = vmatpush1.msra.mxu0 %v208
      %1135 = vmatprep.subr.mxu0 0.0
      %1136 = vmatpush1.msra.mxu0 %v209
      %1137 = vmatprep.subr.mxu0 0.0
      %1138 = vmatpush1.msra.mxu0 %v210
      %1139 = vmatprep.subr.mxu0 0.0
      %1140 = vmatpush1.msra.mxu0 %v211
      %1141 = vmatprep.subr.mxu0 0.0
      %1142 = vmatpush1.msra.mxu0 %v212
      %1143 = vmatprep.subr.mxu0 0.0
      %1144 = vmatpush1.msra.mxu0 %v213
      %1145 = vmatprep.subr.mxu0 0.0
      %1146 = vmatpush1.msra.mxu0 %v214
      %1147 = vmatprep.subr.mxu0 0.0
      %1148 = vmatpush1.msra.mxu0 %v215
      %1149 = vmatprep.subr.mxu0 0.0
      %1150 = vmatpush1.msra.mxu0 %v216
      %1151 = vmatprep.subr.mxu0 0.0
      %1152 = vmatpush1.msra.mxu0 %v217
      %1153 = vmatprep.subr.mxu0 0.0
      %1154 = vmatpush1.msra.mxu0 %v218
      %1155 = vmatprep.subr.mxu0 0.0
      %1156 = vmatpush1.msra.mxu0 %v219
      %1157 = vmatprep.subr.mxu0 0.0
      %1158 = vmatpush1.msra.mxu0 %v220
      %1159 = vmatprep.subr.mxu0 0.0
      %1160 = vmatpush1.msra.mxu0 %v221
      %1161 = vmatprep.subr.mxu0 0.0
      %1162 = vmatpush1.msra.mxu0 %v222
      %1163 = vmatprep.subr.mxu0 0.0
      %1164 = vmatpush1.msra.mxu0 %v223
      %1165 = vmatprep.subr.mxu0 0.0
      %1166 = vmatpush1.msra.mxu0 %v224
      %1167 = vmatprep.subr.mxu0 0.0
      %1168 = vmatpush1.msra.mxu0 %v225
      %1169 = vmatprep.mubr.f32.mxu0 %v1091
      %1170 = vmatmul.mubr.f32.gmra.mrb[0].mxu0 %v1090
      %v1171 = vpop.f32.mrb[0].mxu0
      %v1172 = vadd.f32 %v361, %v1171
      %v1173 = vpop.f32.mrb[0].mxu0
      %1174 = vdwg.mxu0
      %1175 = vmatprep.subr.mxu0 0.0
      %1176 = vmatpush1.msra.mxu0 %v226
      %1177 = vmatprep.subr.mxu0 0.0
      %1178 = vmatpush1.msra.mxu0 %v227
      %1179 = vmatprep.subr.mxu0 0.0
      %1180 = vmatpush1.msra.mxu0 %v228
      %1181 = vmatprep.subr.mxu0 0.0
      %1182 = vmatpush1.msra.mxu0 %v229
      %1183 = vmatprep.subr.mxu0 0.0
      %1184 = vmatpush1.msra.mxu0 %v230
      %1185 = vmatprep.subr.mxu0 0.0
      %1186 = vmatpush1.msra.mxu0 %v231
      %1187 = vmatprep.subr.mxu0 0.0
      %1188 = vmatpush1.msra.mxu0 %v232
      %1189 = vmatprep.subr.mxu0 0.0
      %1190 = vmatpush1.msra.mxu0 %v233
      %1191 = vmatprep.subr.mxu0 0.0
      %1192 = vmatpush1.msra.mxu0 %v234
      %1193 = vmatprep.subr.mxu0 0.0
      %1194 = vmatpush1.msra.mxu0 %v235
      %1195 = vmatprep.subr.mxu0 0.0
      %1196 = vmatpush1.msra.mxu0 %v236
      %1197 = vmatprep.subr.mxu0 0.0
      %1198 = vmatpush1.msra.mxu0 %v237
      %1199 = vmatprep.subr.mxu0 0.0
      %1200 = vmatpush1.msra.mxu0 %v238
      %1201 = vmatprep.subr.mxu0 0.0
      %1202 = vmatpush1.msra.mxu0 %v239
      %1203 = vmatprep.subr.mxu0 0.0
      %1204 = vmatpush1.msra.mxu0 %v240
      %1205 = vmatprep.subr.mxu0 0.0
      %1206 = vmatpush1.msra.mxu0 %v241
      %1207 = vmatprep.subr.mxu0 0.0
      %1208 = vmatpush1.msra.mxu0 %v242
      %1209 = vmatprep.subr.mxu0 0.0
      %1210 = vmatpush1.msra.mxu0 %v243
      %1211 = vmatprep.subr.mxu0 0.0
      %1212 = vmatpush1.msra.mxu0 %v244
      %1213 = vmatprep.subr.mxu0 0.0
      %1214 = vmatpush1.msra.mxu0 %v245
      %1215 = vmatprep.subr.mxu0 0.0
      %1216 = vmatpush1.msra.mxu0 %v246
      %1217 = vmatprep.subr.mxu0 0.0
      %1218 = vmatpush1.msra.mxu0 %v247
      %1219 = vmatprep.subr.mxu0 0.0
      %1220 = vmatpush1.msra.mxu0 %v248
      %1221 = vmatprep.subr.mxu0 0.0
      %1222 = vmatpush1.msra.mxu0 %v249
      %1223 = vmatprep.subr.mxu0 0.0
      %1224 = vmatpush1.msra.mxu0 %v250
      %1225 = vmatprep.subr.mxu0 0.0
      %1226 = vmatpush1.msra.mxu0 %v251
      %1227 = vmatprep.subr.mxu0 0.0
      %1228 = vmatpush1.msra.mxu0 %v252
      %1229 = vmatprep.subr.mxu0 0.0
      %1230 = vmatpush1.msra.mxu0 %v253
      %1231 = vmatprep.subr.mxu0 0.0
      %1232 = vmatpush1.msra.mxu0 %v254
      %1233 = vmatprep.subr.mxu0 0.0
      %1234 = vmatpush1.msra.mxu0 %v255
      %1235 = vmatprep.subr.mxu0 0.0
      %1236 = vmatpush1.msra.mxu0 %v256
      %1237 = vmatprep.subr.mxu0 0.0
      %1238 = vmatpush1.msra.mxu0 %v257
      %1239 = vmatprep.mubr.f32.mxu0 %v1096
      %1240 = vmatmul.mubr.f32.gmra.mrb[0].mxu0 %v1092
      %v1241 = vpop.f32.mrb[0].mxu0
      %v1242 = vadd.f32 %v1172, %v1241
      %v1243 = vpop.f32.mrb[0].mxu0
      %1244 = vdwg.mxu0
      %1245 = vmatprep.subr.mxu0 0.0
      %1246 = vmatpush1.msra.mxu0 %v258
      %1247 = vmatprep.subr.mxu0 0.0
      %1248 = vmatpush1.msra.mxu0 %v259
      %1249 = vmatprep.subr.mxu0 0.0
      %1250 = vmatpush1.msra.mxu0 %v260
      %1251 = vmatprep.subr.mxu0 0.0
      %1252 = vmatpush1.msra.mxu0 %v261
      %1253 = vmatprep.subr.mxu0 0.0
      %1254 = vmatpush1.msra.mxu0 %v262
      %1255 = vmatprep.subr.mxu0 0.0
      %1256 = vmatpush1.msra.mxu0 %v263
      %1257 = vmatprep.subr.mxu0 0.0
      %1258 = vmatpush1.msra.mxu0 %v264
      %1259 = vmatprep.subr.mxu0 0.0
      %1260 = vmatpush1.msra.mxu0 %v265
      %1261 = vmatprep.subr.mxu0 0.0
      %1262 = vmatpush1.msra.mxu0 %v266
      %1263 = vmatprep.subr.mxu0 0.0
      %1264 = vmatpush1.msra.mxu0 %v267
      %1265 = vmatprep.subr.mxu0 0.0
      %1266 = vmatpush1.msra.mxu0 %v268
      %1267 = vmatprep.subr.mxu0 0.0
      %1268 = vmatpush1.msra.mxu0 %v269
      %1269 = vmatprep.subr.mxu0 0.0
      %1270 = vmatpush1.msra.mxu0 %v270
      %1271 = vmatprep.subr.mxu0 0.0
      %1272 = vmatpush1.msra.mxu0 %v271
      %1273 = vmatprep.subr.mxu0 0.0
      %1274 = vmatpush1.msra.mxu0 %v272
      %1275 = vmatprep.subr.mxu0 0.0
      %1276 = vmatpush1.msra.mxu0 %v273
      %1277 = vmatprep.subr.mxu0 0.0
      %1278 = vmatpush1.msra.mxu0 %v274
      %1279 = vmatprep.subr.mxu0 0.0
      %1280 = vmatpush1.msra.mxu0 %v275
      %1281 = vmatprep.subr.mxu0 0.0
      %1282 = vmatpush1.msra.mxu0 %v276
      %1283 = vmatprep.subr.mxu0 0.0
      %1284 = vmatpush1.msra.mxu0 %v277
      %1285 = vmatprep.subr.mxu0 0.0
      %1286 = vmatpush1.msra.mxu0 %v278
      %1287 = vmatprep.subr.mxu0 0.0
      %1288 = vmatpush1.msra.mxu0 %v279
      %1289 = vmatprep.subr.mxu0 0.0
      %1290 = vmatpush1.msra.mxu0 %v280
      %1291 = vmatprep.subr.mxu0 0.0
      %1292 = vmatpush1.msra.mxu0 %v281
      %1293 = vmatprep.subr.mxu0 0.0
      %1294 = vmatpush1.msra.mxu0 %v282
      %1295 = vmatprep.subr.mxu0 0.0
      %1296 = vmatpush1.msra.mxu0 %v283
      %1297 = vmatprep.subr.mxu0 0.0
      %1298 = vmatpush1.msra.mxu0 %v284
      %1299 = vmatprep.subr.mxu0 0.0
      %1300 = vmatpush1.msra.mxu0 %v285
      %1301 = vmatprep.subr.mxu0 0.0
      %1302 = vmatpush1.msra.mxu0 %v286
      %1303 = vmatprep.subr.mxu0 0.0
      %1304 = vmatpush1.msra.mxu0 %v287
      %1305 = vmatprep.subr.mxu0 0.0
      %1306 = vmatpush1.msra.mxu0 %v288
      %1307 = vmatprep.subr.mxu0 0.0
      %1308 = vmatpush1.msra.mxu0 %v289
      %1309 = vmatprep.mubr.f32.mxu0 %v1098
      %1310 = vmatmul.mubr.f32.gmra.mrb[0].mxu0 %v1097
      %v1311 = vpop.f32.mrb[0].mxu0
      %v1312 = vadd.f32 %v1242, %v1311
      %v1313 = vpop.f32.mrb[0].mxu0
      %1314 = vdwg.mxu0
      %1315 = vmatprep.subr.mxu0 0.0
      %1316 = vmatpush1.msra.mxu0 %v290
      %1317 = vmatprep.subr.mxu0 0.0
      %1318 = vmatpush1.msra.mxu0 %v291
      %1319 = vmatprep.subr.mxu0 0.0
      %1320 = vmatpush1.msra.mxu0 %v292
      %1321 = vmatprep.subr.mxu0 0.0
      %1322 = vmatpush1.msra.mxu0 %v293
      %1323 = vmatprep.subr.mxu0 0.0
      %1324 = vmatpush1.msra.mxu0 %v294
      %1325 = vmatprep.subr.mxu0 0.0
      %1326 = vmatpush1.msra.mxu0 %v295
      %1327 = vmatprep.subr.mxu0 0.0
      %1328 = vmatpush1.msra.mxu0 %v296
      %1329 = vmatprep.subr.mxu0 0.0
      %1330 = vmatpush1.msra.mxu0 %v297
      %1331 = vmatprep.subr.mxu0 0.0
      %1332 = vmatpush1.msra.mxu0 %v298
      %1333 = vmatprep.subr.mxu0 0.0
      %1334 = vmatpush1.msra.mxu0 %v299
      %1335 = vmatprep.subr.mxu0 0.0
      %1336 = vmatpush1.msra.mxu0 %v300
      %1337 = vmatprep.subr.mxu0 0.0
      %1338 = vmatpush1.msra.mxu0 %v301
      %1339 = vmatprep.subr.mxu0 0.0
      %1340 = vmatpush1.msra.mxu0 %v302
      %1341 = vmatprep.subr.mxu0 0.0
      %1342 = vmatpush1.msra.mxu0 %v303
      %1343 = vmatprep.subr.mxu0 0.0
      %1344 = vmatpush1.msra.mxu0 %v304
      %1345 = vmatprep.subr.mxu0 0.0
      %1346 = vmatpush1.msra.mxu0 %v305
      %1347 = vmatprep.subr.mxu0 0.0
      %1348 = vmatpush1.msra.mxu0 %v306
      %1349 = vmatprep.subr.mxu0 0.0
      %1350 = vmatpush1.msra.mxu0 %v307
      %1351 = vmatprep.subr.mxu0 0.0
      %1352 = vmatpush1.msra.mxu0 %v308
      %1353 = vmatprep.subr.mxu0 0.0
      %1354 = vmatpush1.msra.mxu0 %v309
      %1355 = vmatprep.subr.mxu0 0.0
      %1356 = vmatpush1.msra.mxu0 %v310
      %1357 = vmatprep.subr.mxu0 0.0
      %1358 = vmatpush1.msra.mxu0 %v311
      %1359 = vmatprep.subr.mxu0 0.0
      %1360 = vmatpush1.msra.mxu0 %v312
      %1361 = vmatprep.subr.mxu0 0.0
      %1362 = vmatpush1.msra.mxu0 %v313
      %1363 = vmatprep.subr.mxu0 0.0
      %1364 = vmatpush1.msra.mxu0 %v314
      %1365 = vmatprep.subr.mxu0 0.0
      %1366 = vmatpush1.msra.mxu0 %v315
      %1367 = vmatprep.subr.mxu0 0.0
      %1368 = vmatpush1.msra.mxu0 %v316
      %1369 = vmatprep.subr.mxu0 0.0
      %1370 = vmatpush1.msra.mxu0 %v317
      %1371 = vmatprep.subr.mxu0 0.0
      %1372 = vmatpush1.msra.mxu0 %v318
      %1373 = vmatprep.subr.mxu0 0.0
      %1374 = vmatpush1.msra.mxu0 %v319
      %1375 = vmatprep.subr.mxu0 0.0
      %1376 = vmatpush1.msra.mxu0 %v320
      %1377 = vmatprep.subr.mxu0 0.0
      %1378 = vmatpush1.msra.mxu0 %v321
      %1379 = vmatprep.mubr.f32.mxu0 %v1103
      %1380 = vmatmul.mubr.f32.gmra.mrb[0].mxu0 %v1102
      %v1381 = vpop.f32.mrb[0].mxu0
      %v1382 = vadd.f32 %v1312, %v1381
      %v1383 = vpop.f32.mrb[0].mxu0
      %1384 = vdwg.mxu0
      %1385 = vmatprep.subr.mxu0 0.0
      %1386 = vmatpush1.msra.mxu0 %v322
      %1387 = vmatprep.subr.mxu0 0.0
      %1388 = vmatpush1.msra.mxu0 %v323
      %1389 = vmatprep.subr.mxu0 0.0
      %1390 = vmatpush1.msra.mxu0 %v324
      %1391 = vmatprep.subr.mxu0 0.0
      %1392 = vmatpush1.msra.mxu0 %v325
      %1393 = vmatprep.subr.mxu0 0.0
      %1394 = vmatpush1.msra.mxu0 %v326
      %1395 = vmatprep.subr.mxu0 0.0
      %1396 = vmatpush1.msra.mxu0 %v327
      %1397 = vmatprep.subr.mxu0 0.0
      %1398 = vmatpush1.msra.mxu0 %v328
      %1399 = vmatprep.subr.mxu0 0.0
      %1400 = vmatpush1.msra.mxu0 %v329
      %1401 = vmatprep.subr.mxu0 0.0
      %1402 = vmatpush1.msra.mxu0 %v330
      %1403 = vmatprep.subr.mxu0 0.0
      %1404 = vmatpush1.msra.mxu0 %v331
      %1405 = vmatprep.subr.mxu0 0.0
      %1406 = vmatpush1.msra.mxu0 %v332
      %1407 = vmatprep.subr.mxu0 0.0
      %1408 = vmatpush1.msra.mxu0 %v333
      %1409 = vmatprep.subr.mxu0 0.0
      %1410 = vmatpush1.msra.mxu0 %v334
      %1411 = vmatprep.subr.mxu0 0.0
      %1412 = vmatpush1.msra.mxu0 %v335
      %1413 = vmatprep.subr.mxu0 0.0
      %1414 = vmatpush1.msra.mxu0 %v336
      %1415 = vmatprep.subr.mxu0 0.0
      %1416 = vmatpush1.msra.mxu0 %v337
      %1417 = vmatprep.subr.mxu0 0.0
      %1418 = vmatpush1.msra.mxu0 0.0
      %1419 = vmatprep.subr.mxu0 0.0
      %1420 = vmatpush1.msra.mxu0 0.0
      %1421 = vmatprep.subr.mxu0 0.0
      %1422 = vmatpush1.msra.mxu0 0.0
      %1423 = vmatprep.subr.mxu0 0.0
      %1424 = vmatpush1.msra.mxu0 0.0
      %1425 = vmatprep.subr.mxu0 0.0
      %1426 = vmatpush1.msra.mxu0 0.0
      %1427 = vmatprep.subr.mxu0 0.0
      %1428 = vmatpush1.msra.mxu0 0.0
      %1429 = vmatprep.subr.mxu0 0.0
      %1430 = vmatpush1.msra.mxu0 0.0
      %1431 = vmatprep.subr.mxu0 0.0
      %1432 = vmatpush1.msra.mxu0 0.0
      %1433 = vmatprep.subr.mxu0 0.0
      %1434 = vmatpush1.msra.mxu0 0.0
      %1435 = vmatprep.subr.mxu0 0.0
      %1436 = vmatpush1.msra.mxu0 0.0
      %1437 = vmatprep.subr.mxu0 0.0
      %1438 = vmatpush1.msra.mxu0 0.0
      %1439 = vmatprep.subr.mxu0 0.0
      %1440 = vmatpush1.msra.mxu0 0.0
      %1441 = vmatprep.subr.mxu0 0.0
      %1442 = vmatpush1.msra.mxu0 0.0
      %1443 = vmatprep.subr.mxu0 0.0
      %1444 = vmatpush1.msra.mxu0 0.0
      %1445 = vmatprep.subr.mxu0 0.0
      %1446 = vmatpush1.msra.mxu0 0.0
      %1447 = vmatprep.subr.mxu0 0.0
      %1448 = vmatpush1.msra.mxu0 0.0
      %1449 = vmatprep.mubr.f32.mxu0 0.0
      %1450 = vmatmul.mubr.f32.gmra.mrb[0].mxu0 %v1104
      %v1451 = vpop.f32.mrb[0].mxu0
      %v1452 = vadd.f32 %v1382, %v1451
      %v1453 = vpop.f32.mrb[0].mxu0
      %1454 = vdwg.mxu0
      %v1455 = vmax.f32 %v1452, 0.0
      %1456 = vst [vmem:[%s192 + $0x8] sm:$0xf] %v1455
      %s1457 = sadd.s32 %s193, 3
      %s1458 = smul.u32 %s1457, 2
      %s1459 = smul.u32 %s1458, 16
      %s1460 = scalar_lea.vmem %s183, %s1459
      %v1461 = vld [vmem:[%s1460] sm:$0xf]
      %v1462 = vld [vmem:[%s1460 + $0x5] sm:$0xf]
      %v1463 = vld [vmem:[%s1460 + $0x1] sm:$0xf]
      %s1464 = sadd.s32 %s1458, 1
      %s1465 = smul.u32 %s1464, 16
      %s1466 = scalar_lea.vmem %s183, %s1465
      %v1467 = vld [vmem:[%s1466] sm:$0xf]
      %v1468 = vld [vmem:[%s1466 + $0x5] sm:$0xf]
      %v1469 = vld [vmem:[%s1466 + $0x1] sm:$0xf]
      %s1470 = sadd.s32 %s1458, 2
      %s1471 = smul.u32 %s1470, 16
      %s1472 = scalar_lea.vmem %s183, %s1471
      %v1473 = vld [vmem:[%s1472] sm:$0xf]
      %v1474 = vld [vmem:[%s1472 + $0x5] sm:$0xf]
      %v1475 = vld [vmem:[%s1472 + $0x1] sm:$0xf]
      %1476 = vmatprep.subr.mxu0 0.0
      %1477 = vmatpush1.msra.mxu0 %v194
      %1478 = vmatprep.subr.mxu0 0.0
      %1479 = vmatpush1.msra.mxu0 %v195
      %1480 = vmatprep.subr.mxu0 0.0
      %1481 = vmatpush1.msra.mxu0 %v196
      %1482 = vmatprep.subr.mxu0 0.0
      %1483 = vmatpush1.msra.mxu0 %v197
      %1484 = vmatprep.subr.mxu0 0.0
      %1485 = vmatpush1.msra.mxu0 %v198
      %1486 = vmatprep.subr.mxu0 0.0
      %1487 = vmatpush1.msra.mxu0 %v199
      %1488 = vmatprep.subr.mxu0 0.0
      %1489 = vmatpush1.msra.mxu0 %v200
      %1490 = vmatprep.subr.mxu0 0.0
      %1491 = vmatpush1.msra.mxu0 %v201
      %1492 = vmatprep.subr.mxu0 0.0
      %1493 = vmatpush1.msra.mxu0 %v202
      %1494 = vmatprep.subr.mxu0 0.0
      %1495 = vmatpush1.msra.mxu0 %v203
      %1496 = vmatprep.subr.mxu0 0.0
      %1497 = vmatpush1.msra.mxu0 %v204
      %1498 = vmatprep.subr.mxu0 0.0
      %1499 = vmatpush1.msra.mxu0 %v205
      %1500 = vmatprep.subr.mxu0 0.0
      %1501 = vmatpush1.msra.mxu0 %v206
      %1502 = vmatprep.subr.mxu0 0.0
      %1503 = vmatpush1.msra.mxu0 %v207
      %1504 = vmatprep.subr.mxu0 0.0
      %1505 = vmatpush1.msra.mxu0 %v208
      %1506 = vmatprep.subr.mxu0 0.0
      %1507 = vmatpush1.msra.mxu0 %v209
      %1508 = vmatprep.subr.mxu0 0.0
      %1509 = vmatpush1.msra.mxu0 %v210
      %1510 = vmatprep.subr.mxu0 0.0
      %1511 = vmatpush1.msra.mxu0 %v211
      %1512 = vmatprep.subr.mxu0 0.0
      %1513 = vmatpush1.msra.mxu0 %v212
      %1514 = vmatprep.subr.mxu0 0.0
      %1515 = vmatpush1.msra.mxu0 %v213
      %1516 = vmatprep.subr.mxu0 0.0
      %1517 = vmatpush1.msra.mxu0 %v214
      %1518 = vmatprep.subr.mxu0 0.0
      %1519 = vmatpush1.msra.mxu0 %v215
      %1520 = vmatprep.subr.mxu0 0.0
      %1521 = vmatpush1.msra.mxu0 %v216
      %1522 = vmatprep.subr.mxu0 0.0
      %1523 = vmatpush1.msra.mxu0 %v217
      %1524 = vmatprep.subr.mxu0 0.0
      %1525 = vmatpush1.msra.mxu0 %v218
      %1526 = vmatprep.subr.mxu0 0.0
      %1527 = vmatpush1.msra.mxu0 %v219
      %1528 = vmatprep.subr.mxu0 0.0
      %1529 = vmatpush1.msra.mxu0 %v220
      %1530 = vmatprep.subr.mxu0 0.0
      %1531 = vmatpush1.msra.mxu0 %v221
      %1532 = vmatprep.subr.mxu0 0.0
      %1533 = vmatpush1.msra.mxu0 %v222
      %1534 = vmatprep.subr.mxu0 0.0
      %1535 = vmatpush1.msra.mxu0 %v223
      %1536 = vmatprep.subr.mxu0 0.0
      %1537 = vmatpush1.msra.mxu0 %v224
      %1538 = vmatprep.subr.mxu0 0.0
      %1539 = vmatpush1.msra.mxu0 %v225
      %1540 = vmatprep.mubr.f32.mxu0 %v1462
      %1541 = vmatmul.mubr.f32.gmra.mrb[0].mxu0 %v1461
      %v1542 = vpop.f32.mrb[0].mxu0
      %v1543 = vadd.f32 %v361, %v1542
      %v1544 = vpop.f32.mrb[0].mxu0
      %1545 = vdwg.mxu0
      %1546 = vmatprep.subr.mxu0 0.0
      %1547 = vmatpush1.msra.mxu0 %v226
      %1548 = vmatprep.subr.mxu0 0.0
      %1549 = vmatpush1.msra.mxu0 %v227
      %1550 = vmatprep.subr.mxu0 0.0
      %1551 = vmatpush1.msra.mxu0 %v228
      %1552 = vmatprep.subr.mxu0 0.0
      %1553 = vmatpush1.msra.mxu0 %v229
      %1554 = vmatprep.subr.mxu0 0.0
      %1555 = vmatpush1.msra.mxu0 %v230
      %1556 = vmatprep.subr.mxu0 0.0
      %1557 = vmatpush1.msra.mxu0 %v231
      %1558 = vmatprep.subr.mxu0 0.0
      %1559 = vmatpush1.msra.mxu0 %v232
      %1560 = vmatprep.subr.mxu0 0.0
      %1561 = vmatpush1.msra.mxu0 %v233
      %1562 = vmatprep.subr.mxu0 0.0
      %1563 = vmatpush1.msra.mxu0 %v234
      %1564 = vmatprep.subr.mxu0 0.0
      %1565 = vmatpush1.msra.mxu0 %v235
      %1566 = vmatprep.subr.mxu0 0.0
      %1567 = vmatpush1.msra.mxu0 %v236
      %1568 = vmatprep.subr.mxu0 0.0
      %1569 = vmatpush1.msra.mxu0 %v237
      %1570 = vmatprep.subr.mxu0 0.0
      %1571 = vmatpush1.msra.mxu0 %v238
      %1572 = vmatprep.subr.mxu0 0.0
      %1573 = vmatpush1.msra.mxu0 %v239
      %1574 = vmatprep.subr.mxu0 0.0
      %1575 = vmatpush1.msra.mxu0 %v240
      %1576 = vmatprep.subr.mxu0 0.0
      %1577 = vmatpush1.msra.mxu0 %v241
      %1578 = vmatprep.subr.mxu0 0.0
      %1579 = vmatpush1.msra.mxu0 %v242
      %1580 = vmatprep.subr.mxu0 0.0
      %1581 = vmatpush1.msra.mxu0 %v243
      %1582 = vmatprep.subr.mxu0 0.0
      %1583 = vmatpush1.msra.mxu0 %v244
      %1584 = vmatprep.subr.mxu0 0.0
      %1585 = vmatpush1.msra.mxu0 %v245
      %1586 = vmatprep.subr.mxu0 0.0
      %1587 = vmatpush1.msra.mxu0 %v246
      %1588 = vmatprep.subr.mxu0 0.0
      %1589 = vmatpush1.msra.mxu0 %v247
      %1590 = vmatprep.subr.mxu0 0.0
      %1591 = vmatpush1.msra.mxu0 %v248
      %1592 = vmatprep.subr.mxu0 0.0
      %1593 = vmatpush1.msra.mxu0 %v249
      %1594 = vmatprep.subr.mxu0 0.0
      %1595 = vmatpush1.msra.mxu0 %v250
      %1596 = vmatprep.subr.mxu0 0.0
      %1597 = vmatpush1.msra.mxu0 %v251
      %1598 = vmatprep.subr.mxu0 0.0
      %1599 = vmatpush1.msra.mxu0 %v252
      %1600 = vmatprep.subr.mxu0 0.0
      %1601 = vmatpush1.msra.mxu0 %v253
      %1602 = vmatprep.subr.mxu0 0.0
      %1603 = vmatpush1.msra.mxu0 %v254
      %1604 = vmatprep.subr.mxu0 0.0
      %1605 = vmatpush1.msra.mxu0 %v255
      %1606 = vmatprep.subr.mxu0 0.0
      %1607 = vmatpush1.msra.mxu0 %v256
      %1608 = vmatprep.subr.mxu0 0.0
      %1609 = vmatpush1.msra.mxu0 %v257
      %1610 = vmatprep.mubr.f32.mxu0 %v1467
      %1611 = vmatmul.mubr.f32.gmra.mrb[0].mxu0 %v1463
      %v1612 = vpop.f32.mrb[0].mxu0
      %v1613 = vadd.f32 %v1543, %v1612
      %v1614 = vpop.f32.mrb[0].mxu0
      %1615 = vdwg.mxu0
      %1616 = vmatprep.subr.mxu0 0.0
      %1617 = vmatpush1.msra.mxu0 %v258
      %1618 = vmatprep.subr.mxu0 0.0
      %1619 = vmatpush1.msra.mxu0 %v259
      %1620 = vmatprep.subr.mxu0 0.0
      %1621 = vmatpush1.msra.mxu0 %v260
      %1622 = vmatprep.subr.mxu0 0.0
      %1623 = vmatpush1.msra.mxu0 %v261
      %1624 = vmatprep.subr.mxu0 0.0
      %1625 = vmatpush1.msra.mxu0 %v262
      %1626 = vmatprep.subr.mxu0 0.0
      %1627 = vmatpush1.msra.mxu0 %v263
      %1628 = vmatprep.subr.mxu0 0.0
      %1629 = vmatpush1.msra.mxu0 %v264
      %1630 = vmatprep.subr.mxu0 0.0
      %1631 = vmatpush1.msra.mxu0 %v265
      %1632 = vmatprep.subr.mxu0 0.0
      %1633 = vmatpush1.msra.mxu0 %v266
      %1634 = vmatprep.subr.mxu0 0.0
      %1635 = vmatpush1.msra.mxu0 %v267
      %1636 = vmatprep.subr.mxu0 0.0
      %1637 = vmatpush1.msra.mxu0 %v268
      %1638 = vmatprep.subr.mxu0 0.0
      %1639 = vmatpush1.msra.mxu0 %v269
      %1640 = vmatprep.subr.mxu0 0.0
      %1641 = vmatpush1.msra.mxu0 %v270
      %1642 = vmatprep.subr.mxu0 0.0
      %1643 = vmatpush1.msra.mxu0 %v271
      %1644 = vmatprep.subr.mxu0 0.0
      %1645 = vmatpush1.msra.mxu0 %v272
      %1646 = vmatprep.subr.mxu0 0.0
      %1647 = vmatpush1.msra.mxu0 %v273
      %1648 = vmatprep.subr.mxu0 0.0
      %1649 = vmatpush1.msra.mxu0 %v274
      %1650 = vmatprep.subr.mxu0 0.0
      %1651 = vmatpush1.msra.mxu0 %v275
      %1652 = vmatprep.subr.mxu0 0.0
      %1653 = vmatpush1.msra.mxu0 %v276
      %1654 = vmatprep.subr.mxu0 0.0
      %1655 = vmatpush1.msra.mxu0 %v277
      %1656 = vmatprep.subr.mxu0 0.0
      %1657 = vmatpush1.msra.mxu0 %v278
      %1658 = vmatprep.subr.mxu0 0.0
      %1659 = vmatpush1.msra.mxu0 %v279
      %1660 = vmatprep.subr.mxu0 0.0
      %1661 = vmatpush1.msra.mxu0 %v280
      %1662 = vmatprep.subr.mxu0 0.0
      %1663 = vmatpush1.msra.mxu0 %v281
      %1664 = vmatprep.subr.mxu0 0.0
      %1665 = vmatpush1.msra.mxu0 %v282
      %1666 = vmatprep.subr.mxu0 0.0
      %1667 = vmatpush1.msra.mxu0 %v283
      %1668 = vmatprep.subr.mxu0 0.0
      %1669 = vmatpush1.msra.mxu0 %v284
      %1670 = vmatprep.subr.mxu0 0.0
      %1671 = vmatpush1.msra.mxu0 %v285
      %1672 = vmatprep.subr.mxu0 0.0
      %1673 = vmatpush1.msra.mxu0 %v286
      %1674 = vmatprep.subr.mxu0 0.0
      %1675 = vmatpush1.msra.mxu0 %v287
      %1676 = vmatprep.subr.mxu0 0.0
      %1677 = vmatpush1.msra.mxu0 %v288
      %1678 = vmatprep.subr.mxu0 0.0
      %1679 = vmatpush1.msra.mxu0 %v289
      %1680 = vmatprep.mubr.f32.mxu0 %v1469
      %1681 = vmatmul.mubr.f32.gmra.mrb[0].mxu0 %v1468
      %v1682 = vpop.f32.mrb[0].mxu0
      %v1683 = vadd.f32 %v1613, %v1682
      %v1684 = vpop.f32.mrb[0].mxu0
      %1685 = vdwg.mxu0
      %1686 = vmatprep.subr.mxu0 0.0
      %1687 = vmatpush1.msra.mxu0 %v290
      %1688 = vmatprep.subr.mxu0 0.0
      %1689 = vmatpush1.msra.mxu0 %v291
      %1690 = vmatprep.subr.mxu0 0.0
      %1691 = vmatpush1.msra.mxu0 %v292
      %1692 = vmatprep.subr.mxu0 0.0
      %1693 = vmatpush1.msra.mxu0 %v293
      %1694 = vmatprep.subr.mxu0 0.0
      %1695 = vmatpush1.msra.mxu0 %v294
      %1696 = vmatprep.subr.mxu0 0.0
      %1697 = vmatpush1.msra.mxu0 %v295
      %1698 = vmatprep.subr.mxu0 0.0
      %1699 = vmatpush1.msra.mxu0 %v296
      %1700 = vmatprep.subr.mxu0 0.0
      %1701 = vmatpush1.msra.mxu0 %v297
      %1702 = vmatprep.subr.mxu0 0.0
      %1703 = vmatpush1.msra.mxu0 %v298
      %1704 = vmatprep.subr.mxu0 0.0
      %1705 = vmatpush1.msra.mxu0 %v299
      %1706 = vmatprep.subr.mxu0 0.0
      %1707 = vmatpush1.msra.mxu0 %v300
      %1708 = vmatprep.subr.mxu0 0.0
      %1709 = vmatpush1.msra.mxu0 %v301
      %1710 = vmatprep.subr.mxu0 0.0
      %1711 = vmatpush1.msra.mxu0 %v302
      %1712 = vmatprep.subr.mxu0 0.0
      %1713 = vmatpush1.msra.mxu0 %v303
      %1714 = vmatprep.subr.mxu0 0.0
      %1715 = vmatpush1.msra.mxu0 %v304
      %1716 = vmatprep.subr.mxu0 0.0
      %1717 = vmatpush1.msra.mxu0 %v305
      %1718 = vmatprep.subr.mxu0 0.0
      %1719 = vmatpush1.msra.mxu0 %v306
      %1720 = vmatprep.subr.mxu0 0.0
      %1721 = vmatpush1.msra.mxu0 %v307
      %1722 = vmatprep.subr.mxu0 0.0
      %1723 = vmatpush1.msra.mxu0 %v308
      %1724 = vmatprep.subr.mxu0 0.0
      %1725 = vmatpush1.msra.mxu0 %v309
      %1726 = vmatprep.subr.mxu0 0.0
      %1727 = vmatpush1.msra.mxu0 %v310
      %1728 = vmatprep.subr.mxu0 0.0
      %1729 = vmatpush1.msra.mxu0 %v311
      %1730 = vmatprep.subr.mxu0 0.0
      %1731 = vmatpush1.msra.mxu0 %v312
      %1732 = vmatprep.subr.mxu0 0.0
      %1733 = vmatpush1.msra.mxu0 %v313
      %1734 = vmatprep.subr.mxu0 0.0
      %1735 = vmatpush1.msra.mxu0 %v314
      %1736 = vmatprep.subr.mxu0 0.0
      %1737 = vmatpush1.msra.mxu0 %v315
      %1738 = vmatprep.subr.mxu0 0.0
      %1739 = vmatpush1.msra.mxu0 %v316
      %1740 = vmatprep.subr.mxu0 0.0
      %1741 = vmatpush1.msra.mxu0 %v317
      %1742 = vmatprep.subr.mxu0 0.0
      %1743 = vmatpush1.msra.mxu0 %v318
      %1744 = vmatprep.subr.mxu0 0.0
      %1745 = vmatpush1.msra.mxu0 %v319
      %1746 = vmatprep.subr.mxu0 0.0
      %1747 = vmatpush1.msra.mxu0 %v320
      %1748 = vmatprep.subr.mxu0 0.0
      %1749 = vmatpush1.msra.mxu0 %v321
      %1750 = vmatprep.mubr.f32.mxu0 %v1474
      %1751 = vmatmul.mubr.f32.gmra.mrb[0].mxu0 %v1473
      %v1752 = vpop.f32.mrb[0].mxu0
      %v1753 = vadd.f32 %v1683, %v1752
      %v1754 = vpop.f32.mrb[0].mxu0
      %1755 = vdwg.mxu0
      %1756 = vmatprep.subr.mxu0 0.0
      %1757 = vmatpush1.msra.mxu0 %v322
      %1758 = vmatprep.subr.mxu0 0.0
      %1759 = vmatpush1.msra.mxu0 %v323
      %1760 = vmatprep.subr.mxu0 0.0
      %1761 = vmatpush1.msra.mxu0 %v324
      %1762 = vmatprep.subr.mxu0 0.0
      %1763 = vmatpush1.msra.mxu0 %v325
      %1764 = vmatprep.subr.mxu0 0.0
      %1765 = vmatpush1.msra.mxu0 %v326
      %1766 = vmatprep.subr.mxu0 0.0
      %1767 = vmatpush1.msra.mxu0 %v327
      %1768 = vmatprep.subr.mxu0 0.0
      %1769 = vmatpush1.msra.mxu0 %v328
      %1770 = vmatprep.subr.mxu0 0.0
      %1771 = vmatpush1.msra.mxu0 %v329
      %1772 = vmatprep.subr.mxu0 0.0
      %1773 = vmatpush1.msra.mxu0 %v330
      %1774 = vmatprep.subr.mxu0 0.0
      %1775 = vmatpush1.msra.mxu0 %v331
      %1776 = vmatprep.subr.mxu0 0.0
      %1777 = vmatpush1.msra.mxu0 %v332
      %1778 = vmatprep.subr.mxu0 0.0
      %1779 = vmatpush1.msra.mxu0 %v333
      %1780 = vmatprep.subr.mxu0 0.0
      %1781 = vmatpush1.msra.mxu0 %v334
      %1782 = vmatprep.subr.mxu0 0.0
      %1783 = vmatpush1.msra.mxu0 %v335
      %1784 = vmatprep.subr.mxu0 0.0
      %1785 = vmatpush1.msra.mxu0 %v336
      %1786 = vmatprep.subr.mxu0 0.0
      %1787 = vmatpush1.msra.mxu0 %v337
      %1788 = vmatprep.subr.mxu0 0.0
      %1789 = vmatpush1.msra.mxu0 0.0
      %1790 = vmatprep.subr.mxu0 0.0
      %1791 = vmatpush1.msra.mxu0 0.0
      %1792 = vmatprep.subr.mxu0 0.0
      %1793 = vmatpush1.msra.mxu0 0.0
      %1794 = vmatprep.subr.mxu0 0.0
      %1795 = vmatpush1.msra.mxu0 0.0
      %1796 = vmatprep.subr.mxu0 0.0
      %1797 = vmatpush1.msra.mxu0 0.0
      %1798 = vmatprep.subr.mxu0 0.0
      %1799 = vmatpush1.msra.mxu0 0.0
      %1800 = vmatprep.subr.mxu0 0.0
      %1801 = vmatpush1.msra.mxu0 0.0
      %1802 = vmatprep.subr.mxu0 0.0
      %1803 = vmatpush1.msra.mxu0 0.0
      %1804 = vmatprep.subr.mxu0 0.0
      %1805 = vmatpush1.msra.mxu0 0.0
      %1806 = vmatprep.subr.mxu0 0.0
      %1807 = vmatpush1.msra.mxu0 0.0
      %1808 = vmatprep.subr.mxu0 0.0
      %1809 = vmatpush1.msra.mxu0 0.0
      %1810 = vmatprep.subr.mxu0 0.0
      %1811 = vmatpush1.msra.mxu0 0.0
      %1812 = vmatprep.subr.mxu0 0.0
      %1813 = vmatpush1.msra.mxu0 0.0
      %1814 = vmatprep.subr.mxu0 0.0
      %1815 = vmatpush1.msra.mxu0 0.0
      %1816 = vmatprep.subr.mxu0 0.0
      %1817 = vmatpush1.msra.mxu0 0.0
      %1818 = vmatprep.subr.mxu0 0.0
      %1819 = vmatpush1.msra.mxu0 0.0
      %1820 = vmatprep.mubr.f32.mxu0 0.0
      %1821 = vmatmul.mubr.f32.gmra.mrb[0].mxu0 %v1475
      %v1822 = vpop.f32.mrb[0].mxu0
      %v1823 = vadd.f32 %v1753, %v1822
      %v1824 = vpop.f32.mrb[0].mxu0
      %1825 = vdwg.mxu0
      %v1826 = vmax.f32 %v1823, 0.0
      %1827 = vst [vmem:[%s192 + $0xc] sm:$0xf] %v1826
      %p1828 = scmp.lt.s32.totalorder %s18, 1
      %s1829 = scalar_select %p1828, %s18, 1
      %p1830 = scmp.lt.s32.totalorder %s19, 0
      %s1831 = scalar_select %p1830, %s19, 0
      %s1832 = smul.addr %s1831, 2
      %s1833 = smul.addr %s1829, 2
      %s1834 = sadd.s32 %s1832, %s1833
      %s1835 = smul.addr %s1834, 8
      %s1836 = scalar_lea.vmem %s3, %s1835
      // Predicated region
      $region33: #{bottleneck_forward.4} parent=31 // pred_check
        %p1837 = pneg %p114
      $region34: #{bottleneck_forward.4} parent=31 // pred_check_branch
        %1839 = sbr.rel (%p1837) target = $region36
      $region35: #{bottleneck_forward.4} parent=31 // pred_region
        _
      $region36: #{bottleneck_forward.4} parent=31 // pred_fallthru
        _
    $region32: #{bottleneck_forward.4} parent=5 // pred_fallthru
      _
    %p1840 = scmp.le.s32.totalorder 2, %s9
    // Predicated region
    $region37: #{bottleneck_forward.4} parent=5 // pred_check
      %p1841 = pneg %p1840
    $region38: #{bottleneck_forward.4} parent=5 // pred_check_branch
      %1843 = sbr.rel (%p1841) target = $region40
    $region39: #{bottleneck_forward.4} parent=5 // pred_region
      %s1844 = ssub.s32 %s9, 2
      // Predicated region
      $region41: #{bottleneck_forward.4} parent=39 // pred_check
        %p1845 = pneg %p120
      $region42: #{bottleneck_forward.4} parent=39 // pred_check_branch
        %1847 = sbr.rel (%p1845) target = $region44
      $region43: #{bottleneck_forward.4} parent=39 // pred_region
        %p1848 = scmp.lt.s32.totalorder %s20, 1
        %s1849 = scalar_select %p1848, %s20, 1
        %p1850 = scmp.lt.s32.totalorder %s21, 0
        %s1851 = scalar_select %p1850, %s21, 0
        %s1852 = smul.addr %s1851, 2
        %s1853 = smul.addr %s1849, 2
        %s1854 = sadd.s32 %s1852, %s1853
        %s1855 = smul.addr %s1854, 8
        %s1856 = scalar_lea.vmem %s3, %s1855
      $region44: #{bottleneck_forward.4} parent=39 // pred_fallthru
        _
    $region40: #{bottleneck_forward.4} parent=5 // pred_fallthru
      _
  $region6: #{bottleneck_forward.4} parent=0 // loop_footer
    %s13 = sadd.s32 1, %s9
  $region7: #{bottleneck_forward.4} parent=0 // loop_footer_branch
    %8 = sbr.rel target = $region3
  $region8: #{bottleneck_forward.4} parent=0 // loop_exit
    _

// kernel: bottleneck_forward.5
$region0: #{bottleneck_forward.5}
  #allocation0 [shape = 'u32[]', space=smem, size = 0x4, offset = 0x4, fixed_abs, tag = 'smem constant byte address 0x4 - core index']
  #allocation1 [shape = 'u32[144,128]{1,0:T(1,128)}', space=vmem, size = 0x12000, scoped, tag = 'internal scratch']
  %s0 = inlined_call_operand.vmem [shape: f32[32,128], index: 0, kind: input, shape index: {}]
  %s1 = inlined_call_operand.vmem [shape: f32[32,128], index: 1, kind: input, shape index: {}]
  %s2 = inlined_call_operand.vmem [shape: f32[128,128], index: 2, kind: input, shape index: {}]
  %s3 = inlined_call_operand.vmem [shape: f32[128,128], index: 3, kind: input, shape index: {}]
  %s4 = inlined_call_operand.vmem [shape: f32[1,128], index: 4, kind: input, shape index: {}]
  %s5 = inlined_call_operand.hbm [shape: f32[32,128], index: 5, kind: output, shape index: {}]
  %s6 = sld [smem:[#allocation0]]
  $region30: #{bottleneck_forward.5} parent=0
    _
  %s8 = ssub.s32 1, %s6
  %s9 = scalar_select 0, %s8, %s6
  $region1: #{bottleneck_forward.5} parent=0
    #allocation2 [shape = 'u8[16384]{0}', space=vmem, size = 0x4000, scoped, tag = 'output window, operand 0, single buffered']
    #allocation3 [shape = 's32[1]{0}', space=sflag, size = 0x4, scoped, tag = 'scoped memory for bottleneck_forward.5']
    %10 = vsyncpa [#allocation3], 0
    // Predicated region
    $region2: #{bottleneck_forward.5} parent=1 // pred_check
      _
    $region3: #{bottleneck_forward.5} parent=1 // pred_check_branch
      %12 = sbr.rel (0) target = $region5
    $region4: #{bottleneck_forward.5} parent=1 // pred_region
      _
    $region5: #{bottleneck_forward.5} parent=1 // pred_fallthru
      _
    // Predicated region
    $region6: #{bottleneck_forward.5} parent=1 // pred_check
      _
    $region7: #{bottleneck_forward.5} parent=1 // pred_check_branch
      %14 = sbr.rel (0) target = $region9
    $region8: #{bottleneck_forward.5} parent=1 // pred_region
      _
    $region9: #{bottleneck_forward.5} parent=1 // pred_fallthru
      _
    // Predicated region
    $region10: #{bottleneck_forward.5} parent=1 // pred_check
      _
    $region11: #{bottleneck_forward.5} parent=1 // pred_check_branch
      %16 = sbr.rel (0) target = $region13
    $region12: #{bottleneck_forward.5} parent=1 // pred_region
      _
    $region13: #{bottleneck_forward.5} parent=1 // pred_fallthru
      _
    // Predicated region
    $region14: #{bottleneck_forward.5} parent=1 // pred_check
      _
    $region15: #{bottleneck_forward.5} parent=1 // pred_check_branch
      %18 = sbr.rel (0) target = $region17
    $region16: #{bottleneck_forward.5} parent=1 // pred_region
      _
    $region17: #{bottleneck_forward.5} parent=1 // pred_fallthru
      _
    // Predicated region
    $region18: #{bottleneck_forward.5} parent=1 // pred_check
      _
    $region19: #{bottleneck_forward.5} parent=1 // pred_check_branch
      %20 = sbr.rel (0) target = $region21
    $region20: #{bottleneck_forward.5} parent=1 // pred_region
      _
    $region21: #{bottleneck_forward.5} parent=1 // pred_fallthru
      _
    %v21 = vld [vmem:[%s0] sm:$0xff]
    %v22 = vld [vmem:[%s0 + $0x8] sm:$0xff]
    %v23 = vld [vmem:[%s0 + $0x10] sm:$0xff]
    %v24 = vld [vmem:[%s0 + $0x18] sm:$0xff]
    %v25 = vld [vmem:[%s2] sm:$0xff]
    %v26 = vld [vmem:[%s2 + $0x8] sm:$0xff]
    %v27 = vld [vmem:[%s2 + $0x10] sm:$0xff]
    %v28 = vld [vmem:[%s2 + $0x18] sm:$0xff]
    %v29 = vld [vmem:[%s2 + $0x20] sm:$0xff]
    %v30 = vld [vmem:[%s2 + $0x28] sm:$0xff]
    %v31 = vld [vmem:[%s2 + $0x30] sm:$0xff]
    %v32 = vld [vmem:[%s2 + $0x38] sm:$0xff]
    %v33 = vld [vmem:[%s2 + $0x40] sm:$0xff]
    %v34 = vld [vmem:[%s2 + $0x48] sm:$0xff]
    %v35 = vld [vmem:[%s2 + $0x50] sm:$0xff]
    %v36 = vld [vmem:[%s2 + $0x58] sm:$0xff]
    %v37 = vld [vmem:[%s2 + $0x60] sm:$0xff]
    %v38 = vld [vmem:[%s2 + $0x68] sm:$0xff]
    %v39 = vld [vmem:[%s2 + $0x70] sm:$0xff]
    %v40 = vld [vmem:[%s2 + $0x78] sm:$0xff]
    %v41 = vld [vmem:[%s1] sm:$0xff]
    %v42 = vld [vmem:[%s1 + $0x8] sm:$0xff]
    %v43 = vld [vmem:[%s1 + $0x10] sm:$0xff]
    %v44 = vld [vmem:[%s1 + $0x18] sm:$0xff]
    %v45 = vld [vmem:[%s3] sm:$0xff]
    %v46 = vld [vmem:[%s3 + $0x8] sm:$0xff]
    %v47 = vld [vmem:[%s3 + $0x10] sm:$0xff]
    %v48 = vld [vmem:[%s3 + $0x18] sm:$0xff]
    %v49 = vld [vmem:[%s3 + $0x20] sm:$0xff]
    %v50 = vld [vmem:[%s3 + $0x28] sm:$0xff]
    %v51 = vld [vmem:[%s3 + $0x30] sm:$0xff]
    %v52 = vld [vmem:[%s3 + $0x38] sm:$0xff]
    %v53 = vld [vmem:[%s3 + $0x40] sm:$0xff]
    %v54 = vld [vmem:[%s3 + $0x48] sm:$0xff]
    %v55 = vld [vmem:[%s3 + $0x50] sm:$0xff]
    %v56 = vld [vmem:[%s3 + $0x58] sm:$0xff]
    %v57 = vld [vmem:[%s3 + $0x60] sm:$0xff]
    %v58 = vld [vmem:[%s3 + $0x68] sm:$0xff]
    %v59 = vld [vmem:[%s3 + $0x70] sm:$0xff]
    %v60 = vld [vmem:[%s3 + $0x78] sm:$0xff]
    %61 = vmatprep.subr.mxu0 0.0
    %62 = vmatpush1.msra.mxu0 %v45
    %63 = vmatprep.subr.mxu0 0.0
    %64 = vmatpush1.msra.mxu0 %v46
    %65 = vmatprep.subr.mxu0 0.0
    %66 = vmatpush1.msra.mxu0 %v47
    %67 = vmatprep.subr.mxu0 0.0
    %68 = vmatpush1.msra.mxu0 %v48
    %69 = vmatprep.subr.mxu0 0.0
    %70 = vmatpush1.msra.mxu0 %v49
    %71 = vmatprep.subr.mxu0 0.0
    %72 = vmatpush1.msra.mxu0 %v50
    %73 = vmatprep.subr.mxu0 0.0
    %74 = vmatpush1.msra.mxu0 %v51
    %75 = vmatprep.subr.mxu0 0.0
    %76 = vmatpush1.msra.mxu0 %v52
    %77 = vmatprep.subr.mxu0 0.0
    %78 = vmatpush1.msra.mxu0 %v53
    %79 = vmatprep.subr.mxu0 0.0
    %80 = vmatpush1.msra.mxu0 %v54
    %81 = vmatprep.subr.mxu0 0.0
    %82 = vmatpush1.msra.mxu0 %v55
    %83 = vmatprep.subr.mxu0 0.0
    %84 = vmatpush1.msra.mxu0 %v56
    %85 = vmatprep.subr.mxu0 0.0
    %86 = vmatpush1.msra.mxu0 %v57
    %87 = vmatprep.subr.mxu0 0.0
    %88 = vmatpush1.msra.mxu0 %v58
    %89 = vmatprep.subr.mxu0 0.0
    %90 = vmatpush1.msra.mxu0 %v59
    %91 = vmatprep.subr.mxu0 0.0
    %92 = vmatpush1.msra.mxu0 %v60
    %93 = vmatprep.subr.mxu0 0.0
    %94 = vmatpush1.msra.mxu0 0.0
    %95 = vmatprep.subr.mxu0 0.0
    %96 = vmatpush1.msra.mxu0 0.0
    %97 = vmatprep.subr.mxu0 0.0
    %98 = vmatpush1.msra.mxu0 0.0
    %99 = vmatprep.subr.mxu0 0.0
    %100 = vmatpush1.msra.mxu0 0.0
    %101 = vmatprep.subr.mxu0 0.0
    %102 = vmatpush1.msra.mxu0 0.0
    %103 = vmatprep.subr.mxu0 0.0
    %104 = vmatpush1.msra.mxu0 0.0
    %105 = vmatprep.subr.mxu0 0.0
    %106 = vmatpush1.msra.mxu0 0.0
    %107 = vmatprep.subr.mxu0 0.0
    %108 = vmatpush1.msra.mxu0 0.0
    %109 = vmatprep.subr.mxu0 0.0
    %110 = vmatpush1.msra.mxu0 0.0
    %111 = vmatprep.subr.mxu0 0.0
    %112 = vmatpush1.msra.mxu0 0.0
    %113 = vmatprep.subr.mxu0 0.0
    %114 = vmatpush1.msra.mxu0 0.0
    %115 = vmatprep.subr.mxu0 0.0
    %116 = vmatpush1.msra.mxu0 0.0
    %117 = vmatprep.subr.mxu0 0.0
    %118 = vmatpush1.msra.mxu0 0.0
    %119 = vmatprep.subr.mxu0 0.0
    %120 = vmatpush1.msra.mxu0 0.0
    %121 = vmatprep.subr.mxu0 0.0
    %122 = vmatpush1.msra.mxu0 0.0
    %123 = vmatprep.subr.mxu0 0.0
    %124 = vmatpush1.msra.mxu0 0.0
    %125 = vmatprep.mubr.f32.mxu0 0.0
    %126 = vmatmul.mubr.f32.gmra.mrb[0].mxu0 %v41
    %v127 = vpop.f32.mrb[0].mxu0
    %v128 = vadd.f32 0.0, %v127
    %v129 = vpop.f32.mrb[0].mxu0
    %130 = vmatprep.mubr.f32.mxu0 0.0
    %131 = vmatmul.mubr.f32.gmra.mrb[0].mxu0 %v42
    %v132 = vpop.f32.mrb[0].mxu0
    %v133 = vadd.f32 0.0, %v132
    %v134 = vpop.f32.mrb[0].mxu0
    %135 = vmatprep.mubr.f32.mxu0 0.0
    %136 = vmatmul.mubr.f32.gmra.mrb[0].mxu0 %v43
    %v137 = vpop.f32.mrb[0].mxu0
    %v138 = vadd.f32 0.0, %v137
    %v139 = vpop.f32.mrb[0].mxu0
    %140 = vmatprep.mubr.f32.mxu0 0.0
    %141 = vmatmul.mubr.f32.gmra.mrb[0].mxu0 %v44
    %v142 = vpop.f32.mrb[0].mxu0
    %v143 = vadd.f32 0.0, %v142
    %v144 = vpop.f32.mrb[0].mxu0
    %145 = vdwg.mxu0
    %146 = vmatprep.subr.mxu0 0.0
    %147 = vmatpush1.msra.mxu0 %v25
    %148 = vmatprep.subr.mxu0 0.0
    %149 = vmatpush1.msra.mxu0 %v26
    %150 = vmatprep.subr.mxu0 0.0
    %151 = vmatpush1.msra.mxu0 %v27
    %152 = vmatprep.subr.mxu0 0.0
    %153 = vmatpush1.msra.mxu0 %v28
    %154 = vmatprep.subr.mxu0 0.0
    %155 = vmatpush1.msra.mxu0 %v29
    %156 = vmatprep.subr.mxu0 0.0
    %157 = vmatpush1.msra.mxu0 %v30
    %158 = vmatprep.subr.mxu0 0.0
    %159 = vmatpush1.msra.mxu0 %v31
    %160 = vmatprep.subr.mxu0 0.0
    %161 = vmatpush1.msra.mxu0 %v32
    %162 = vmatprep.subr.mxu0 0.0
    %163 = vmatpush1.msra.mxu0 %v33
    %164 = vmatprep.subr.mxu0 0.0
    %165 = vmatpush1.msra.mxu0 %v34
    %166 = vmatprep.subr.mxu0 0.0
    %167 = vmatpush1.msra.mxu0 %v35
    %168 = vmatprep.subr.mxu0 0.0
    %169 = vmatpush1.msra.mxu0 %v36
    %170 = vmatprep.subr.mxu0 0.0
    %171 = vmatpush1.msra.mxu0 %v37
    %172 = vmatprep.subr.mxu0 0.0
    %173 = vmatpush1.msra.mxu0 %v38
    %174 = vmatprep.subr.mxu0 0.0
    %175 = vmatpush1.msra.mxu0 %v39
    %176 = vmatprep.subr.mxu0 0.0
    %177 = vmatpush1.msra.mxu0 %v40
    %178 = vmatprep.subr.mxu0 0.0
    %179 = vmatpush1.msra.mxu0 0.0
    %180 = vmatprep.subr.mxu0 0.0
    %181 = vmatpush1.msra.mxu0 0.0
    %182 = vmatprep.subr.mxu0 0.0
    %183 = vmatpush1.msra.mxu0 0.0
    %184 = vmatprep.subr.mxu0 0.0
    %185 = vmatpush1.msra.mxu0 0.0
    %186 = vmatprep.subr.mxu0 0.0
    %187 = vmatpush1.msra.mxu0 0.0
    %188 = vmatprep.subr.mxu0 0.0
    %189 = vmatpush1.msra.mxu0 0.0
    %190 = vmatprep.subr.mxu0 0.0
    %191 = vmatpush1.msra.mxu0 0.0
    %192 = vmatprep.subr.mxu0 0.0
    %193 = vmatpush1.msra.mxu0 0.0
    %194 = vmatprep.subr.mxu0 0.0
    %195 = vmatpush1.msra.mxu0 0.0
    %196 = vmatprep.subr.mxu0 0.0
    %197 = vmatpush1.msra.mxu0 0.0
    %198 = vmatprep.subr.mxu0 0.0
    %199 = vmatpush1.msra.mxu0 0.0
    %200 = vmatprep.subr.mxu0 0.0
    %201 = vmatpush1.msra.mxu0 0.0
    %202 = vmatprep.subr.mxu0 0.0
    %203 = vmatpush1.msra.mxu0 0.0
    %204 = vmatprep.subr.mxu0 0.0
    %205 = vmatpush1.msra.mxu0 0.0
    %206 = vmatprep.subr.mxu0 0.0
    %207 = vmatpush1.msra.mxu0 0.0
    %208 = vmatprep.subr.mxu0 0.0
    %209 = vmatpush1.msra.mxu0 0.0
    %210 = vmatprep.mubr.f32.mxu0 0.0
    %211 = vmatmul.mubr.f32.gmra.mrb[0].mxu0 %v21
    %v212 = vpop.f32.mrb[0].mxu0
    %v213 = vadd.f32 %v128, %v212
    %v214 = vpop.f32.mrb[0].mxu0
    %215 = vmatprep.mubr.f32.mxu0 0.0
    %216 = vmatmul.mubr.f32.gmra.mrb[0].mxu0 %v22
    %v217 = vpop.f32.mrb[0].mxu0
    %v218 = vadd.f32 %v133, %v217
    %v219 = vpop.f32.mrb[0].mxu0
    %220 = vmatprep.mubr.f32.mxu0 0.0
    %221 = vmatmul.mubr.f32.gmra.mrb[0].mxu0 %v23
    %v222 = vpop.f32.mrb[0].mxu0
    %v223 = vadd.f32 %v138, %v222
    %v224 = vpop.f32.mrb[0].mxu0
    %225 = vmatprep.mubr.f32.mxu0 0.0
    %226 = vmatmul.mubr.f32.gmra.mrb[0].mxu0 %v24
    %v227 = vpop.f32.mrb[0].mxu0
    %v228 = vadd.f32 %v143, %v227
    %v229 = vpop.f32.mrb[0].mxu0
    %230 = vdwg.mxu0
    %v231 = vld [vmem:[%s4] sm:$0x1]
    %v233 = vlaneseq
    %v234 = vshrl.u32 %v233, 7
    %v235 = vsub.s32 0, %v234
    %v236 = vrot.slane %v231, %v235
    %v238 = vadd.f32 %v213, %v236
    %v239 = vadd.f32 %v218, %v236
    %v240 = vadd.f32 %v223, %v236
    %v241 = vadd.f32 %v228, %v236
    %v242 = vmax.f32 %v238, 0.0
    %v243 = vmax.f32 %v239, 0.0
    %v244 = vmax.f32 %v240, 0.0
    %v245 = vmax.f32 %v241, 0.0
    %246 = vst [vmem:[#allocation2] sm:$0xff] %v242
    %247 = vst [vmem:[#allocation2 + $0x8] sm:$0xff] %v243
    %248 = vst [vmem:[#allocation2 + $0x10] sm:$0xff] %v244
    %249 = vst [vmem:[#allocation2 + $0x18] sm:$0xff] %v245
    // Predicated region
    $region22: #{bottleneck_forward.5} parent=1 // pred_check
      _
    $region23: #{bottleneck_forward.5} parent=1 // pred_check_branch
      %251 = sbr.rel (0) target = $region25
    $region24: #{bottleneck_forward.5} parent=1 // pred_region
      %s253 = ssub.s32 512, 512
      %254 = vsyncadd [#allocation3], %s253
      %s255 = sshll.u32 [#allocation2], 4
      %s256 = int_to_ptr.vmem [resolvable:$true] %s255
      %261 = dma.vmem_to_hbm [thread:$0]  %s256, 512, %s5, [#allocation3], 128, 128, 8
    $region25: #{bottleneck_forward.5} parent=1 // pred_fallthru
      _
    // Predicated region
    $region26: #{bottleneck_forward.5} parent=1 // pred_check
      _
    $region27: #{bottleneck_forward.5} parent=1 // pred_check_branch
      %263 = sbr.rel (0) target = $region29
    $region28: #{bottleneck_forward.5} parent=1 // pred_region
      %264 = dma.done [#allocation3], 512
    $region29: #{bottleneck_forward.5} parent=1 // pred_fallthru
      _
    %265 = vsyncpa [#allocation3], 1

</llo_original>
